<compile_context>
chip_gen: v7x
topology: tpu7x:2x2x1
jax: 0.10.0
libtpu: 0.0.40
codegen_flags: <defaults>
</compile_context>

<pallas_src>
import numpy as np
import jax
import jax.numpy as jnp
from jax.experimental import pallas as pl
from jax.experimental.pallas import tpu as pltpu


# ---------------------------------------------------------------------------
# Pallas kernel: W_BLK windows per grid step, all heads inside.
# ---------------------------------------------------------------------------
def _swin_attn_kernel(xq_ref, xk_ref, xv_ref,
                      wqkv_ref, bqkv_ref, wp_ref, bp_ref,
                      rel_ref, mask_ref, out_ref):
    # Block shapes:
    #   xq/xk/xv : (1, WB, N, C)
    #   wqkv     : (3, C, C)   stacked [Wq; Wk; Wv], already [in, out]
    #   bqkv     : (3, 1, C)
    #   wp       : (C, C),  bp : (1, C)
    #   rel      : (nh, N, N)  relative-position bias (shared by all windows)
    #   mask     : (WB, N, N)  shift attention mask for this window block
    #   out      : (1, WB, N, C)
    WB = xq_ref.shape[1]
    N = xq_ref.shape[2]
    C = xq_ref.shape[3]
    nh = rel_ref.shape[0]
    hd = C // nh
    rows = WB * N
    scale = hd ** (-0.5)

    xq = xq_ref[0].reshape(rows, C)
    xk = xk_ref[0].reshape(rows, C)
    xv = xv_ref[0].reshape(rows, C)

    # Q/K/V projections: three (rows x C) @ (C x C) MXU matmuls (f32 acc).
    q = (jnp.dot(xq, wqkv_ref[0], preferred_element_type=jnp.float32)
         + bqkv_ref[0]) * scale
    k = jnp.dot(xk, wqkv_ref[1], preferred_element_type=jnp.float32) + bqkv_ref[1]
    v = jnp.dot(xv, wqkv_ref[2], preferred_element_type=jnp.float32) + bqkv_ref[2]

    mask = mask_ref[...]                      # (WB, N, N)

    head_outs = []
    for h in range(nh):                       # static, unrolled over heads
        qh = q[:, h * hd:(h + 1) * hd].reshape(WB, N, hd)
        kh = k[:, h * hd:(h + 1) * hd].reshape(WB, N, hd)
        vh = v[:, h * hd:(h + 1) * hd].reshape(WB, N, hd)

        # (WB, N, N) attention scores, windows batched in the dot.
        s = jnp.einsum('bqd,bkd->bqk', qh, kh,
                       preferred_element_type=jnp.float32)
        s = s + (rel_ref[h][None, :, :] + mask)

        # numerically-stable softmax along the last dim
        s = s - jnp.max(s, axis=-1, keepdims=True)
        p = jnp.exp(s)
        p = p * pl.reciprocal(jnp.sum(p, axis=-1, keepdims=True), approx=True)

        oh = jnp.einsum('bqk,bkd->bqd', p, vh,
                        preferred_element_type=jnp.float32)    # (WB, N, hd)
        head_outs.append(oh.reshape(rows, hd))

    xo = jnp.concatenate(head_outs, axis=-1)                    # (rows, C)
    out = jnp.dot(xo, wp_ref[...], preferred_element_type=jnp.float32) + bp_ref[0]
    out_ref[0] = out.reshape(WB, N, C).astype(out_ref.dtype)


# ---------------------------------------------------------------------------
# Host-side helpers (glue, mirrors the PyTorch reference semantics)
# ---------------------------------------------------------------------------
def _relative_position_index(window_size):
    wh, ww = window_size
    coords = np.stack(np.meshgrid(np.arange(wh), np.arange(ww), indexing="ij"))
    coords_flat = coords.reshape(2, -1)                            # (2, N)
    rel = coords_flat[:, :, None] - coords_flat[:, None, :]        # (2, N, N)
    rel = rel.transpose(1, 2, 0).copy()                            # (N, N, 2)
    rel[:, :, 0] += wh - 1
    rel[:, :, 1] += ww - 1
    rel[:, :, 0] *= 2 * ww - 1
    return jnp.asarray(rel.sum(-1).reshape(-1), dtype=jnp.int32)   # (N*N,)


def _shift_attn_mask(pad_H, pad_W, window_size, shift_size):
    ws0, ws1 = window_size
    ss0, ss1 = shift_size
    mask = np.zeros((pad_H, pad_W), np.float32)
    h_slices = ((0, -ws0), (-ws0, -ss0), (-ss0, None))
    w_slices = ((0, -ws1), (-ws1, -ss1), (-ss1, None))
    count = 0
    for h in h_slices:
        for w in w_slices:
            mask[h[0]:h[1], w[0]:w[1]] = count
            count += 1
    mask = mask.reshape(pad_H // ws0, ws0, pad_W // ws1, ws1)
    mask = mask.transpose(0, 2, 1, 3).reshape(-1, ws0 * ws1)       # (nw, N)
    attn_mask = mask[:, None, :] - mask[:, :, None]                # (nw, N, N)
    attn_mask = np.where(attn_mask != 0, -100.0, 0.0).astype(np.float32)
    return jnp.asarray(attn_mask)


def _window_partition(x, B, pH, pW, C, ws0, ws1):
    nw = (pH // ws0) * (pW // ws1)
    x = x.reshape(B, pH // ws0, ws0, pW // ws1, ws1, C)
    x = x.transpose(0, 1, 3, 2, 4, 5)
    return x.reshape(B, nw, ws0 * ws1, C)


def _window_unpartition(xw, B, pH, pW, C, ws0, ws1):
    x = xw.reshape(B, pH // ws0, pW // ws1, ws0, ws1, C)
    x = x.transpose(0, 1, 3, 2, 4, 5)
    return x.reshape(B, pH, pW, C)


def _prepare(xq, xk, xv, params, window_size, shift_size, num_heads):
    """Pad, shift, partition windows and build rel-pos bias + shift mask."""
    B, H, W, C = xq.shape
    ws0, ws1 = window_size
    pad_r = (ws1 - W % ws1) % ws1
    pad_b = (ws0 - H % ws0) % ws0
    padf = lambda x: jnp.pad(x, ((0, 0), (0, pad_b), (0, pad_r), (0, 0)))
    xq, xk, xv = padf(xq), padf(xk), padf(xv)
    _, pH, pW, _ = xq.shape

    ss = list(shift_size)
    if ws0 >= pH:
        ss[0] = 0
    if ws1 >= pW:
        ss[1] = 0

    if sum(ss) > 0:
        rollf = lambda x: jnp.roll(x, shift=(-ss[0], -ss[1]), axis=(1, 2))
        xq, xk, xv = rollf(xq), rollf(xk), rollf(xv)

    nw = (pH // ws0) * (pW // ws1)
    N = ws0 * ws1

    xq_w = _window_partition(xq, B, pH, pW, C, ws0, ws1)   # (B, nw, N, C)
    xk_w = _window_partition(xk, B, pH, pW, C, ws0, ws1)
    xv_w = _window_partition(xv, B, pH, pW, C, ws0, ws1)

    # relative position bias, shared by every window: (nh, N, N)
    rel_bias = params["rpb_table"][params["rp_index"]]
    rel_bias = rel_bias.reshape(N, N, num_heads).transpose(2, 0, 1)
    rel_bias = rel_bias.astype(jnp.float32)

    # per-window shift mask: (nw, N, N) (zeros when no shift)
    if sum(ss) > 0:
        attn_mask = _shift_attn_mask(pH, pW, window_size, ss)
    else:
        attn_mask = jnp.zeros((nw, N, N), jnp.float32)

    return (xq_w, xk_w, xv_w, rel_bias, attn_mask,
            B, H, W, C, pH, pW, ss, nw, N)


def _pick_w_blk(nw, N, C, vmem_budget=8 * 1024 * 1024, target_rows=1024):
    """Largest divisor of nw such that the double-buffered window block fits."""
    best = 1
    for d in range(1, nw + 1):
        if nw % d:
            continue
        # xq/xk/xv/out blocks + mask block, f32, double-buffered
        blk_bytes = 2 * d * (4 * N * C + N * N) * 4
        if d * N <= target_rows and blk_bytes <= vmem_budget:
            best = d
    return best


# ---------------------------------------------------------------------------
# Pallas-backed forward
# ---------------------------------------------------------------------------
def shifted_window_attention_pallas(xq, xk, xv, params, window_size,
                                    shift_size, num_heads):
    (xq_w, xk_w, xv_w, rel_bias, attn_mask,
     B, H, W, C, pH, pW, ss, nw, N) = _prepare(
        xq, xk, xv, params, window_size, shift_size, num_heads)

    ws0, ws1 = window_size
    nh = num_heads
    W_BLK = _pick_w_blk(nw, N, C)
    n_wblk = nw // W_BLK

    # kernel expects weights as [in, out] so matmuls are x @ W; stack q/k/v.
    w_qkv = jnp.stack([params["wq"].T, params["wk"].T, params["wv"].T], axis=0)
    b_qkv = jnp.stack([params["bq"], params["bk"], params["bv"]],
                      axis=0).reshape(3, 1, C)
    w_p = params["wp"].T
    b_p = params["bp"].reshape(1, C)

    out_w = pl.pallas_call(
        _swin_attn_kernel,
        out_shape=jax.ShapeDtypeStruct((B, nw, N, C), xq.dtype),
        grid_spec=pltpu.PrefetchScalarGridSpec(
            num_scalar_prefetch=0,
            grid=(B, n_wblk),
            in_specs=[
                pl.BlockSpec((1, W_BLK, N, C), lambda b, w: (b, w, 0, 0)),  # xq
                pl.BlockSpec((1, W_BLK, N, C), lambda b, w: (b, w, 0, 0)),  # xk
                pl.BlockSpec((1, W_BLK, N, C), lambda b, w: (b, w, 0, 0)),  # xv
                pl.BlockSpec((3, C, C), lambda b, w: (0, 0, 0)),            # Wqkv
                pl.BlockSpec((3, 1, C), lambda b, w: (0, 0, 0)),            # bqkv
                pl.BlockSpec((C, C), lambda b, w: (0, 0)),                  # Wproj
                pl.BlockSpec((1, C), lambda b, w: (0, 0)),                  # bproj
                pl.BlockSpec((nh, N, N), lambda b, w: (0, 0, 0)),           # rel bias
                pl.BlockSpec((W_BLK, N, N), lambda b, w: (w, 0, 0)),        # shift mask
            ],
            out_specs=pl.BlockSpec((1, W_BLK, N, C), lambda b, w: (b, w, 0, 0)),
        ),
        compiler_params=pltpu.CompilerParams(
            dimension_semantics=("parallel", "parallel"),
            vmem_limit_bytes=32 * 1024 * 1024,
        ),
    )(xq_w, xk_w, xv_w, w_qkv, b_qkv, w_p, b_p, rel_bias, attn_mask)

    # TODO(synk): attention_dropout / dropout are 0.0 in this module config, so
    # they are identity; stateful dropout is not implemented in the kernel.

    x = _window_unpartition(out_w, B, pH, pW, C, ws0, ws1)
    if sum(ss) > 0:
        x = jnp.roll(x, shift=(ss[0], ss[1]), axis=(1, 2))
    return x[:, :H, :W, :]


# ---------------------------------------------------------------------------
# Pure-JAX reference (mirrors the PyTorch function) for correctness check
# ---------------------------------------------------------------------------
def shifted_window_attention_ref(xq, xk, xv, params, window_size,
                                 shift_size, num_heads):
    (xq_w, xk_w, xv_w, rel_bias, attn_mask,
     B, H, W, C, pH, pW, ss, nw, N) = _prepare(
        xq, xk, xv, params, window_size, shift_size, num_heads)

    ws0, ws1 = window_size
    nWB = B * nw
    hd = C // num_heads

    q = xq_w.reshape(nWB, N, C) @ params["wq"].T + params["bq"]
    k = xk_w.reshape(nWB, N, C) @ params["wk"].T + params["bk"]
    v = xv_w.reshape(nWB, N, C) @ params["wv"].T + params["bv"]

    q = q.reshape(nWB, N, num_heads, hd).transpose(0, 2, 1, 3) * hd ** (-0.5)
    k = k.reshape(nWB, N, num_heads, hd).transpose(0, 2, 1, 3)
    v = v.reshape(nWB, N, num_heads, hd).transpose(0, 2, 1, 3)

    full_bias = rel_bias[None, None] + attn_mask[None, :, None]     # (1,nw,nh,N,N)
    full_bias = jnp.broadcast_to(full_bias, (B, nw, num_heads, N, N))
    full_bias = full_bias.reshape(nWB, num_heads, N, N)

    attn = jnp.einsum("whqd,whkd->whqk", q, k) + full_bias
    attn = jax.nn.softmax(attn, axis=-1)
    x = jnp.einsum("whqk,whkd->whqd", attn, v)
    x = x.transpose(0, 2, 1, 3).reshape(B, nw, N, C)
    x = x @ params["wp"].T + params["bp"]

    x = _window_unpartition(x, B, pH, pW, C, ws0, ws1)
    if sum(ss) > 0:
        x = jnp.roll(x, shift=(ss[0], ss[1]), axis=(1, 2))
    return x[:, :H, :W, :]


# ---------------------------------------------------------------------------
# Deterministic parameter init (synthetic; matches nn.Linear shapes [out, in])
# ---------------------------------------------------------------------------
def init_params(key, dim, num_heads, window_size):
    ks = jax.random.split(key, 9)
    table_len = (2 * window_size[0] - 1) * (2 * window_size[1] - 1)
    params = {
        "wq": jax.random.normal(ks[0], (dim, dim), jnp.float32) * 0.05,
        "wk": jax.random.normal(ks[1], (dim, dim), jnp.float32) * 0.05,
        "wv": jax.random.normal(ks[2], (dim, dim), jnp.float32) * 0.05,
        "wp": jax.random.normal(ks[3], (dim, dim), jnp.float32) * 0.05,
        "bq": jax.random.normal(ks[4], (dim,), jnp.float32) * 0.02,
        "bk": jax.random.normal(ks[5], (dim,), jnp.float32) * 0.02,
        "bv": jax.random.normal(ks[6], (dim,), jnp.float32) * 0.02,
        "bp": jax.random.normal(ks[7], (dim,), jnp.float32) * 0.02,
        "rpb_table": jax.random.normal(ks[8], (table_len, num_heads),
                                       jnp.float32) * 0.02,
        "rp_index": _relative_position_index(window_size),
    }
    return params


# ---------------------------------------------------------------------------
if __name__ == "__main__":
    B, H, W, C = 2, 8, 8, 32
    num_heads = 4
    window_size = [4, 4]
    shift_size = [2, 2]     # shifted windows -> exercises the attention mask

    key = jax.random.PRNGKey(0)
    k_q, k_k, k_v, k_p = jax.random.split(key, 4)
    xq = jax.random.normal(k_q, (B, H, W, C), jnp.float32)
    xk = jax.random.normal(k_k, (B, H, W, C), jnp.float32)
    xv = jax.random.normal(k_v, (B, H, W, C), jnp.float32)

    params = init_params(k_p, C, num_heads, window_size)

    out = shifted_window_attention_pallas(xq, xk, xv, params, window_size,
                                          shift_size, num_heads)
    out = jax.block_until_ready(out)

    ref = shifted_window_attention_ref(xq, xk, xv, params, window_size,
                                       shift_size, num_heads)
    ref = jax.block_until_ready(ref)

    assert out.shape == (B, H, W, C), out.shape
    # tolerance relaxed slightly vs 1e-4 because the kernel uses the EUP
    # approximate reciprocal (pl.reciprocal(..., approx=True)) for softmax.
    np.testing.assert_allclose(np.asarray(out), np.asarray(ref),
                               rtol=2e-3, atol=2e-3)
    print("KERNEL_OK")
</pallas_src>

<mosaic_0001>
module attributes {stable_mosaic.version = 11 : i64} {
  func.func @_swin_attn_kernel(%arg0: i32, %arg1: i32, %arg2: memref<1x4x16x32xf32, #tpu.memory_space<vmem>>, %arg3: memref<1x4x16x32xf32, #tpu.memory_space<vmem>>, %arg4: memref<1x4x16x32xf32, #tpu.memory_space<vmem>>, %arg5: memref<3x32x32xf32, #tpu.memory_space<vmem>>, %arg6: memref<3x1x32xf32, #tpu.memory_space<vmem>>, %arg7: memref<32x32xf32, #tpu.memory_space<vmem>>, %arg8: memref<1x32xf32, #tpu.memory_space<vmem>>, %arg9: memref<4x16x16xf32, #tpu.memory_space<vmem>>, %arg10: memref<4x16x16xf32, #tpu.memory_space<vmem>>, %arg11: memref<1x4x16x32xf32, #tpu.memory_space<vmem>>) attributes {dimension_semantics = [#tpu.dimension_semantics<parallel>, #tpu.dimension_semantics<parallel>], iteration_bounds = array<i64: 2, 1>, scalar_prefetch = 0 : i64, scratch_operands = 0 : i64, tpu.core_type = #tpu.core_type<tc>, window_params = [{transform_indices = @transform_0, window_bounds = array<i64: 1, 4, 16, 32>}, {transform_indices = @transform_1, window_bounds = array<i64: 1, 4, 16, 32>}, {transform_indices = @transform_2, window_bounds = array<i64: 1, 4, 16, 32>}, {pipeline_mode = #tpu.pipeline_mode<synchronous>, transform_indices = @transform_3, window_bounds = array<i64: 3, 32, 32>}, {pipeline_mode = #tpu.pipeline_mode<synchronous>, transform_indices = @transform_4, window_bounds = array<i64: 3, 1, 32>}, {pipeline_mode = #tpu.pipeline_mode<synchronous>, transform_indices = @transform_5, window_bounds = array<i64: 32, 32>}, {pipeline_mode = #tpu.pipeline_mode<synchronous>, transform_indices = @transform_6, window_bounds = array<i64: 1, 32>}, {pipeline_mode = #tpu.pipeline_mode<synchronous>, transform_indices = @transform_7, window_bounds = array<i64: 4, 16, 16>}, {transform_indices = @transform_8, window_bounds = array<i64: 4, 16, 16>}, {transform_indices = @transform_9, window_bounds = array<i64: 1, 4, 16, 32>}]} {
    %c0 = arith.constant 0 : index
    %c0_0 = arith.constant 0 : index
    %c0_1 = arith.constant 0 : index
    %c0_2 = arith.constant 0 : index
    %0 = vector.load %arg2[%c0, %c0_0, %c0_1, %c0_2] : memref<1x4x16x32xf32, #tpu.memory_space<vmem>>, vector<1x4x16x32xf32>
    %1 = vector.shape_cast %0 : vector<1x4x16x32xf32> to vector<4x16x32xf32>
    %2 = vector.shape_cast %1 : vector<4x16x32xf32> to vector<64x32xf32>
    %c0_3 = arith.constant 0 : index
    %c0_4 = arith.constant 0 : index
    %c0_5 = arith.constant 0 : index
    %c0_6 = arith.constant 0 : index
    %3 = vector.load %arg3[%c0_3, %c0_4, %c0_5, %c0_6] : memref<1x4x16x32xf32, #tpu.memory_space<vmem>>, vector<1x4x16x32xf32>
    %4 = vector.shape_cast %3 : vector<1x4x16x32xf32> to vector<4x16x32xf32>
    %5 = vector.shape_cast %4 : vector<4x16x32xf32> to vector<64x32xf32>
    %c0_7 = arith.constant 0 : index
    %c0_8 = arith.constant 0 : index
    %c0_9 = arith.constant 0 : index
    %c0_10 = arith.constant 0 : index
    %6 = vector.load %arg4[%c0_7, %c0_8, %c0_9, %c0_10] : memref<1x4x16x32xf32, #tpu.memory_space<vmem>>, vector<1x4x16x32xf32>
    %7 = vector.shape_cast %6 : vector<1x4x16x32xf32> to vector<4x16x32xf32>
    %8 = vector.shape_cast %7 : vector<4x16x32xf32> to vector<64x32xf32>
    %c0_11 = arith.constant 0 : index
    %c0_12 = arith.constant 0 : index
    %c0_13 = arith.constant 0 : index
    %9 = vector.load %arg5[%c0_11, %c0_12, %c0_13] : memref<3x32x32xf32, #tpu.memory_space<vmem>>, vector<1x32x32xf32>
    %10 = vector.shape_cast %9 : vector<1x32x32xf32> to vector<32x32xf32>
    %cst = arith.constant dense<0.000000e+00> : vector<64x32xf32>
    %11 = tpu.matmul %2, %10, %cst {dimension_numbers = #tpu.dot_dimension_numbers<[1], [0], [0], [1], [0, 0, 1, 1], [], []>} : vector<64x32xf32>, vector<32x32xf32>, vector<64x32xf32> -> vector<64x32xf32>
    %c0_14 = arith.constant 0 : index
    %c0_15 = arith.constant 0 : index
    %c0_16 = arith.constant 0 : index
    %12 = vector.load %arg6[%c0_14, %c0_15, %c0_16] : memref<3x1x32xf32, #tpu.memory_space<vmem>>, vector<1x1x32xf32>
    %13 = vector.shape_cast %12 : vector<1x1x32xf32> to vector<1x32xf32>
    %14 = vector.broadcast %13 : vector<1x32xf32> to vector<64x32xf32>
    %15 = arith.addf %11, %14 : vector<64x32xf32>
    %cst_17 = arith.constant 0.353553385 : f32
    %16 = vector.broadcast %cst_17 : f32 to vector<64x32xf32>
    %17 = arith.mulf %15, %16 : vector<64x32xf32>
    %c1 = arith.constant 1 : index
    %c0_18 = arith.constant 0 : index
    %c0_19 = arith.constant 0 : index
    %18 = vector.load %arg5[%c1, %c0_18, %c0_19] : memref<3x32x32xf32, #tpu.memory_space<vmem>>, vector<1x32x32xf32>
    %19 = vector.shape_cast %18 : vector<1x32x32xf32> to vector<32x32xf32>
    %cst_20 = arith.constant dense<0.000000e+00> : vector<64x32xf32>
    %20 = tpu.matmul %5, %19, %cst_20 {dimension_numbers = #tpu.dot_dimension_numbers<[1], [0], [0], [1], [0, 0, 1, 1], [], []>} : vector<64x32xf32>, vector<32x32xf32>, vector<64x32xf32> -> vector<64x32xf32>
    %c1_21 = arith.constant 1 : index
    %c0_22 = arith.constant 0 : index
    %c0_23 = arith.constant 0 : index
    %21 = vector.load %arg6[%c1_21, %c0_22, %c0_23] : memref<3x1x32xf32, #tpu.memory_space<vmem>>, vector<1x1x32xf32>
    %22 = vector.shape_cast %21 : vector<1x1x32xf32> to vector<1x32xf32>
    %23 = vector.broadcast %22 : vector<1x32xf32> to vector<64x32xf32>
    %24 = arith.addf %20, %23 : vector<64x32xf32>
    %c2 = arith.constant 2 : index
    %c0_24 = arith.constant 0 : index
    %c0_25 = arith.constant 0 : index
    %25 = vector.load %arg5[%c2, %c0_24, %c0_25] : memref<3x32x32xf32, #tpu.memory_space<vmem>>, vector<1x32x32xf32>
    %26 = vector.shape_cast %25 : vector<1x32x32xf32> to vector<32x32xf32>
    %cst_26 = arith.constant dense<0.000000e+00> : vector<64x32xf32>
    %27 = tpu.matmul %8, %26, %cst_26 {dimension_numbers = #tpu.dot_dimension_numbers<[1], [0], [0], [1], [0, 0, 1, 1], [], []>} : vector<64x32xf32>, vector<32x32xf32>, vector<64x32xf32> -> vector<64x32xf32>
    %c2_27 = arith.constant 2 : index
    %c0_28 = arith.constant 0 : index
    %c0_29 = arith.constant 0 : index
    %28 = vector.load %arg6[%c2_27, %c0_28, %c0_29] : memref<3x1x32xf32, #tpu.memory_space<vmem>>, vector<1x1x32xf32>
    %29 = vector.shape_cast %28 : vector<1x1x32xf32> to vector<1x32xf32>
    %30 = vector.broadcast %29 : vector<1x32xf32> to vector<64x32xf32>
    %31 = arith.addf %27, %30 : vector<64x32xf32>
    %c0_30 = arith.constant 0 : index
    %c0_31 = arith.constant 0 : index
    %c0_32 = arith.constant 0 : index
    %32 = vector.load %arg10[%c0_30, %c0_31, %c0_32] : memref<4x16x16xf32, #tpu.memory_space<vmem>>, vector<4x16x16xf32>
    %33 = vector.extract_strided_slice %17 {offsets = [0, 0], sizes = [64, 8], strides = [1, 1]} : vector<64x32xf32> to vector<64x8xf32>
    %34 = vector.shape_cast %33 : vector<64x8xf32> to vector<4x16x8xf32>
    %35 = vector.extract_strided_slice %24 {offsets = [0, 0], sizes = [64, 8], strides = [1, 1]} : vector<64x32xf32> to vector<64x8xf32>
    %36 = vector.shape_cast %35 : vector<64x8xf32> to vector<4x16x8xf32>
    %37 = vector.extract_strided_slice %31 {offsets = [0, 0], sizes = [64, 8], strides = [1, 1]} : vector<64x32xf32> to vector<64x8xf32>
    %38 = vector.shape_cast %37 : vector<64x8xf32> to vector<4x16x8xf32>
    "tpu.trace_start"() <{level = 10 : i32, message = "bqd,bkd->bqk"}> : () -> ()
    %cst_33 = arith.constant dense<0.000000e+00> : vector<4x16x16xf32>
    %39 = tpu.matmul %34, %36, %cst_33 {dimension_numbers = #tpu.dot_dimension_numbers<[2], [2], [1], [1], [0, 0, 0, 1, 1, 1], [0], [0]>} : vector<4x16x8xf32>, vector<4x16x8xf32>, vector<4x16x16xf32> -> vector<4x16x16xf32>
    "tpu.trace_stop"() : () -> ()
    %c0_34 = arith.constant 0 : index
    %c0_35 = arith.constant 0 : index
    %c0_36 = arith.constant 0 : index
    %40 = vector.load %arg9[%c0_34, %c0_35, %c0_36] : memref<4x16x16xf32, #tpu.memory_space<vmem>>, vector<1x16x16xf32>
    %41 = vector.shape_cast %40 : vector<1x16x16xf32> to vector<16x16xf32>
    %42 = vector.shape_cast %41 : vector<16x16xf32> to vector<1x16x16xf32>
    %43 = vector.broadcast %42 : vector<1x16x16xf32> to vector<4x16x16xf32>
    %44 = arith.addf %43, %32 : vector<4x16x16xf32>
    %45 = arith.addf %39, %44 : vector<4x16x16xf32>
    %cst_37 = arith.constant dense<0xFF800000> : vector<4x16xf32>
    %46 = vector.multi_reduction <maximumf>, %45, %cst_37 [2] : vector<4x16x16xf32> to vector<4x16xf32>
    %47 = vector.shape_cast %46 : vector<4x16xf32> to vector<4x16x1xf32>
    %48 = vector.broadcast %47 : vector<4x16x1xf32> to vector<4x16x16xf32>
    %49 = arith.subf %45, %48 : vector<4x16x16xf32>
    %50 = math.exp %49 : vector<4x16x16xf32>
    %cst_38 = arith.constant dense<0.000000e+00> : vector<4x16xf32>
    %51 = vector.multi_reduction <add>, %50, %cst_38 [2] : vector<4x16x16xf32> to vector<4x16xf32>
    %52 = vector.shape_cast %51 : vector<4x16xf32> to vector<4x16x1xf32>
    %53 = tpu.reciprocal %52 {approx = true} : vector<4x16x1xf32> -> vector<4x16x1xf32>
    %54 = vector.broadcast %53 : vector<4x16x1xf32> to vector<4x16x16xf32>
    %55 = arith.mulf %50, %54 : vector<4x16x16xf32>
    "tpu.trace_start"() <{level = 10 : i32, message = "bqk,bkd->bqd"}> : () -> ()
    %cst_39 = arith.constant dense<0.000000e+00> : vector<4x16x8xf32>
    %56 = tpu.matmul %55, %38, %cst_39 {dimension_numbers = #tpu.dot_dimension_numbers<[2], [1], [1], [2], [0, 0, 0, 1, 1, 2], [0], [0]>} : vector<4x16x16xf32>, vector<4x16x8xf32>, vector<4x16x8xf32> -> vector<4x16x8xf32>
    "tpu.trace_stop"() : () -> ()
    %57 = vector.shape_cast %56 : vector<4x16x8xf32> to vector<64x8xf32>
    %58 = vector.extract_strided_slice %17 {offsets = [0, 8], sizes = [64, 8], strides = [1, 1]} : vector<64x32xf32> to vector<64x8xf32>
    %59 = vector.shape_cast %58 : vector<64x8xf32> to vector<4x16x8xf32>
    %60 = vector.extract_strided_slice %24 {offsets = [0, 8], sizes = [64, 8], strides = [1, 1]} : vector<64x32xf32> to vector<64x8xf32>
    %61 = vector.shape_cast %60 : vector<64x8xf32> to vector<4x16x8xf32>
    %62 = vector.extract_strided_slice %31 {offsets = [0, 8], sizes = [64, 8], strides = [1, 1]} : vector<64x32xf32> to vector<64x8xf32>
    %63 = vector.shape_cast %62 : vector<64x8xf32> to vector<4x16x8xf32>
    "tpu.trace_start"() <{level = 10 : i32, message = "bqd,bkd->bqk"}> : () -> ()
    %cst_40 = arith.constant dense<0.000000e+00> : vector<4x16x16xf32>
    %64 = tpu.matmul %59, %61, %cst_40 {dimension_numbers = #tpu.dot_dimension_numbers<[2], [2], [1], [1], [0, 0, 0, 1, 1, 1], [0], [0]>} : vector<4x16x8xf32>, vector<4x16x8xf32>, vector<4x16x16xf32> -> vector<4x16x16xf32>
    "tpu.trace_stop"() : () -> ()
    %c1_41 = arith.constant 1 : index
    %c0_42 = arith.constant 0 : index
    %c0_43 = arith.constant 0 : index
    %65 = vector.load %arg9[%c1_41, %c0_42, %c0_43] : memref<4x16x16xf32, #tpu.memory_space<vmem>>, vector<1x16x16xf32>
    %66 = vector.shape_cast %65 : vector<1x16x16xf32> to vector<16x16xf32>
    %67 = vector.shape_cast %66 : vector<16x16xf32> to vector<1x16x16xf32>
    %68 = vector.broadcast %67 : vector<1x16x16xf32> to vector<4x16x16xf32>
    %69 = arith.addf %68, %32 : vector<4x16x16xf32>
    %70 = arith.addf %64, %69 : vector<4x16x16xf32>
    %cst_44 = arith.constant dense<0xFF800000> : vector<4x16xf32>
    %71 = vector.multi_reduction <maximumf>, %70, %cst_44 [2] : vector<4x16x16xf32> to vector<4x16xf32>
    %72 = vector.shape_cast %71 : vector<4x16xf32> to vector<4x16x1xf32>
    %73 = vector.broadcast %72 : vector<4x16x1xf32> to vector<4x16x16xf32>
    %74 = arith.subf %70, %73 : vector<4x16x16xf32>
    %75 = math.exp %74 : vector<4x16x16xf32>
    %cst_45 = arith.constant dense<0.000000e+00> : vector<4x16xf32>
    %76 = vector.multi_reduction <add>, %75, %cst_45 [2] : vector<4x16x16xf32> to vector<4x16xf32>
    %77 = vector.shape_cast %76 : vector<4x16xf32> to vector<4x16x1xf32>
    %78 = tpu.reciprocal %77 {approx = true} : vector<4x16x1xf32> -> vector<4x16x1xf32>
    %79 = vector.broadcast %78 : vector<4x16x1xf32> to vector<4x16x16xf32>
    %80 = arith.mulf %75, %79 : vector<4x16x16xf32>
    "tpu.trace_start"() <{level = 10 : i32, message = "bqk,bkd->bqd"}> : () -> ()
    %cst_46 = arith.constant dense<0.000000e+00> : vector<4x16x8xf32>
    %81 = tpu.matmul %80, %63, %cst_46 {dimension_numbers = #tpu.dot_dimension_numbers<[2], [1], [1], [2], [0, 0, 0, 1, 1, 2], [0], [0]>} : vector<4x16x16xf32>, vector<4x16x8xf32>, vector<4x16x8xf32> -> vector<4x16x8xf32>
    "tpu.trace_stop"() : () -> ()
    %82 = vector.shape_cast %81 : vector<4x16x8xf32> to vector<64x8xf32>
    %83 = vector.extract_strided_slice %17 {offsets = [0, 16], sizes = [64, 8], strides = [1, 1]} : vector<64x32xf32> to vector<64x8xf32>
    %84 = vector.shape_cast %83 : vector<64x8xf32> to vector<4x16x8xf32>
    %85 = vector.extract_strided_slice %24 {offsets = [0, 16], sizes = [64, 8], strides = [1, 1]} : vector<64x32xf32> to vector<64x8xf32>
    %86 = vector.shape_cast %85 : vector<64x8xf32> to vector<4x16x8xf32>
    %87 = vector.extract_strided_slice %31 {offsets = [0, 16], sizes = [64, 8], strides = [1, 1]} : vector<64x32xf32> to vector<64x8xf32>
    %88 = vector.shape_cast %87 : vector<64x8xf32> to vector<4x16x8xf32>
    "tpu.trace_start"() <{level = 10 : i32, message = "bqd,bkd->bqk"}> : () -> ()
    %cst_47 = arith.constant dense<0.000000e+00> : vector<4x16x16xf32>
    %89 = tpu.matmul %84, %86, %cst_47 {dimension_numbers = #tpu.dot_dimension_numbers<[2], [2], [1], [1], [0, 0, 0, 1, 1, 1], [0], [0]>} : vector<4x16x8xf32>, vector<4x16x8xf32>, vector<4x16x16xf32> -> vector<4x16x16xf32>
    "tpu.trace_stop"() : () -> ()
    %c2_48 = arith.constant 2 : index
    %c0_49 = arith.constant 0 : index
    %c0_50 = arith.constant 0 : index
    %90 = vector.load %arg9[%c2_48, %c0_49, %c0_50] : memref<4x16x16xf32, #tpu.memory_space<vmem>>, vector<1x16x16xf32>
    %91 = vector.shape_cast %90 : vector<1x16x16xf32> to vector<16x16xf32>
    %92 = vector.shape_cast %91 : vector<16x16xf32> to vector<1x16x16xf32>
    %93 = vector.broadcast %92 : vector<1x16x16xf32> to vector<4x16x16xf32>
    %94 = arith.addf %93, %32 : vector<4x16x16xf32>
    %95 = arith.addf %89, %94 : vector<4x16x16xf32>
    %cst_51 = arith.constant dense<0xFF800000> : vector<4x16xf32>
    %96 = vector.multi_reduction <maximumf>, %95, %cst_51 [2] : vector<4x16x16xf32> to vector<4x16xf32>
    %97 = vector.shape_cast %96 : vector<4x16xf32> to vector<4x16x1xf32>
    %98 = vector.broadcast %97 : vector<4x16x1xf32> to vector<4x16x16xf32>
    %99 = arith.subf %95, %98 : vector<4x16x16xf32>
    %100 = math.exp %99 : vector<4x16x16xf32>
    %cst_52 = arith.constant dense<0.000000e+00> : vector<4x16xf32>
    %101 = vector.multi_reduction <add>, %100, %cst_52 [2] : vector<4x16x16xf32> to vector<4x16xf32>
    %102 = vector.shape_cast %101 : vector<4x16xf32> to vector<4x16x1xf32>
    %103 = tpu.reciprocal %102 {approx = true} : vector<4x16x1xf32> -> vector<4x16x1xf32>
    %104 = vector.broadcast %103 : vector<4x16x1xf32> to vector<4x16x16xf32>
    %105 = arith.mulf %100, %104 : vector<4x16x16xf32>
    "tpu.trace_start"() <{level = 10 : i32, message = "bqk,bkd->bqd"}> : () -> ()
    %cst_53 = arith.constant dense<0.000000e+00> : vector<4x16x8xf32>
    %106 = tpu.matmul %105, %88, %cst_53 {dimension_numbers = #tpu.dot_dimension_numbers<[2], [1], [1], [2], [0, 0, 0, 1, 1, 2], [0], [0]>} : vector<4x16x16xf32>, vector<4x16x8xf32>, vector<4x16x8xf32> -> vector<4x16x8xf32>
    "tpu.trace_stop"() : () -> ()
    %107 = vector.shape_cast %106 : vector<4x16x8xf32> to vector<64x8xf32>
    %108 = vector.extract_strided_slice %17 {offsets = [0, 24], sizes = [64, 8], strides = [1, 1]} : vector<64x32xf32> to vector<64x8xf32>
    %109 = vector.shape_cast %108 : vector<64x8xf32> to vector<4x16x8xf32>
    %110 = vector.extract_strided_slice %24 {offsets = [0, 24], sizes = [64, 8], strides = [1, 1]} : vector<64x32xf32> to vector<64x8xf32>
    %111 = vector.shape_cast %110 : vector<64x8xf32> to vector<4x16x8xf32>
    %112 = vector.extract_strided_slice %31 {offsets = [0, 24], sizes = [64, 8], strides = [1, 1]} : vector<64x32xf32> to vector<64x8xf32>
    %113 = vector.shape_cast %112 : vector<64x8xf32> to vector<4x16x8xf32>
    "tpu.trace_start"() <{level = 10 : i32, message = "bqd,bkd->bqk"}> : () -> ()
    %cst_54 = arith.constant dense<0.000000e+00> : vector<4x16x16xf32>
    %114 = tpu.matmul %109, %111, %cst_54 {dimension_numbers = #tpu.dot_dimension_numbers<[2], [2], [1], [1], [0, 0, 0, 1, 1, 1], [0], [0]>} : vector<4x16x8xf32>, vector<4x16x8xf32>, vector<4x16x16xf32> -> vector<4x16x16xf32>
    "tpu.trace_stop"() : () -> ()
    %c3 = arith.constant 3 : index
    %c0_55 = arith.constant 0 : index
    %c0_56 = arith.constant 0 : index
    %115 = vector.load %arg9[%c3, %c0_55, %c0_56] : memref<4x16x16xf32, #tpu.memory_space<vmem>>, vector<1x16x16xf32>
    %116 = vector.shape_cast %115 : vector<1x16x16xf32> to vector<16x16xf32>
    %117 = vector.shape_cast %116 : vector<16x16xf32> to vector<1x16x16xf32>
    %118 = vector.broadcast %117 : vector<1x16x16xf32> to vector<4x16x16xf32>
    %119 = arith.addf %118, %32 : vector<4x16x16xf32>
    %120 = arith.addf %114, %119 : vector<4x16x16xf32>
    %cst_57 = arith.constant dense<0xFF800000> : vector<4x16xf32>
    %121 = vector.multi_reduction <maximumf>, %120, %cst_57 [2] : vector<4x16x16xf32> to vector<4x16xf32>
    %122 = vector.shape_cast %121 : vector<4x16xf32> to vector<4x16x1xf32>
    %123 = vector.broadcast %122 : vector<4x16x1xf32> to vector<4x16x16xf32>
    %124 = arith.subf %120, %123 : vector<4x16x16xf32>
    %125 = math.exp %124 : vector<4x16x16xf32>
    %cst_58 = arith.constant dense<0.000000e+00> : vector<4x16xf32>
    %126 = vector.multi_reduction <add>, %125, %cst_58 [2] : vector<4x16x16xf32> to vector<4x16xf32>
    %127 = vector.shape_cast %126 : vector<4x16xf32> to vector<4x16x1xf32>
    %128 = tpu.reciprocal %127 {approx = true} : vector<4x16x1xf32> -> vector<4x16x1xf32>
    %129 = vector.broadcast %128 : vector<4x16x1xf32> to vector<4x16x16xf32>
    %130 = arith.mulf %125, %129 : vector<4x16x16xf32>
    "tpu.trace_start"() <{level = 10 : i32, message = "bqk,bkd->bqd"}> : () -> ()
    %cst_59 = arith.constant dense<0.000000e+00> : vector<4x16x8xf32>
    %131 = tpu.matmul %130, %113, %cst_59 {dimension_numbers = #tpu.dot_dimension_numbers<[2], [1], [1], [2], [0, 0, 0, 1, 1, 2], [0], [0]>} : vector<4x16x16xf32>, vector<4x16x8xf32>, vector<4x16x8xf32> -> vector<4x16x8xf32>
    "tpu.trace_stop"() : () -> ()
    %132 = vector.shape_cast %131 : vector<4x16x8xf32> to vector<64x8xf32>
    %133 = tpu.concatenate %57, %82, %107, %132 in 1 : vector<64x8xf32>, vector<64x8xf32>, vector<64x8xf32>, vector<64x8xf32> -> vector<64x32xf32>
    %c0_60 = arith.constant 0 : index
    %c0_61 = arith.constant 0 : index
    %134 = vector.load %arg7[%c0_60, %c0_61] : memref<32x32xf32, #tpu.memory_space<vmem>>, vector<32x32xf32>
    %cst_62 = arith.constant dense<0.000000e+00> : vector<64x32xf32>
    %135 = tpu.matmul %133, %134, %cst_62 {dimension_numbers = #tpu.dot_dimension_numbers<[1], [0], [0], [1], [0, 0, 1, 1], [], []>} : vector<64x32xf32>, vector<32x32xf32>, vector<64x32xf32> -> vector<64x32xf32>
    %c0_63 = arith.constant 0 : index
    %c0_64 = arith.constant 0 : index
    %136 = vector.load %arg8[%c0_63, %c0_64] : memref<1x32xf32, #tpu.memory_space<vmem>>, vector<1x32xf32>
    %137 = vector.shape_cast %136 : vector<1x32xf32> to vector<32xf32>
    %138 = vector.shape_cast %137 : vector<32xf32> to vector<1x32xf32>
    %139 = vector.broadcast %138 : vector<1x32xf32> to vector<64x32xf32>
    %140 = arith.addf %135, %139 : vector<64x32xf32>
    %141 = vector.shape_cast %140 : vector<64x32xf32> to vector<4x16x32xf32>
    %c0_65 = arith.constant 0 : index
    %c0_66 = arith.constant 0 : index
    %c0_67 = arith.constant 0 : index
    %c0_68 = arith.constant 0 : index
    %142 = vector.load %arg11[%c0_65, %c0_66, %c0_67, %c0_68] : memref<1x4x16x32xf32, #tpu.memory_space<vmem>>, vector<1x4x16x32xf32>
    %143 = vector.shape_cast %142 : vector<1x4x16x32xf32> to vector<4x16x32xf32>
    %144 = vector.shape_cast %141 : vector<4x16x32xf32> to vector<1x4x16x32xf32>
    tpu.vector_store %arg11[%c0_65, %c0_66, %c0_67, %c0_68], %144 {strides = array<i32>} : memref<1x4x16x32xf32, #tpu.memory_space<vmem>>, vector<1x4x16x32xf32>,
    return
  }
  func.func @transform_0(%arg0: i32, %arg1: i32) -> (i32, i32, i32, i32) {
    %c0_i32 = arith.constant 0 : i32
    %c0_i32_0 = arith.constant 0 : i32
    %c0_i32_1 = arith.constant 0 : i32
    return %arg0, %arg1, %c0_i32, %c0_i32_0 : i32, i32, i32, i32
  }
  func.func @transform_1(%arg0: i32, %arg1: i32) -> (i32, i32, i32, i32) {
    %c0_i32 = arith.constant 0 : i32
    %c0_i32_0 = arith.constant 0 : i32
    %c0_i32_1 = arith.constant 0 : i32
    return %arg0, %arg1, %c0_i32, %c0_i32_0 : i32, i32, i32, i32
  }
  func.func @transform_2(%arg0: i32, %arg1: i32) -> (i32, i32, i32, i32) {
    %c0_i32 = arith.constant 0 : i32
    %c0_i32_0 = arith.constant 0 : i32
    %c0_i32_1 = arith.constant 0 : i32
    return %arg0, %arg1, %c0_i32, %c0_i32_0 : i32, i32, i32, i32
  }
  func.func @transform_3(%arg0: i32, %arg1: i32) -> (i32, i32, i32) {
    %c0_i32 = arith.constant 0 : i32
    %c0_i32_0 = arith.constant 0 : i32
    %c0_i32_1 = arith.constant 0 : i32
    %c0_i32_2 = arith.constant 0 : i32
    return %c0_i32, %c0_i32_0, %c0_i32_1 : i32, i32, i32
  }
  func.func @transform_4(%arg0: i32, %arg1: i32) -> (i32, i32, i32) {
    %c0_i32 = arith.constant 0 : i32
    %c0_i32_0 = arith.constant 0 : i32
    %c0_i32_1 = arith.constant 0 : i32
    %c0_i32_2 = arith.constant 0 : i32
    return %c0_i32, %c0_i32_0, %c0_i32_1 : i32, i32, i32
  }
  func.func @transform_5(%arg0: i32, %arg1: i32) -> (i32, i32) {
    %c0_i32 = arith.constant 0 : i32
    %c0_i32_0 = arith.constant 0 : i32
    %c0_i32_1 = arith.constant 0 : i32
    return %c0_i32, %c0_i32_0 : i32, i32
  }
  func.func @transform_6(%arg0: i32, %arg1: i32) -> (i32, i32) {
    %c0_i32 = arith.constant 0 : i32
    %c0_i32_0 = arith.constant 0 : i32
    %c0_i32_1 = arith.constant 0 : i32
    return %c0_i32, %c0_i32_0 : i32, i32
  }
  func.func @transform_7(%arg0: i32, %arg1: i32) -> (i32, i32, i32) {
    %c0_i32 = arith.constant 0 : i32
    %c0_i32_0 = arith.constant 0 : i32
    %c0_i32_1 = arith.constant 0 : i32
    %c0_i32_2 = arith.constant 0 : i32
    return %c0_i32, %c0_i32_0, %c0_i32_1 : i32, i32, i32
  }
  func.func @transform_8(%arg0: i32, %arg1: i32) -> (i32, i32, i32) {
    %c0_i32 = arith.constant 0 : i32
    %c0_i32_0 = arith.constant 0 : i32
    %c0_i32_1 = arith.constant 0 : i32
    return %arg1, %c0_i32, %c0_i32_0 : i32, i32, i32
  }
  func.func @transform_9(%arg0: i32, %arg1: i32) -> (i32, i32, i32, i32) {
    %c0_i32 = arith.constant 0 : i32
    %c0_i32_0 = arith.constant 0 : i32
    %c0_i32_1 = arith.constant 0 : i32
    return %arg0, %arg1, %c0_i32, %c0_i32_0 : i32, i32, i32, i32
  }
}

</mosaic_0001>

<llo_original>
// kernel: tpu_custom_call.1
$region0: #{tpu_custom_call.1}
  #allocation0 [shape = 'u32[]', space=smem, size = 0x4, offset = 0x4, fixed_abs, tag = 'smem constant byte address 0x4 - core index']
  #allocation1 [shape = 'u32[144,128]{1,0:T(1,128)}', space=vmem, size = 0x12000, scoped, tag = 'internal scratch']
  %s0 = inlined_call_operand.hbm [shape: f32[2,4,16,32], index: 0, kind: input, shape index: {}]
  %s1 = inlined_call_operand.hbm [shape: f32[2,4,16,32], index: 1, kind: input, shape index: {}]
  %s2 = inlined_call_operand.hbm [shape: f32[2,4,16,32], index: 2, kind: input, shape index: {}]
  %s3 = inlined_call_operand.hbm [shape: f32[3,32,32], index: 3, kind: input, shape index: {}]
  %s4 = inlined_call_operand.vmem [shape: f32[3,1,32], index: 4, kind: input, shape index: {}]
  %s5 = inlined_call_operand.hbm [shape: f32[32,32], index: 5, kind: input, shape index: {}]
  %s6 = inlined_call_operand.vmem [shape: f32[1,32], index: 6, kind: input, shape index: {}]
  %s7 = inlined_call_operand.hbm [shape: f32[4,16,16], index: 7, kind: input, shape index: {}]
  %s8 = inlined_call_operand.hbm [shape: f32[4,16,16], index: 8, kind: input, shape index: {}]
  %s9 = inlined_call_operand.hbm [shape: f32[2,4,16,32], index: 9, kind: output, shape index: {}]
  %s10 = sld [smem:[#allocation0]]
  $region97: #{tpu_custom_call.1} parent=0
    _
  %s12 = ssub.s32 1, %s10
  %s13 = scalar_select 0, %s12, %s10
  $region1: #{tpu_custom_call.1} parent=0
    #allocation2 [shape = 'u8[65536]{0}', space=vmem, size = 0x10000, scoped, tag = 'input window, operand 0']
    #allocation3 [shape = 's32[2]{0}', space=sflag, size = 0x8, scoped, tag = 'scoped memory for tpu_custom_call.1']
    #allocation4 [shape = 's32[2]{0}', space=sflag, size = 0x8, scoped, tag = 'scoped memory for tpu_custom_call.1']
    #allocation5 [shape = 'u8[65536]{0}', space=vmem, size = 0x10000, scoped, tag = 'input window, operand 1']
    #allocation6 [shape = 's32[2]{0}', space=sflag, size = 0x8, scoped, tag = 'scoped memory for tpu_custom_call.1']
    #allocation7 [shape = 'u8[65536]{0}', space=vmem, size = 0x10000, scoped, tag = 'input window, operand 2']
    #allocation8 [shape = 'u8[49152]{0}', space=vmem, size = 0xc000, scoped, tag = 'input window, operand 3, single buffered']
    #allocation9 [shape = 's32[1]{0}', space=sflag, size = 0x4, scoped, tag = 'scoped memory for tpu_custom_call.1']
    #allocation10 [shape = 'u8[16384]{0}', space=vmem, size = 0x4000, scoped, tag = 'input window, operand 5, single buffered']
    #allocation11 [shape = 'u8[32768]{0}', space=vmem, size = 0x8000, scoped, tag = 'input window, operand 7, single buffered']
    #allocation12 [shape = 's32[1]{0}', space=sflag, size = 0x4, scoped, tag = 'scoped memory for tpu_custom_call.1']
    #allocation13 [shape = 'u8[32768]{0}', space=vmem, size = 0x8000, scoped, tag = 'input window, operand 8, single buffered']
    #allocation14 [shape = 'u8[65536]{0}', space=vmem, size = 0x10000, scoped, tag = 'output window, operand 0']
    %14 = vsyncpa [#allocation3], 0
    %s15 = scalar_lea.sflag [#allocation3], 1
    %16 = vsyncpa %s15, 0
    %17 = vsyncpa [#allocation6], 0
    %s18 = scalar_lea.sflag [#allocation6], 1
    %19 = vsyncpa %s18, 0
    %20 = vsyncpa [#allocation9], 0
    %21 = vsyncpa [#allocation12], 0
    %22 = vsyncpa [#allocation4], 0
    %s23 = scalar_lea.sflag [#allocation4], 1
    %24 = vsyncpa %s23, 0
    loop: start=0, step=1, limit=4
    $region2: #{tpu_custom_call.1} parent=1 // loop_pre_header
      _
    $region3: #{tpu_custom_call.1} parent=1 // loop_header
      %s26 = sphi 0, %s30
      %p27 = scmp.ge.s32.totalorder %s26, 4
      %s33 = sphi 0, %s45
      %s34 = sphi 0, %s41
      %s35 = sphi 0, %s33
      %s36 = sphi 0, %s34
      %s37 = sphi 0, %s35
      %s38 = sphi 0, %s36
      %s50 = sphi 0, %s52
      %s53 = sphi 0, %s50
      %s54 = sphi 0, %s53
      %s70 = sphi 0, %s54
      %s78 = sphi 0, %s80
      %s81 = sphi 0, %s78
      %s82 = sphi 0, %s81
      %s98 = sphi 0, %s82
      %s106 = sphi 0, %s108
      %s109 = sphi 0, %s106
      %s110 = sphi 0, %s109
      %s126 = sphi 0, %s110
      %s130 = sphi 0, %s130
      %s132 = sphi 0, %s130
      %s133 = sphi 0, %s132
      %s147 = sphi 0, %s133
      %s151 = sphi 0, %s151
      %s153 = sphi 0, %s151
      %s154 = sphi 0, %s153
      %s168 = sphi 0, %s154
      %s172 = sphi 0, %s172
      %s174 = sphi 0, %s172
      %s175 = sphi 0, %s174
      %s189 = sphi 0, %s175
      %s193 = sphi 0, %s193
      %s195 = sphi 0, %s193
      %s196 = sphi 0, %s195
      %s210 = sphi 0, %s196
      %s214 = sphi 0, %s214
      %s216 = sphi 0, %s214
      %s217 = sphi 0, %s216
      %s231 = sphi 0, %s217
      %s237 = sphi 0, %s239
      %s240 = sphi 0, %s237
      %s241 = sphi 0, %s240
      %s257 = sphi 0, %s241
      %s265 = sphi 0, %s267
      %s268 = sphi 0, %s265
      %s269 = sphi 0, %s268
      %s285 = sphi 0, %s269
    $region4: #{tpu_custom_call.1} parent=1 // loop_header_branch
      %29 = sbr.rel (%p27) target = $region8
    $region5: #{tpu_custom_call.1} parent=1 // loop_body
      %s31 = ssub.s32 %s26, 1
      %s32 = ssub.s32 %s26, 2
      %s39 = sadd.s32 1, %s34
      %p40 = scmp.ge.s32.totalorder %s39, 1
      %s41 = scalar_select %p40, 0, %s39
      %s42 = sadd.s32 1, %s33
      %s43 = scalar_select %p40, %s42, %s33
      %p44 = scmp.ge.s32.totalorder %s43, 2
      %s45 = scalar_select %p44, 0, %s43
      %s46 = ssub.s32 %s33, %s45
      %s47 = ssub.s32 %s34, %s41
      %s48 = sor.u32 %s46, %s47
      %p49 = scmp.eq.s32.totalorder %s48, 0
      %s51 = sadd.s32 %s50, 1
      %s52 = scalar_select %p49, %s50, %s51
      %p55 = pneg %p49
      %p56 = scmp.eq.s32.totalorder %s26, 1
      %p57 = por %p55, %p56
      %p58 = scmp.ne.s32.totalorder %s50, %s53
      %p59 = scmp.eq.s32.totalorder %s26, 0
      %p60 = por %p58, %p59
      %p61 = scmp.ne.s32.totalorder %s50, %s53
      %p62 = scmp.eq.s32.totalorder %s31, 1
      %p63 = por %p61, %p62
      %p64 = scmp.ne.s32.totalorder %s53, %s54
      %p65 = scmp.eq.s32.totalorder %s31, 0
      %p66 = por %p64, %p65
      %p67 = scmp.ne.s32.totalorder %s53, %s54
      %p68 = scmp.eq.s32.totalorder %s32, 1
      %p69 = por %p67, %p68
      %p71 = scmp.ne.s32.totalorder %s54, %s70
      %p72 = scmp.eq.s32.totalorder %s32, 0
      %p73 = por %p71, %p72
      %s74 = ssub.s32 %s33, %s45
      %s75 = ssub.s32 %s34, %s41
      %s76 = sor.u32 %s74, %s75
      %p77 = scmp.eq.s32.totalorder %s76, 0
      %s79 = sadd.s32 %s78, 1
      %s80 = scalar_select %p77, %s78, %s79
      %p83 = pneg %p77
      %p84 = scmp.eq.s32.totalorder %s26, 1
      %p85 = por %p83, %p84
      %p86 = scmp.ne.s32.totalorder %s78, %s81
      %p87 = scmp.eq.s32.totalorder %s26, 0
      %p88 = por %p86, %p87
      %p89 = scmp.ne.s32.totalorder %s78, %s81
      %p90 = scmp.eq.s32.totalorder %s31, 1
      %p91 = por %p89, %p90
      %p92 = scmp.ne.s32.totalorder %s81, %s82
      %p93 = scmp.eq.s32.totalorder %s31, 0
      %p94 = por %p92, %p93
      %p95 = scmp.ne.s32.totalorder %s81, %s82
      %p96 = scmp.eq.s32.totalorder %s32, 1
      %p97 = por %p95, %p96
      %p99 = scmp.ne.s32.totalorder %s82, %s98
      %p100 = scmp.eq.s32.totalorder %s32, 0
      %p101 = por %p99, %p100
      %s102 = ssub.s32 %s33, %s45
      %s103 = ssub.s32 %s34, %s41
      %s104 = sor.u32 %s102, %s103
      %p105 = scmp.eq.s32.totalorder %s104, 0
      %s107 = sadd.s32 %s106, 1
      %s108 = scalar_select %p105, %s106, %s107
      %p111 = pneg %p105
      %p112 = scmp.eq.s32.totalorder %s26, 1
      %p113 = por %p111, %p112
      %p114 = scmp.ne.s32.totalorder %s106, %s109
      %p115 = scmp.eq.s32.totalorder %s26, 0
      %p116 = por %p114, %p115
      %p117 = scmp.ne.s32.totalorder %s106, %s109
      %p118 = scmp.eq.s32.totalorder %s31, 1
      %p119 = por %p117, %p118
      %p120 = scmp.ne.s32.totalorder %s109, %s110
      %p121 = scmp.eq.s32.totalorder %s31, 0
      %p122 = por %p120, %p121
      %p123 = scmp.ne.s32.totalorder %s109, %s110
      %p124 = scmp.eq.s32.totalorder %s32, 1
      %p125 = por %p123, %p124
      %p127 = scmp.ne.s32.totalorder %s110, %s126
      %p128 = scmp.eq.s32.totalorder %s32, 0
      %p129 = por %p127, %p128
      %s131 = sadd.s32 %s130, 1
      %p134 = scmp.eq.s32.totalorder %s26, 1
      %p135 = scmp.ne.s32.totalorder %s130, %s132
      %p136 = scmp.eq.s32.totalorder %s26, 0
      %p137 = por %p135, %p136
      %p138 = scmp.ne.s32.totalorder %s130, %s132
      %p139 = scmp.eq.s32.totalorder %s31, 1
      %p140 = por %p138, %p139
      %p141 = scmp.ne.s32.totalorder %s132, %s133
      %p142 = scmp.eq.s32.totalorder %s31, 0
      %p143 = por %p141, %p142
      %p144 = scmp.ne.s32.totalorder %s132, %s133
      %p145 = scmp.eq.s32.totalorder %s32, 1
      %p146 = por %p144, %p145
      %p148 = scmp.ne.s32.totalorder %s133, %s147
      %p149 = scmp.eq.s32.totalorder %s32, 0
      %p150 = por %p148, %p149
      %s152 = sadd.s32 %s151, 1
      %p155 = scmp.eq.s32.totalorder %s26, 1
      %p156 = scmp.ne.s32.totalorder %s151, %s153
      %p157 = scmp.eq.s32.totalorder %s26, 0
      %p158 = por %p156, %p157
      %p159 = scmp.ne.s32.totalorder %s151, %s153
      %p160 = scmp.eq.s32.totalorder %s31, 1
      %p161 = por %p159, %p160
      %p162 = scmp.ne.s32.totalorder %s153, %s154
      %p163 = scmp.eq.s32.totalorder %s31, 0
      %p164 = por %p162, %p163
      %p165 = scmp.ne.s32.totalorder %s153, %s154
      %p166 = scmp.eq.s32.totalorder %s32, 1
      %p167 = por %p165, %p166
      %p169 = scmp.ne.s32.totalorder %s154, %s168
      %p170 = scmp.eq.s32.totalorder %s32, 0
      %p171 = por %p169, %p170
      %s173 = sadd.s32 %s172, 1
      %p176 = scmp.eq.s32.totalorder %s26, 1
      %p177 = scmp.ne.s32.totalorder %s172, %s174
      %p178 = scmp.eq.s32.totalorder %s26, 0
      %p179 = por %p177, %p178
      %p180 = scmp.ne.s32.totalorder %s172, %s174
      %p181 = scmp.eq.s32.totalorder %s31, 1
      %p182 = por %p180, %p181
      %p183 = scmp.ne.s32.totalorder %s174, %s175
      %p184 = scmp.eq.s32.totalorder %s31, 0
      %p185 = por %p183, %p184
      %p186 = scmp.ne.s32.totalorder %s174, %s175
      %p187 = scmp.eq.s32.totalorder %s32, 1
      %p188 = por %p186, %p187
      %p190 = scmp.ne.s32.totalorder %s175, %s189
      %p191 = scmp.eq.s32.totalorder %s32, 0
      %p192 = por %p190, %p191
      %s194 = sadd.s32 %s193, 1
      %p197 = scmp.eq.s32.totalorder %s26, 1
      %p198 = scmp.ne.s32.totalorder %s193, %s195
      %p199 = scmp.eq.s32.totalorder %s26, 0
      %p200 = por %p198, %p199
      %p201 = scmp.ne.s32.totalorder %s193, %s195
      %p202 = scmp.eq.s32.totalorder %s31, 1
      %p203 = por %p201, %p202
      %p204 = scmp.ne.s32.totalorder %s195, %s196
      %p205 = scmp.eq.s32.totalorder %s31, 0
      %p206 = por %p204, %p205
      %p207 = scmp.ne.s32.totalorder %s195, %s196
      %p208 = scmp.eq.s32.totalorder %s32, 1
      %p209 = por %p207, %p208
      %p211 = scmp.ne.s32.totalorder %s196, %s210
      %p212 = scmp.eq.s32.totalorder %s32, 0
      %p213 = por %p211, %p212
      %s215 = sadd.s32 %s214, 1
      %p218 = scmp.eq.s32.totalorder %s26, 1
      %p219 = scmp.ne.s32.totalorder %s214, %s216
      %p220 = scmp.eq.s32.totalorder %s26, 0
      %p221 = por %p219, %p220
      %p222 = scmp.ne.s32.totalorder %s214, %s216
      %p223 = scmp.eq.s32.totalorder %s31, 1
      %p224 = por %p222, %p223
      %p225 = scmp.ne.s32.totalorder %s216, %s217
      %p226 = scmp.eq.s32.totalorder %s31, 0
      %p227 = por %p225, %p226
      %p228 = scmp.ne.s32.totalorder %s216, %s217
      %p229 = scmp.eq.s32.totalorder %s32, 1
      %p230 = por %p228, %p229
      %p232 = scmp.ne.s32.totalorder %s217, %s231
      %p233 = scmp.eq.s32.totalorder %s32, 0
      %p234 = por %p232, %p233
      %s235 = ssub.s32 %s34, %s41
      %p236 = scmp.eq.s32.totalorder %s235, 0
      %s238 = sadd.s32 %s237, 1
      %s239 = scalar_select %p236, %s237, %s238
      %p242 = pneg %p236
      %p243 = scmp.eq.s32.totalorder %s26, 1
      %p244 = por %p242, %p243
      %p245 = scmp.ne.s32.totalorder %s237, %s240
      %p246 = scmp.eq.s32.totalorder %s26, 0
      %p247 = por %p245, %p246
      %p248 = scmp.ne.s32.totalorder %s237, %s240
      %p249 = scmp.eq.s32.totalorder %s31, 1
      %p250 = por %p248, %p249
      %p251 = scmp.ne.s32.totalorder %s240, %s241
      %p252 = scmp.eq.s32.totalorder %s31, 0
      %p253 = por %p251, %p252
      %p254 = scmp.ne.s32.totalorder %s240, %s241
      %p255 = scmp.eq.s32.totalorder %s32, 1
      %p256 = por %p254, %p255
      %p258 = scmp.ne.s32.totalorder %s241, %s257
      %p259 = scmp.eq.s32.totalorder %s32, 0
      %p260 = por %p258, %p259
      %s261 = ssub.s32 %s33, %s45
      %s262 = ssub.s32 %s34, %s41
      %s263 = sor.u32 %s261, %s262
      %p264 = scmp.eq.s32.totalorder %s263, 0
      %s266 = sadd.s32 %s265, 1
      %s267 = scalar_select %p264, %s265, %s266
      %p270 = pneg %p264
      %p271 = scmp.eq.s32.totalorder %s26, 1
      %p272 = por %p270, %p271
      %p273 = scmp.ne.s32.totalorder %s265, %s268
      %p274 = scmp.eq.s32.totalorder %s26, 0
      %p275 = por %p273, %p274
      %p276 = scmp.ne.s32.totalorder %s265, %s268
      %p277 = scmp.eq.s32.totalorder %s31, 1
      %p278 = por %p276, %p277
      %p279 = scmp.ne.s32.totalorder %s268, %s269
      %p280 = scmp.eq.s32.totalorder %s31, 0
      %p281 = por %p279, %p280
      %p282 = scmp.ne.s32.totalorder %s268, %s269
      %p283 = scmp.eq.s32.totalorder %s32, 1
      %p284 = por %p282, %p283
      %p286 = scmp.ne.s32.totalorder %s269, %s285
      %p287 = scmp.eq.s32.totalorder %s32, 0
      %p288 = por %p286, %p287
      %p289 = scmp.le.s32.totalorder 1, %s26
      %p290 = scmp.lt.s32.totalorder %s26, 3
      %p291 = pnand %p289, %p290
      %p292 = pneg %p291
      // Predicated region
      $region9: #{tpu_custom_call.1} parent=5 // pred_check
        _
      $region10: #{tpu_custom_call.1} parent=5 // pred_check_branch
        %294 = sbr.rel (%p291) target = $region12
      $region11: #{tpu_custom_call.1} parent=5 // pred_region
        %s295 = ssub.s32 %s26, 1
        // Predicated region
        $region13: #{tpu_custom_call.1} parent=11 // pred_check
          %p296 = pneg %p143
        $region14: #{tpu_custom_call.1} parent=11 // pred_check_branch
          %298 = sbr.rel (%p296) target = $region16
        $region15: #{tpu_custom_call.1} parent=11 // pred_region
          %s300 = ssub.s32 1536, 1536
          %301 = vsyncadd [#allocation9], %s300
          %s302 = sshll.u32 [#allocation8], 4
          %s303 = int_to_ptr.vmem [resolvable:$true] %s302
          %308 = dma.hbm_to_vmem [thread:$0]  %s3, 1536, %s303, [#allocation9], 128, 128, 8
        $region16: #{tpu_custom_call.1} parent=11 // pred_fallthru
          _
        // Predicated region
        $region17: #{tpu_custom_call.1} parent=11 // pred_check
          %p309 = pneg %p164
        $region18: #{tpu_custom_call.1} parent=11 // pred_check_branch
          %311 = sbr.rel (%p309) target = $region20
        $region19: #{tpu_custom_call.1} parent=11 // pred_region
          _
        $region20: #{tpu_custom_call.1} parent=11 // pred_fallthru
          _
        // Predicated region
        $region21: #{tpu_custom_call.1} parent=11 // pred_check
          %p312 = pneg %p185
        $region22: #{tpu_custom_call.1} parent=11 // pred_check_branch
          %314 = sbr.rel (%p312) target = $region24
        $region23: #{tpu_custom_call.1} parent=11 // pred_region
          %s316 = ssub.s32 512, 512
          %317 = vsyncadd [#allocation9], %s316
          %s318 = sshll.u32 [#allocation10], 4
          %s319 = int_to_ptr.vmem [resolvable:$true] %s318
          %324 = dma.hbm_to_vmem [thread:$0]  %s5, 512, %s319, [#allocation9], 128, 128, 8
        $region24: #{tpu_custom_call.1} parent=11 // pred_fallthru
          _
        // Predicated region
        $region25: #{tpu_custom_call.1} parent=11 // pred_check
          %p325 = pneg %p206
        $region26: #{tpu_custom_call.1} parent=11 // pred_check_branch
          %327 = sbr.rel (%p325) target = $region28
        $region27: #{tpu_custom_call.1} parent=11 // pred_region
          _
        $region28: #{tpu_custom_call.1} parent=11 // pred_fallthru
          _
        // Predicated region
        $region29: #{tpu_custom_call.1} parent=11 // pred_check
          %p328 = pneg %p227
        $region30: #{tpu_custom_call.1} parent=11 // pred_check_branch
          %330 = sbr.rel (%p328) target = $region32
        $region31: #{tpu_custom_call.1} parent=11 // pred_region
          %s332 = ssub.s32 1024, 1024
          %333 = vsyncadd [#allocation12], %s332
          %s334 = sshll.u32 [#allocation11], 4
          %s335 = int_to_ptr.vmem [resolvable:$true] %s334
          %340 = dma.hbm_to_vmem [thread:$0]  %s7, 1024, %s335, [#allocation12], 128, 128, 8
        $region32: #{tpu_custom_call.1} parent=11 // pred_fallthru
          _
        // Predicated region
        $region33: #{tpu_custom_call.1} parent=11 // pred_check
          %p341 = pneg %p253
        $region34: #{tpu_custom_call.1} parent=11 // pred_check_branch
          %343 = sbr.rel (%p341) target = $region36
        $region35: #{tpu_custom_call.1} parent=11 // pred_region
          %s344 = smul.u32 4, %s36
          %s346 = ssub.s32 1024, 1024
          %347 = vsyncadd [#allocation12], %s346
          %s348 = smul.addr %s344, 2
          %s349 = smul.addr %s348, 128
          %s350 = scalar_lea.hbm %s8, %s349
          %s351 = sshll.u32 [#allocation13], 4
          %s352 = int_to_ptr.vmem [resolvable:$true] %s351
          %357 = dma.hbm_to_vmem [thread:$0]  %s350, 1024, %s352, [#allocation12], 128, 128, 8
        $region36: #{tpu_custom_call.1} parent=11 // pred_fallthru
          _
      $region12: #{tpu_custom_call.1} parent=5 // pred_fallthru
        _
      %p358 = scmp.lt.s32.totalorder %s26, 2
      // Predicated region
      $region37: #{tpu_custom_call.1} parent=5 // pred_check
        %p359 = pneg %p358
      $region38: #{tpu_custom_call.1} parent=5 // pred_check_branch
        %361 = sbr.rel (%p359) target = $region40
      $region39: #{tpu_custom_call.1} parent=5 // pred_region
        // Predicated region
        $region41: #{tpu_custom_call.1} parent=39 // pred_check
          %p362 = pneg %p60
        $region42: #{tpu_custom_call.1} parent=39 // pred_check_branch
          %364 = sbr.rel (%p362) target = $region44
        $region43: #{tpu_custom_call.1} parent=39 // pred_region
          %s365 = sand.u32 %s50, 1
          %s366 = scalar_lea.sflag [#allocation3], %s365
          %s367 = sand.u32 %s50, 1
          %s368 = smul.addr %s367, 64
          %s369 = scalar_lea.vmem [#allocation2], %s368
          %s370 = smul.u32 4, %s34
          %s372 = ssub.s32 1024, 1024
          %373 = vsyncadd %s366, %s372
          %s374 = smul.addr %s370, 2
          %s375 = smul.addr %s33, 8
          %s376 = sadd.s32 %s374, %s375
          %s377 = smul.addr %s376, 128
          %s378 = scalar_lea.hbm %s0, %s377
          %s379 = sshll.u32 %s369, 4
          %s380 = int_to_ptr.vmem [resolvable:$true] %s379
          %385 = dma.hbm_to_vmem [thread:$0]  %s378, 1024, %s380, %s366, 128, 128, 8
        $region44: #{tpu_custom_call.1} parent=39 // pred_fallthru
          _
        // Predicated region
        $region45: #{tpu_custom_call.1} parent=39 // pred_check
          %p386 = pneg %p88
        $region46: #{tpu_custom_call.1} parent=39 // pred_check_branch
          %388 = sbr.rel (%p386) target = $region48
        $region47: #{tpu_custom_call.1} parent=39 // pred_region
          %s389 = sand.u32 %s26, 1
          %s390 = scalar_lea.sflag [#allocation6], %s389
          %s391 = sand.u32 %s78, 1
          %s392 = smul.addr %s391, 64
          %s393 = scalar_lea.vmem [#allocation5], %s392
          %s394 = smul.u32 4, %s34
          %s396 = ssub.s32 1024, 1024
          %397 = vsyncadd %s390, %s396
          %s398 = smul.addr %s394, 2
          %s399 = smul.addr %s33, 8
          %s400 = sadd.s32 %s398, %s399
          %s401 = smul.addr %s400, 128
          %s402 = scalar_lea.hbm %s1, %s401
          %s403 = sshll.u32 %s393, 4
          %s404 = int_to_ptr.vmem [resolvable:$true] %s403
          %409 = dma.hbm_to_vmem [thread:$0]  %s402, 1024, %s404, %s390, 128, 128, 8
        $region48: #{tpu_custom_call.1} parent=39 // pred_fallthru
          _
        // Predicated region
        $region49: #{tpu_custom_call.1} parent=39 // pred_check
          %p410 = pneg %p116
        $region50: #{tpu_custom_call.1} parent=39 // pred_check_branch
          %412 = sbr.rel (%p410) target = $region52
        $region51: #{tpu_custom_call.1} parent=39 // pred_region
          %s413 = sand.u32 %s26, 1
          %s414 = scalar_lea.sflag [#allocation6], %s413
          %s415 = sand.u32 %s106, 1
          %s416 = smul.addr %s415, 64
          %s417 = scalar_lea.vmem [#allocation7], %s416
          %s418 = smul.u32 4, %s34
          %s420 = ssub.s32 1024, 1024
          %421 = vsyncadd %s414, %s420
          %s422 = smul.addr %s418, 2
          %s423 = smul.addr %s33, 8
          %s424 = sadd.s32 %s422, %s423
          %s425 = smul.addr %s424, 128
          %s426 = scalar_lea.hbm %s2, %s425
          %s427 = sshll.u32 %s417, 4
          %s428 = int_to_ptr.vmem [resolvable:$true] %s427
          %433 = dma.hbm_to_vmem [thread:$0]  %s426, 1024, %s428, %s414, 128, 128, 8
        $region52: #{tpu_custom_call.1} parent=39 // pred_fallthru
          _
      $region40: #{tpu_custom_call.1} parent=5 // pred_fallthru
        _
      %p434 = scmp.le.s32.totalorder 1, %s26
      %p435 = scmp.lt.s32.totalorder %s26, 3
      %p436 = pnand %p434, %p435
      %p437 = pneg %p436
      // Predicated region
      $region53: #{tpu_custom_call.1} parent=5 // pred_check
        _
      $region54: #{tpu_custom_call.1} parent=5 // pred_check_branch
        %439 = sbr.rel (%p436) target = $region56
      $region55: #{tpu_custom_call.1} parent=5 // pred_region
        %s440 = ssub.s32 %s26, 1
        %s441 = sand.u32 %s53, 1
        %s442 = scalar_lea.sflag [#allocation3], %s441
        %s443 = sand.u32 %s53, 1
        %s444 = smul.addr %s443, 64
        %s445 = scalar_lea.vmem [#allocation2], %s444
        // Predicated region
        $region57: #{tpu_custom_call.1} parent=55 // pred_check
          %p446 = pneg %p66
        $region58: #{tpu_custom_call.1} parent=55 // pred_check_branch
          %448 = sbr.rel (%p446) target = $region60
        $region59: #{tpu_custom_call.1} parent=55 // pred_region
          %449 = dma.done %s442, 1024
        $region60: #{tpu_custom_call.1} parent=55 // pred_fallthru
          _
        %s450 = sand.u32 %s31, 1
        %s451 = scalar_lea.sflag [#allocation6], %s450
        %s452 = sand.u32 %s81, 1
        %s453 = smul.addr %s452, 64
        %s454 = scalar_lea.vmem [#allocation5], %s453
        // Predicated region
        $region61: #{tpu_custom_call.1} parent=55 // pred_check
          %p455 = pneg %p94
        $region62: #{tpu_custom_call.1} parent=55 // pred_check_branch
          %457 = sbr.rel (%p455) target = $region64
        $region63: #{tpu_custom_call.1} parent=55 // pred_region
          %458 = dma.done %s451, 1024
        $region64: #{tpu_custom_call.1} parent=55 // pred_fallthru
          _
        %s459 = sand.u32 %s31, 1
        %s460 = scalar_lea.sflag [#allocation6], %s459
        %s461 = sand.u32 %s109, 1
        %s462 = smul.addr %s461, 64
        %s463 = scalar_lea.vmem [#allocation7], %s462
        // Predicated region
        $region65: #{tpu_custom_call.1} parent=55 // pred_check
          %p464 = pneg %p122
        $region66: #{tpu_custom_call.1} parent=55 // pred_check_branch
          %466 = sbr.rel (%p464) target = $region68
        $region67: #{tpu_custom_call.1} parent=55 // pred_region
          %467 = dma.done %s460, 1024
        $region68: #{tpu_custom_call.1} parent=55 // pred_fallthru
          _
        // Predicated region
        $region69: #{tpu_custom_call.1} parent=55 // pred_check
          %p468 = pneg %p143
        $region70: #{tpu_custom_call.1} parent=55 // pred_check_branch
          %470 = sbr.rel (%p468) target = $region72
        $region71: #{tpu_custom_call.1} parent=55 // pred_region
          %471 = dma.done [#allocation9], 1536
        $region72: #{tpu_custom_call.1} parent=55 // pred_fallthru
          _
        // Predicated region
        $region73: #{tpu_custom_call.1} parent=55 // pred_check
          %p472 = pneg %p185
        $region74: #{tpu_custom_call.1} parent=55 // pred_check_branch
          %474 = sbr.rel (%p472) target = $region76
        $region75: #{tpu_custom_call.1} parent=55 // pred_region
          %475 = dma.done [#allocation9], 512
        $region76: #{tpu_custom_call.1} parent=55 // pred_fallthru
          _
        // Predicated region
        $region77: #{tpu_custom_call.1} parent=55 // pred_check
          %p476 = pneg %p227
        $region78: #{tpu_custom_call.1} parent=55 // pred_check_branch
          %478 = sbr.rel (%p476) target = $region80
        $region79: #{tpu_custom_call.1} parent=55 // pred_region
          %479 = dma.done [#allocation12], 1024
        $region80: #{tpu_custom_call.1} parent=55 // pred_fallthru
          _
        // Predicated region
        $region81: #{tpu_custom_call.1} parent=55 // pred_check
          %p480 = pneg %p253
        $region82: #{tpu_custom_call.1} parent=55 // pred_check_branch
          %482 = sbr.rel (%p480) target = $region84
        $region83: #{tpu_custom_call.1} parent=55 // pred_region
          %483 = dma.done [#allocation12], 1024
        $region84: #{tpu_custom_call.1} parent=55 // pred_fallthru
          _
        %s484 = sand.u32 %s53, 1
        %s485 = scalar_lea.sflag [#allocation3], %s484
        %s486 = sand.u32 %s53, 1
        %s487 = smul.addr %s486, 64
        %s488 = scalar_lea.vmem [#allocation2], %s487
        %p489 = pneg %p66
        %p490 = pneg %p63
        %s491 = sand.u32 %s31, 1
        %s492 = scalar_lea.sflag [#allocation6], %s491
        %s493 = sand.u32 %s81, 1
        %s494 = smul.addr %s493, 64
        %s495 = scalar_lea.vmem [#allocation5], %s494
        %p496 = pneg %p94
        %p497 = pneg %p91
        %s498 = sand.u32 %s31, 1
        %s499 = scalar_lea.sflag [#allocation6], %s498
        %s500 = sand.u32 %s109, 1
        %s501 = smul.addr %s500, 64
        %s502 = scalar_lea.vmem [#allocation7], %s501
        %p503 = pneg %p122
        %p504 = pneg %p119
        %p505 = pneg %p143
        %p506 = pneg %p140
        %p507 = pneg %p164
        %p508 = pneg %p161
        %p509 = pneg %p185
        %p510 = pneg %p182
        %p511 = pneg %p206
        %p512 = pneg %p203
        %p513 = pneg %p227
        %p514 = pneg %p224
        %p515 = pneg %p253
        %p516 = pneg %p250
        %p517 = pneg %p281
        %p518 = pneg %p278
        %s519 = sand.u32 %s268, 1
        %s520 = scalar_lea.sflag [#allocation4], %s519
        %s521 = sand.u32 %s268, 1
        %s522 = smul.addr %s521, 64
        %s523 = scalar_lea.vmem [#allocation14], %s522
        %s524 = smul.u32 4, %s36
        %s525 = smul.u32 4, %s36
        %s526 = smul.u32 4, %s36
        %s527 = smul.u32 4, %s36
        %s528 = smul.u32 4, %s36
        %v529 = vld [vmem:[%s445] sm:$0xff]
        %v530 = vld [vmem:[%s445 + $0x8] sm:$0xff]
        %v531 = vld [vmem:[%s445 + $0x10] sm:$0xff]
        %v532 = vld [vmem:[%s445 + $0x18] sm:$0xff]
        %v533 = vld [vmem:[%s445 + $0x20] sm:$0xff]
        %v534 = vld [vmem:[%s445 + $0x28] sm:$0xff]
        %v535 = vld [vmem:[%s445 + $0x30] sm:$0xff]
        %v536 = vld [vmem:[%s445 + $0x38] sm:$0xff]
        %v537 = vld [vmem:[%s454] sm:$0xff]
        %v538 = vld [vmem:[%s454 + $0x8] sm:$0xff]
        %v539 = vld [vmem:[%s454 + $0x10] sm:$0xff]
        %v540 = vld [vmem:[%s454 + $0x18] sm:$0xff]
        %v541 = vld [vmem:[%s454 + $0x20] sm:$0xff]
        %v542 = vld [vmem:[%s454 + $0x28] sm:$0xff]
        %v543 = vld [vmem:[%s454 + $0x30] sm:$0xff]
        %v544 = vld [vmem:[%s454 + $0x38] sm:$0xff]
        %v545 = vld [vmem:[%s463] sm:$0xff]
        %v546 = vld [vmem:[%s463 + $0x8] sm:$0xff]
        %v547 = vld [vmem:[%s463 + $0x10] sm:$0xff]
        %v548 = vld [vmem:[%s463 + $0x18] sm:$0xff]
        %v549 = vld [vmem:[%s463 + $0x20] sm:$0xff]
        %v550 = vld [vmem:[%s463 + $0x28] sm:$0xff]
        %v551 = vld [vmem:[%s463 + $0x30] sm:$0xff]
        %v552 = vld [vmem:[%s463 + $0x38] sm:$0xff]
        %v553 = vld [vmem:[#allocation8] sm:$0xff]
        %v554 = vld [vmem:[#allocation8 + $0x8] sm:$0xff]
        %v555 = vld [vmem:[#allocation8 + $0x10] sm:$0xff]
        %v556 = vld [vmem:[#allocation8 + $0x18] sm:$0xff]
        %v557 = vld [vmem:[%s4] sm:$0x1]
        %v559 = vlaneseq
        %v560 = vshrl.u32 %v559, 7
        %v561 = vsub.s32 0, %v560
        %v562 = vrot.slane %v557, %v561
        %vm564 = vcmask 261120
        %v566 = vsel %vm564, %v529, 0
        %v569 = vsel %vm564, %v530, 0
        %v572 = vsel %vm564, %v531, 0
        %v575 = vsel %vm564, %v532, 0
        %v578 = vsel %vm564, %v533, 0
        %v581 = vsel %vm564, %v534, 0
        %v584 = vsel %vm564, %v535, 0
        %v587 = vsel %vm564, %v536, 0
        %589 = vmatprep.subr.mxu0 0.0
        %590 = vmatpush1.msra.mxu0 %v553
        %591 = vmatprep.subr.mxu0 0.0
        %592 = vmatpush1.msra.mxu0 %v554
        %593 = vmatprep.subr.mxu0 0.0
        %594 = vmatpush1.msra.mxu0 %v555
        %595 = vmatprep.subr.mxu0 0.0
        %596 = vmatpush1.msra.mxu0 %v556
        %597 = vmatprep.subr.mxu0 0.0
        %598 = vmatpush1.msra.mxu0 0.0
        %599 = vmatprep.subr.mxu0 0.0
        %600 = vmatpush1.msra.mxu0 0.0
        %601 = vmatprep.subr.mxu0 0.0
        %602 = vmatpush1.msra.mxu0 0.0
        %603 = vmatprep.subr.mxu0 0.0
        %604 = vmatpush1.msra.mxu0 0.0
        %605 = vmatprep.subr.mxu0 0.0
        %606 = vmatpush1.msra.mxu0 0.0
        %607 = vmatprep.subr.mxu0 0.0
        %608 = vmatpush1.msra.mxu0 0.0
        %609 = vmatprep.subr.mxu0 0.0
        %610 = vmatpush1.msra.mxu0 0.0
        %611 = vmatprep.subr.mxu0 0.0
        %612 = vmatpush1.msra.mxu0 0.0
        %613 = vmatprep.subr.mxu0 0.0
        %614 = vmatpush1.msra.mxu0 0.0
        %615 = vmatprep.subr.mxu0 0.0
        %616 = vmatpush1.msra.mxu0 0.0
        %617 = vmatprep.subr.mxu0 0.0
        %618 = vmatpush1.msra.mxu0 0.0
        %619 = vmatprep.subr.mxu0 0.0
        %620 = vmatpush1.msra.mxu0 0.0
        %621 = vmatprep.subr.mxu0 0.0
        %622 = vmatpush1.msra.mxu0 0.0
        %623 = vmatprep.subr.mxu0 0.0
        %624 = vmatpush1.msra.mxu0 0.0
        %625 = vmatprep.subr.mxu0 0.0
        %626 = vmatpush1.msra.mxu0 0.0
        %627 = vmatprep.subr.mxu0 0.0
        %628 = vmatpush1.msra.mxu0 0.0
        %629 = vmatprep.subr.mxu0 0.0
        %630 = vmatpush1.msra.mxu0 0.0
        %631 = vmatprep.subr.mxu0 0.0
        %632 = vmatpush1.msra.mxu0 0.0
        %633 = vmatprep.subr.mxu0 0.0
        %634 = vmatpush1.msra.mxu0 0.0
        %635 = vmatprep.subr.mxu0 0.0
        %636 = vmatpush1.msra.mxu0 0.0
        %637 = vmatprep.subr.mxu0 0.0
        %638 = vmatpush1.msra.mxu0 0.0
        %639 = vmatprep.subr.mxu0 0.0
        %640 = vmatpush1.msra.mxu0 0.0
        %641 = vmatprep.subr.mxu0 0.0
        %642 = vmatpush1.msra.mxu0 0.0
        %643 = vmatprep.subr.mxu0 0.0
        %644 = vmatpush1.msra.mxu0 0.0
        %645 = vmatprep.subr.mxu0 0.0
        %646 = vmatpush1.msra.mxu0 0.0
        %647 = vmatprep.subr.mxu0 0.0
        %648 = vmatpush1.msra.mxu0 0.0
        %649 = vmatprep.subr.mxu0 0.0
        %650 = vmatpush1.msra.mxu0 0.0
        %651 = vmatprep.subr.mxu0 0.0
        %652 = vmatpush1.msra.mxu0 0.0
        %653 = vmatprep.mubr.f32.mxu0 0.0
        %654 = vmatmul.mubr.f32.gmra.mrb[0].mxu0 %v566
        %v655 = vpop.f32.mrb[0].mxu0
        %v656 = vadd.f32 %v562, %v655
        %v657 = vpop.f32.mrb[0].mxu0
        %658 = vmatprep.mubr.f32.mxu0 0.0
        %659 = vmatmul.mubr.f32.gmra.mrb[0].mxu0 %v569
        %v660 = vpop.f32.mrb[0].mxu0
        %v661 = vadd.f32 %v562, %v660
        %v662 = vpop.f32.mrb[0].mxu0
        %663 = vmatprep.mubr.f32.mxu0 0.0
        %664 = vmatmul.mubr.f32.gmra.mrb[0].mxu0 %v572
        %v665 = vpop.f32.mrb[0].mxu0
        %v666 = vadd.f32 %v562, %v665
        %v667 = vpop.f32.mrb[0].mxu0
        %668 = vmatprep.mubr.f32.mxu0 0.0
        %669 = vmatmul.mubr.f32.gmra.mrb[0].mxu0 %v575
        %v670 = vpop.f32.mrb[0].mxu0
        %v671 = vadd.f32 %v562, %v670
        %v672 = vpop.f32.mrb[0].mxu0
        %673 = vmatprep.mubr.f32.mxu0 0.0
        %674 = vmatmul.mubr.f32.gmra.mrb[0].mxu0 %v578
        %v675 = vpop.f32.mrb[0].mxu0
        %v676 = vadd.f32 %v562, %v675
        %v677 = vpop.f32.mrb[0].mxu0
        %678 = vmatprep.mubr.f32.mxu0 0.0
        %679 = vmatmul.mubr.f32.gmra.mrb[0].mxu0 %v581
        %v680 = vpop.f32.mrb[0].mxu0
        %v681 = vadd.f32 %v562, %v680
        %v682 = vpop.f32.mrb[0].mxu0
        %683 = vmatprep.mubr.f32.mxu0 0.0
        %684 = vmatmul.mubr.f32.gmra.mrb[0].mxu0 %v584
        %v685 = vpop.f32.mrb[0].mxu0
        %v686 = vadd.f32 %v562, %v685
        %v687 = vpop.f32.mrb[0].mxu0
        %688 = vmatprep.mubr.f32.mxu0 0.0
        %689 = vmatmul.mubr.f32.gmra.mrb[0].mxu0 %v587
        %v690 = vpop.f32.mrb[0].mxu0
        %v691 = vadd.f32 %v562, %v690
        %v692 = vpop.f32.mrb[0].mxu0
        %693 = vdwg.mxu0
        %v694 = vmul.f32 %v656, 0.35355338
        %v695 = vmul.f32 %v661, 0.35355338
        %v696 = vmul.f32 %v666, 0.35355338
        %v697 = vmul.f32 %v671, 0.35355338
        %v698 = vmul.f32 %v676, 0.35355338
        %v699 = vmul.f32 %v681, 0.35355338
        %v700 = vmul.f32 %v686, 0.35355338
        %v701 = vmul.f32 %v691, 0.35355338
        %s702 = scalar_lea.vmem [#allocation8], 32
        %v703 = vld [vmem:[%s702] sm:$0xff]
        %v704 = vld [vmem:[%s702 + $0x8] sm:$0xff]
        %v705 = vld [vmem:[%s702 + $0x10] sm:$0xff]
        %v706 = vld [vmem:[%s702 + $0x18] sm:$0xff]
        %s707 = scalar_lea.vmem %s4, 1
        %v708 = vld [vmem:[%s707] sm:$0x1]
        %v710 = vlaneseq
        %v711 = vshrl.u32 %v710, 7
        %v712 = vsub.s32 0, %v711
        %v713 = vrot.slane %v708, %v712
        %v716 = vsel %vm564, %v537, 0
        %v719 = vsel %vm564, %v538, 0
        %v722 = vsel %vm564, %v539, 0
        %v725 = vsel %vm564, %v540, 0
        %v728 = vsel %vm564, %v541, 0
        %v731 = vsel %vm564, %v542, 0
        %v734 = vsel %vm564, %v543, 0
        %v737 = vsel %vm564, %v544, 0
        %739 = vmatprep.subr.mxu0 0.0
        %740 = vmatpush1.msra.mxu0 %v703
        %741 = vmatprep.subr.mxu0 0.0
        %742 = vmatpush1.msra.mxu0 %v704
        %743 = vmatprep.subr.mxu0 0.0
        %744 = vmatpush1.msra.mxu0 %v705
        %745 = vmatprep.subr.mxu0 0.0
        %746 = vmatpush1.msra.mxu0 %v706
        %747 = vmatprep.subr.mxu0 0.0
        %748 = vmatpush1.msra.mxu0 0.0
        %749 = vmatprep.subr.mxu0 0.0
        %750 = vmatpush1.msra.mxu0 0.0
        %751 = vmatprep.subr.mxu0 0.0
        %752 = vmatpush1.msra.mxu0 0.0
        %753 = vmatprep.subr.mxu0 0.0
        %754 = vmatpush1.msra.mxu0 0.0
        %755 = vmatprep.subr.mxu0 0.0
        %756 = vmatpush1.msra.mxu0 0.0
        %757 = vmatprep.subr.mxu0 0.0
        %758 = vmatpush1.msra.mxu0 0.0
        %759 = vmatprep.subr.mxu0 0.0
        %760 = vmatpush1.msra.mxu0 0.0
        %761 = vmatprep.subr.mxu0 0.0
        %762 = vmatpush1.msra.mxu0 0.0
        %763 = vmatprep.subr.mxu0 0.0
        %764 = vmatpush1.msra.mxu0 0.0
        %765 = vmatprep.subr.mxu0 0.0
        %766 = vmatpush1.msra.mxu0 0.0
        %767 = vmatprep.subr.mxu0 0.0
        %768 = vmatpush1.msra.mxu0 0.0
        %769 = vmatprep.subr.mxu0 0.0
        %770 = vmatpush1.msra.mxu0 0.0
        %771 = vmatprep.subr.mxu0 0.0
        %772 = vmatpush1.msra.mxu0 0.0
        %773 = vmatprep.subr.mxu0 0.0
        %774 = vmatpush1.msra.mxu0 0.0
        %775 = vmatprep.subr.mxu0 0.0
        %776 = vmatpush1.msra.mxu0 0.0
        %777 = vmatprep.subr.mxu0 0.0
        %778 = vmatpush1.msra.mxu0 0.0
        %779 = vmatprep.subr.mxu0 0.0
        %780 = vmatpush1.msra.mxu0 0.0
        %781 = vmatprep.subr.mxu0 0.0
        %782 = vmatpush1.msra.mxu0 0.0
        %783 = vmatprep.subr.mxu0 0.0
        %784 = vmatpush1.msra.mxu0 0.0
        %785 = vmatprep.subr.mxu0 0.0
        %786 = vmatpush1.msra.mxu0 0.0
        %787 = vmatprep.subr.mxu0 0.0
        %788 = vmatpush1.msra.mxu0 0.0
        %789 = vmatprep.subr.mxu0 0.0
        %790 = vmatpush1.msra.mxu0 0.0
        %791 = vmatprep.subr.mxu0 0.0
        %792 = vmatpush1.msra.mxu0 0.0
        %793 = vmatprep.subr.mxu0 0.0
        %794 = vmatpush1.msra.mxu0 0.0
        %795 = vmatprep.subr.mxu0 0.0
        %796 = vmatpush1.msra.mxu0 0.0
        %797 = vmatprep.subr.mxu0 0.0
        %798 = vmatpush1.msra.mxu0 0.0
        %799 = vmatprep.subr.mxu0 0.0
        %800 = vmatpush1.msra.mxu0 0.0
        %801 = vmatprep.subr.mxu0 0.0
        %802 = vmatpush1.msra.mxu0 0.0
        %803 = vmatprep.mubr.f32.mxu0 0.0
        %804 = vmatmul.mubr.f32.gmra.mrb[0].mxu0 %v716
        %v805 = vpop.f32.mrb[0].mxu0
        %v806 = vadd.f32 %v713, %v805
        %v807 = vpop.f32.mrb[0].mxu0
        %808 = vmatprep.mubr.f32.mxu0 0.0
        %809 = vmatmul.mubr.f32.gmra.mrb[0].mxu0 %v719
        %v810 = vpop.f32.mrb[0].mxu0
        %v811 = vadd.f32 %v713, %v810
        %v812 = vpop.f32.mrb[0].mxu0
        %813 = vmatprep.mubr.f32.mxu0 0.0
        %814 = vmatmul.mubr.f32.gmra.mrb[0].mxu0 %v722
        %v815 = vpop.f32.mrb[0].mxu0
        %v816 = vadd.f32 %v713, %v815
        %v817 = vpop.f32.mrb[0].mxu0
        %818 = vmatprep.mubr.f32.mxu0 0.0
        %819 = vmatmul.mubr.f32.gmra.mrb[0].mxu0 %v725
        %v820 = vpop.f32.mrb[0].mxu0
        %v821 = vadd.f32 %v713, %v820
        %v822 = vpop.f32.mrb[0].mxu0
        %823 = vmatprep.mubr.f32.mxu0 0.0
        %824 = vmatmul.mubr.f32.gmra.mrb[0].mxu0 %v728
        %v825 = vpop.f32.mrb[0].mxu0
        %v826 = vadd.f32 %v713, %v825
        %v827 = vpop.f32.mrb[0].mxu0
        %828 = vmatprep.mubr.f32.mxu0 0.0
        %829 = vmatmul.mubr.f32.gmra.mrb[0].mxu0 %v731
        %v830 = vpop.f32.mrb[0].mxu0
        %v831 = vadd.f32 %v713, %v830
        %v832 = vpop.f32.mrb[0].mxu0
        %833 = vmatprep.mubr.f32.mxu0 0.0
        %834 = vmatmul.mubr.f32.gmra.mrb[0].mxu0 %v734
        %v835 = vpop.f32.mrb[0].mxu0
        %v836 = vadd.f32 %v713, %v835
        %v837 = vpop.f32.mrb[0].mxu0
        %838 = vmatprep.mubr.f32.mxu0 0.0
        %839 = vmatmul.mubr.f32.gmra.mrb[0].mxu0 %v737
        %v840 = vpop.f32.mrb[0].mxu0
        %v841 = vadd.f32 %v713, %v840
        %v842 = vpop.f32.mrb[0].mxu0
        %843 = vdwg.mxu0
        %s844 = scalar_lea.vmem [#allocation8], 64
        %v845 = vld [vmem:[%s844] sm:$0xff]
        %v846 = vld [vmem:[%s844 + $0x8] sm:$0xff]
        %v847 = vld [vmem:[%s844 + $0x10] sm:$0xff]
        %v848 = vld [vmem:[%s844 + $0x18] sm:$0xff]
        %s849 = scalar_lea.vmem %s4, 2
        %v850 = vld [vmem:[%s849] sm:$0x1]
        %v852 = vlaneseq
        %v853 = vshrl.u32 %v852, 7
        %v854 = vsub.s32 0, %v853
        %v855 = vrot.slane %v850, %v854
        %v858 = vsel %vm564, %v545, 0
        %v861 = vsel %vm564, %v546, 0
        %v864 = vsel %vm564, %v547, 0
        %v867 = vsel %vm564, %v548, 0
        %v870 = vsel %vm564, %v549, 0
        %v873 = vsel %vm564, %v550, 0
        %v876 = vsel %vm564, %v551, 0
        %v879 = vsel %vm564, %v552, 0
        %881 = vmatprep.subr.mxu0 0.0
        %882 = vmatpush1.msra.mxu0 %v845
        %883 = vmatprep.subr.mxu0 0.0
        %884 = vmatpush1.msra.mxu0 %v846
        %885 = vmatprep.subr.mxu0 0.0
        %886 = vmatpush1.msra.mxu0 %v847
        %887 = vmatprep.subr.mxu0 0.0
        %888 = vmatpush1.msra.mxu0 %v848
        %889 = vmatprep.subr.mxu0 0.0
        %890 = vmatpush1.msra.mxu0 0.0
        %891 = vmatprep.subr.mxu0 0.0
        %892 = vmatpush1.msra.mxu0 0.0
        %893 = vmatprep.subr.mxu0 0.0
        %894 = vmatpush1.msra.mxu0 0.0
        %895 = vmatprep.subr.mxu0 0.0
        %896 = vmatpush1.msra.mxu0 0.0
        %897 = vmatprep.subr.mxu0 0.0
        %898 = vmatpush1.msra.mxu0 0.0
        %899 = vmatprep.subr.mxu0 0.0
        %900 = vmatpush1.msra.mxu0 0.0
        %901 = vmatprep.subr.mxu0 0.0
        %902 = vmatpush1.msra.mxu0 0.0
        %903 = vmatprep.subr.mxu0 0.0
        %904 = vmatpush1.msra.mxu0 0.0
        %905 = vmatprep.subr.mxu0 0.0
        %906 = vmatpush1.msra.mxu0 0.0
        %907 = vmatprep.subr.mxu0 0.0
        %908 = vmatpush1.msra.mxu0 0.0
        %909 = vmatprep.subr.mxu0 0.0
        %910 = vmatpush1.msra.mxu0 0.0
        %911 = vmatprep.subr.mxu0 0.0
        %912 = vmatpush1.msra.mxu0 0.0
        %913 = vmatprep.subr.mxu0 0.0
        %914 = vmatpush1.msra.mxu0 0.0
        %915 = vmatprep.subr.mxu0 0.0
        %916 = vmatpush1.msra.mxu0 0.0
        %917 = vmatprep.subr.mxu0 0.0
        %918 = vmatpush1.msra.mxu0 0.0
        %919 = vmatprep.subr.mxu0 0.0
        %920 = vmatpush1.msra.mxu0 0.0
        %921 = vmatprep.subr.mxu0 0.0
        %922 = vmatpush1.msra.mxu0 0.0
        %923 = vmatprep.subr.mxu0 0.0
        %924 = vmatpush1.msra.mxu0 0.0
        %925 = vmatprep.subr.mxu0 0.0
        %926 = vmatpush1.msra.mxu0 0.0
        %927 = vmatprep.subr.mxu0 0.0
        %928 = vmatpush1.msra.mxu0 0.0
        %929 = vmatprep.subr.mxu0 0.0
        %930 = vmatpush1.msra.mxu0 0.0
        %931 = vmatprep.subr.mxu0 0.0
        %932 = vmatpush1.msra.mxu0 0.0
        %933 = vmatprep.subr.mxu0 0.0
        %934 = vmatpush1.msra.mxu0 0.0
        %935 = vmatprep.subr.mxu0 0.0
        %936 = vmatpush1.msra.mxu0 0.0
        %937 = vmatprep.subr.mxu0 0.0
        %938 = vmatpush1.msra.mxu0 0.0
        %939 = vmatprep.subr.mxu0 0.0
        %940 = vmatpush1.msra.mxu0 0.0
        %941 = vmatprep.subr.mxu0 0.0
        %942 = vmatpush1.msra.mxu0 0.0
        %943 = vmatprep.subr.mxu0 0.0
        %944 = vmatpush1.msra.mxu0 0.0
        %945 = vmatprep.mubr.f32.mxu0 0.0
        %946 = vmatmul.mubr.f32.gmra.mrb[0].mxu0 %v858
        %v947 = vpop.f32.mrb[0].mxu0
        %v948 = vadd.f32 %v855, %v947
        %v949 = vpop.f32.mrb[0].mxu0
        %950 = vmatprep.mubr.f32.mxu0 0.0
        %951 = vmatmul.mubr.f32.gmra.mrb[0].mxu0 %v861
        %v952 = vpop.f32.mrb[0].mxu0
        %v953 = vadd.f32 %v855, %v952
        %v954 = vpop.f32.mrb[0].mxu0
        %955 = vmatprep.mubr.f32.mxu0 0.0
        %956 = vmatmul.mubr.f32.gmra.mrb[0].mxu0 %v864
        %v957 = vpop.f32.mrb[0].mxu0
        %v958 = vadd.f32 %v855, %v957
        %v959 = vpop.f32.mrb[0].mxu0
        %960 = vmatprep.mubr.f32.mxu0 0.0
        %961 = vmatmul.mubr.f32.gmra.mrb[0].mxu0 %v867
        %v962 = vpop.f32.mrb[0].mxu0
        %v963 = vadd.f32 %v855, %v962
        %v964 = vpop.f32.mrb[0].mxu0
        %965 = vmatprep.mubr.f32.mxu0 0.0
        %966 = vmatmul.mubr.f32.gmra.mrb[0].mxu0 %v870
        %v967 = vpop.f32.mrb[0].mxu0
        %v968 = vadd.f32 %v855, %v967
        %v969 = vpop.f32.mrb[0].mxu0
        %970 = vmatprep.mubr.f32.mxu0 0.0
        %971 = vmatmul.mubr.f32.gmra.mrb[0].mxu0 %v873
        %v972 = vpop.f32.mrb[0].mxu0
        %v973 = vadd.f32 %v855, %v972
        %v974 = vpop.f32.mrb[0].mxu0
        %975 = vmatprep.mubr.f32.mxu0 0.0
        %976 = vmatmul.mubr.f32.gmra.mrb[0].mxu0 %v876
        %v977 = vpop.f32.mrb[0].mxu0
        %v978 = vadd.f32 %v855, %v977
        %v979 = vpop.f32.mrb[0].mxu0
        %980 = vmatprep.mubr.f32.mxu0 0.0
        %981 = vmatmul.mubr.f32.gmra.mrb[0].mxu0 %v879
        %v982 = vpop.f32.mrb[0].mxu0
        %v983 = vadd.f32 %v855, %v982
        %v984 = vpop.f32.mrb[0].mxu0
        %985 = vdwg.mxu0
        %v986 = vld [vmem:[#allocation13] sm:$0xff]
        %v987 = vld [vmem:[#allocation13 + $0x8] sm:$0xff]
        %v988 = vld [vmem:[#allocation13 + $0x10] sm:$0xff]
        %v989 = vld [vmem:[#allocation13 + $0x18] sm:$0xff]
        %v990 = vld [vmem:[#allocation13 + $0x20] sm:$0xff]
        %v991 = vld [vmem:[#allocation13 + $0x28] sm:$0xff]
        %v992 = vld [vmem:[#allocation13 + $0x30] sm:$0xff]
        %v993 = vld [vmem:[#allocation13 + $0x38] sm:$0xff]
        %v994 = vld [vmem:[#allocation11] sm:$0xff]
        %v995 = vld [vmem:[#allocation11 + $0x8] sm:$0xff]
        %v996 = vadd.f32 %v994, %v986
        %v997 = vadd.f32 %v995, %v987
        %v998 = vadd.f32 %v994, %v988
        %v999 = vadd.f32 %v995, %v989
        %v1000 = vadd.f32 %v994, %v990
        %v1001 = vadd.f32 %v995, %v991
        %v1002 = vadd.f32 %v994, %v992
        %v1003 = vadd.f32 %v995, %v993
        %vm1004 = vcmask 64512
        %v1006 = vsel %vm1004, %v694, 0
        %v1009 = vsel %vm1004, %v695, 0
        %v1012 = vsel %vm1004, %v806, 0
        %v1015 = vsel %vm1004, %v811, 0
        %1017 = vmatprep.subr.mxu0 0.0
        %1018 = vmatpush1.xpose.msra.mxu0 %v1012
        %1019 = vmatprep.subr.mxu0 0.0
        %1020 = vmatpush1.xpose.msra.mxu0 %v1015
        %1021 = vmatprep.subr.mxu0 0.0
        %1022 = vmatpush1.xpose.msra.mxu0 0.0
        %1023 = vmatprep.subr.mxu0 0.0
        %1024 = vmatpush1.xpose.msra.mxu0 0.0
        %1025 = vmatprep.subr.mxu0 0.0
        %1026 = vmatpush1.xpose.msra.mxu0 0.0
        %1027 = vmatprep.subr.mxu0 0.0
        %1028 = vmatpush1.xpose.msra.mxu0 0.0
        %1029 = vmatprep.subr.mxu0 0.0
        %1030 = vmatpush1.xpose.msra.mxu0 0.0
        %1031 = vmatprep.subr.mxu0 0.0
        %1032 = vmatpush1.xpose.msra.mxu0 0.0
        %1033 = vmatprep.subr.mxu0 0.0
        %1034 = vmatpush1.xpose.msra.mxu0 0.0
        %1035 = vmatprep.subr.mxu0 0.0
        %1036 = vmatpush1.xpose.msra.mxu0 0.0
        %1037 = vmatprep.subr.mxu0 0.0
        %1038 = vmatpush1.xpose.msra.mxu0 0.0
        %1039 = vmatprep.subr.mxu0 0.0
        %1040 = vmatpush1.xpose.msra.mxu0 0.0
        %1041 = vmatprep.subr.mxu0 0.0
        %1042 = vmatpush1.xpose.msra.mxu0 0.0
        %1043 = vmatprep.subr.mxu0 0.0
        %1044 = vmatpush1.xpose.msra.mxu0 0.0
        %1045 = vmatprep.subr.mxu0 0.0
        %1046 = vmatpush1.xpose.msra.mxu0 0.0
        %1047 = vmatprep.subr.mxu0 0.0
        %1048 = vmatpush1.xpose.msra.mxu0 0.0
        %1049 = vmatprep.subr.mxu0 0.0
        %1050 = vmatpush1.xpose.msra.mxu0 0.0
        %1051 = vmatprep.subr.mxu0 0.0
        %1052 = vmatpush1.xpose.msra.mxu0 0.0
        %1053 = vmatprep.subr.mxu0 0.0
        %1054 = vmatpush1.xpose.msra.mxu0 0.0
        %1055 = vmatprep.subr.mxu0 0.0
        %1056 = vmatpush1.xpose.msra.mxu0 0.0
        %1057 = vmatprep.subr.mxu0 0.0
        %1058 = vmatpush1.xpose.msra.mxu0 0.0
        %1059 = vmatprep.subr.mxu0 0.0
        %1060 = vmatpush1.xpose.msra.mxu0 0.0
        %1061 = vmatprep.subr.mxu0 0.0
        %1062 = vmatpush1.xpose.msra.mxu0 0.0
        %1063 = vmatprep.subr.mxu0 0.0
        %1064 = vmatpush1.xpose.msra.mxu0 0.0
        %1065 = vmatprep.subr.mxu0 0.0
        %1066 = vmatpush1.xpose.msra.mxu0 0.0
        %1067 = vmatprep.subr.mxu0 0.0
        %1068 = vmatpush1.xpose.msra.mxu0 0.0
        %1069 = vmatprep.subr.mxu0 0.0
        %1070 = vmatpush1.xpose.msra.mxu0 0.0
        %1071 = vmatprep.subr.mxu0 0.0
        %1072 = vmatpush1.xpose.msra.mxu0 0.0
        %1073 = vmatprep.subr.mxu0 0.0
        %1074 = vmatpush1.xpose.msra.mxu0 0.0
        %1075 = vmatprep.subr.mxu0 0.0
        %1076 = vmatpush1.xpose.msra.mxu0 0.0
        %1077 = vmatprep.subr.mxu0 0.0
        %1078 = vmatpush1.xpose.msra.mxu0 0.0
        %1079 = vmatprep.subr.mxu0 0.0
        %1080 = vmatpush1.xpose.msra.mxu0 0.0
        %1081 = vmatprep.mubr.f32.mxu0 0.0
        %1082 = vmatmul.mubr.f32.gmra.mrb[0].mxu0 %v1006
        %v1083 = vpop.f32.mrb[0].mxu0
        %v1084 = vadd.f32 %v996, %v1083
        %v1085 = vpop.f32.mrb[0].mxu0
        %1086 = vmatprep.mubr.f32.mxu0 0.0
        %1087 = vmatmul.mubr.f32.gmra.mrb[0].mxu0 %v1009
        %v1088 = vpop.f32.mrb[0].mxu0
        %v1089 = vadd.f32 %v997, %v1088
        %v1090 = vpop.f32.mrb[0].mxu0
        %1091 = vdwg.mxu0
        %v1093 = vsel %vm1004, %v696, 0
        %v1096 = vsel %vm1004, %v697, 0
        %v1099 = vsel %vm1004, %v816, 0
        %v1102 = vsel %vm1004, %v821, 0
        %1104 = vmatprep.subr.mxu0 0.0
        %1105 = vmatpush1.xpose.msra.mxu0 %v1099
        %1106 = vmatprep.subr.mxu0 0.0
        %1107 = vmatpush1.xpose.msra.mxu0 %v1102
        %1108 = vmatprep.subr.mxu0 0.0
        %1109 = vmatpush1.xpose.msra.mxu0 0.0
        %1110 = vmatprep.subr.mxu0 0.0
        %1111 = vmatpush1.xpose.msra.mxu0 0.0
        %1112 = vmatprep.subr.mxu0 0.0
        %1113 = vmatpush1.xpose.msra.mxu0 0.0
        %1114 = vmatprep.subr.mxu0 0.0
        %1115 = vmatpush1.xpose.msra.mxu0 0.0
        %1116 = vmatprep.subr.mxu0 0.0
        %1117 = vmatpush1.xpose.msra.mxu0 0.0
        %1118 = vmatprep.subr.mxu0 0.0
        %1119 = vmatpush1.xpose.msra.mxu0 0.0
        %1120 = vmatprep.subr.mxu0 0.0
        %1121 = vmatpush1.xpose.msra.mxu0 0.0
        %1122 = vmatprep.subr.mxu0 0.0
        %1123 = vmatpush1.xpose.msra.mxu0 0.0
        %1124 = vmatprep.subr.mxu0 0.0
        %1125 = vmatpush1.xpose.msra.mxu0 0.0
        %1126 = vmatprep.subr.mxu0 0.0
        %1127 = vmatpush1.xpose.msra.mxu0 0.0
        %1128 = vmatprep.subr.mxu0 0.0
        %1129 = vmatpush1.xpose.msra.mxu0 0.0
        %1130 = vmatprep.subr.mxu0 0.0
        %1131 = vmatpush1.xpose.msra.mxu0 0.0
        %1132 = vmatprep.subr.mxu0 0.0
        %1133 = vmatpush1.xpose.msra.mxu0 0.0
        %1134 = vmatprep.subr.mxu0 0.0
        %1135 = vmatpush1.xpose.msra.mxu0 0.0
        %1136 = vmatprep.subr.mxu0 0.0
        %1137 = vmatpush1.xpose.msra.mxu0 0.0
        %1138 = vmatprep.subr.mxu0 0.0
        %1139 = vmatpush1.xpose.msra.mxu0 0.0
        %1140 = vmatprep.subr.mxu0 0.0
        %1141 = vmatpush1.xpose.msra.mxu0 0.0
        %1142 = vmatprep.subr.mxu0 0.0
        %1143 = vmatpush1.xpose.msra.mxu0 0.0
        %1144 = vmatprep.subr.mxu0 0.0
        %1145 = vmatpush1.xpose.msra.mxu0 0.0
        %1146 = vmatprep.subr.mxu0 0.0
        %1147 = vmatpush1.xpose.msra.mxu0 0.0
        %1148 = vmatprep.subr.mxu0 0.0
        %1149 = vmatpush1.xpose.msra.mxu0 0.0
        %1150 = vmatprep.subr.mxu0 0.0
        %1151 = vmatpush1.xpose.msra.mxu0 0.0
        %1152 = vmatprep.subr.mxu0 0.0
        %1153 = vmatpush1.xpose.msra.mxu0 0.0
        %1154 = vmatprep.subr.mxu0 0.0
        %1155 = vmatpush1.xpose.msra.mxu0 0.0
        %1156 = vmatprep.subr.mxu0 0.0
        %1157 = vmatpush1.xpose.msra.mxu0 0.0
        %1158 = vmatprep.subr.mxu0 0.0
        %1159 = vmatpush1.xpose.msra.mxu0 0.0
        %1160 = vmatprep.subr.mxu0 0.0
        %1161 = vmatpush1.xpose.msra.mxu0 0.0
        %1162 = vmatprep.subr.mxu0 0.0
        %1163 = vmatpush1.xpose.msra.mxu0 0.0
        %1164 = vmatprep.subr.mxu0 0.0
        %1165 = vmatpush1.xpose.msra.mxu0 0.0
        %1166 = vmatprep.subr.mxu0 0.0
        %1167 = vmatpush1.xpose.msra.mxu0 0.0
        %1168 = vmatprep.mubr.f32.mxu0 0.0
        %1169 = vmatmul.mubr.f32.gmra.mrb[0].mxu0 %v1093
        %v1170 = vpop.f32.mrb[0].mxu0
        %v1171 = vadd.f32 %v998, %v1170
        %v1172 = vpop.f32.mrb[0].mxu0
        %1173 = vmatprep.mubr.f32.mxu0 0.0
        %1174 = vmatmul.mubr.f32.gmra.mrb[0].mxu0 %v1096
        %v1175 = vpop.f32.mrb[0].mxu0
        %v1176 = vadd.f32 %v999, %v1175
        %v1177 = vpop.f32.mrb[0].mxu0
        %1178 = vdwg.mxu0
        %v1180 = vsel %vm1004, %v698, 0
        %v1183 = vsel %vm1004, %v699, 0
        %v1186 = vsel %vm1004, %v826, 0
        %v1189 = vsel %vm1004, %v831, 0
        %1191 = vmatprep.subr.mxu0 0.0
        %1192 = vmatpush1.xpose.msra.mxu0 %v1186
        %1193 = vmatprep.subr.mxu0 0.0
        %1194 = vmatpush1.xpose.msra.mxu0 %v1189
        %1195 = vmatprep.subr.mxu0 0.0
        %1196 = vmatpush1.xpose.msra.mxu0 0.0
        %1197 = vmatprep.subr.mxu0 0.0
        %1198 = vmatpush1.xpose.msra.mxu0 0.0
        %1199 = vmatprep.subr.mxu0 0.0
        %1200 = vmatpush1.xpose.msra.mxu0 0.0
        %1201 = vmatprep.subr.mxu0 0.0
        %1202 = vmatpush1.xpose.msra.mxu0 0.0
        %1203 = vmatprep.subr.mxu0 0.0
        %1204 = vmatpush1.xpose.msra.mxu0 0.0
        %1205 = vmatprep.subr.mxu0 0.0
        %1206 = vmatpush1.xpose.msra.mxu0 0.0
        %1207 = vmatprep.subr.mxu0 0.0
        %1208 = vmatpush1.xpose.msra.mxu0 0.0
        %1209 = vmatprep.subr.mxu0 0.0
        %1210 = vmatpush1.xpose.msra.mxu0 0.0
        %1211 = vmatprep.subr.mxu0 0.0
        %1212 = vmatpush1.xpose.msra.mxu0 0.0
        %1213 = vmatprep.subr.mxu0 0.0
        %1214 = vmatpush1.xpose.msra.mxu0 0.0
        %1215 = vmatprep.subr.mxu0 0.0
        %1216 = vmatpush1.xpose.msra.mxu0 0.0
        %1217 = vmatprep.subr.mxu0 0.0
        %1218 = vmatpush1.xpose.msra.mxu0 0.0
        %1219 = vmatprep.subr.mxu0 0.0
        %1220 = vmatpush1.xpose.msra.mxu0 0.0
        %1221 = vmatprep.subr.mxu0 0.0
        %1222 = vmatpush1.xpose.msra.mxu0 0.0
        %1223 = vmatprep.subr.mxu0 0.0
        %1224 = vmatpush1.xpose.msra.mxu0 0.0
        %1225 = vmatprep.subr.mxu0 0.0
        %1226 = vmatpush1.xpose.msra.mxu0 0.0
        %1227 = vmatprep.subr.mxu0 0.0
        %1228 = vmatpush1.xpose.msra.mxu0 0.0
        %1229 = vmatprep.subr.mxu0 0.0
        %1230 = vmatpush1.xpose.msra.mxu0 0.0
        %1231 = vmatprep.subr.mxu0 0.0
        %1232 = vmatpush1.xpose.msra.mxu0 0.0
        %1233 = vmatprep.subr.mxu0 0.0
        %1234 = vmatpush1.xpose.msra.mxu0 0.0
        %1235 = vmatprep.subr.mxu0 0.0
        %1236 = vmatpush1.xpose.msra.mxu0 0.0
        %1237 = vmatprep.subr.mxu0 0.0
        %1238 = vmatpush1.xpose.msra.mxu0 0.0
        %1239 = vmatprep.subr.mxu0 0.0
        %1240 = vmatpush1.xpose.msra.mxu0 0.0
        %1241 = vmatprep.subr.mxu0 0.0
        %1242 = vmatpush1.xpose.msra.mxu0 0.0
        %1243 = vmatprep.subr.mxu0 0.0
        %1244 = vmatpush1.xpose.msra.mxu0 0.0
        %1245 = vmatprep.subr.mxu0 0.0
        %1246 = vmatpush1.xpose.msra.mxu0 0.0
        %1247 = vmatprep.subr.mxu0 0.0
        %1248 = vmatpush1.xpose.msra.mxu0 0.0
        %1249 = vmatprep.subr.mxu0 0.0
        %1250 = vmatpush1.xpose.msra.mxu0 0.0
        %1251 = vmatprep.subr.mxu0 0.0
        %1252 = vmatpush1.xpose.msra.mxu0 0.0
        %1253 = vmatprep.subr.mxu0 0.0
        %1254 = vmatpush1.xpose.msra.mxu0 0.0
        %1255 = vmatprep.mubr.f32.mxu0 0.0
        %1256 = vmatmul.mubr.f32.gmra.mrb[0].mxu0 %v1180
        %v1257 = vpop.f32.mrb[0].mxu0
        %v1258 = vadd.f32 %v1000, %v1257
        %v1259 = vpop.f32.mrb[0].mxu0
        %1260 = vmatprep.mubr.f32.mxu0 0.0
        %1261 = vmatmul.mubr.f32.gmra.mrb[0].mxu0 %v1183
        %v1262 = vpop.f32.mrb[0].mxu0
        %v1263 = vadd.f32 %v1001, %v1262
        %v1264 = vpop.f32.mrb[0].mxu0
        %1265 = vdwg.mxu0
        %v1267 = vsel %vm1004, %v700, 0
        %v1270 = vsel %vm1004, %v701, 0
        %v1273 = vsel %vm1004, %v836, 0
        %v1276 = vsel %vm1004, %v841, 0
        %1278 = vmatprep.subr.mxu0 0.0
        %1279 = vmatpush1.xpose.msra.mxu0 %v1273
        %1280 = vmatprep.subr.mxu0 0.0
        %1281 = vmatpush1.xpose.msra.mxu0 %v1276
        %1282 = vmatprep.subr.mxu0 0.0
        %1283 = vmatpush1.xpose.msra.mxu0 0.0
        %1284 = vmatprep.subr.mxu0 0.0
        %1285 = vmatpush1.xpose.msra.mxu0 0.0
        %1286 = vmatprep.subr.mxu0 0.0
        %1287 = vmatpush1.xpose.msra.mxu0 0.0
        %1288 = vmatprep.subr.mxu0 0.0
        %1289 = vmatpush1.xpose.msra.mxu0 0.0
        %1290 = vmatprep.subr.mxu0 0.0
        %1291 = vmatpush1.xpose.msra.mxu0 0.0
        %1292 = vmatprep.subr.mxu0 0.0
        %1293 = vmatpush1.xpose.msra.mxu0 0.0
        %1294 = vmatprep.subr.mxu0 0.0
        %1295 = vmatpush1.xpose.msra.mxu0 0.0
        %1296 = vmatprep.subr.mxu0 0.0
        %1297 = vmatpush1.xpose.msra.mxu0 0.0
        %1298 = vmatprep.subr.mxu0 0.0
        %1299 = vmatpush1.xpose.msra.mxu0 0.0
        %1300 = vmatprep.subr.mxu0 0.0
        %1301 = vmatpush1.xpose.msra.mxu0 0.0
        %1302 = vmatprep.subr.mxu0 0.0
        %1303 = vmatpush1.xpose.msra.mxu0 0.0
        %1304 = vmatprep.subr.mxu0 0.0
        %1305 = vmatpush1.xpose.msra.mxu0 0.0
        %1306 = vmatprep.subr.mxu0 0.0
        %1307 = vmatpush1.xpose.msra.mxu0 0.0
        %1308 = vmatprep.subr.mxu0 0.0
        %1309 = vmatpush1.xpose.msra.mxu0 0.0
        %1310 = vmatprep.subr.mxu0 0.0
        %1311 = vmatpush1.xpose.msra.mxu0 0.0
        %1312 = vmatprep.subr.mxu0 0.0
        %1313 = vmatpush1.xpose.msra.mxu0 0.0
        %1314 = vmatprep.subr.mxu0 0.0
        %1315 = vmatpush1.xpose.msra.mxu0 0.0
        %1316 = vmatprep.subr.mxu0 0.0
        %1317 = vmatpush1.xpose.msra.mxu0 0.0
        %1318 = vmatprep.subr.mxu0 0.0
        %1319 = vmatpush1.xpose.msra.mxu0 0.0
        %1320 = vmatprep.subr.mxu0 0.0
        %1321 = vmatpush1.xpose.msra.mxu0 0.0
        %1322 = vmatprep.subr.mxu0 0.0
        %1323 = vmatpush1.xpose.msra.mxu0 0.0
        %1324 = vmatprep.subr.mxu0 0.0
        %1325 = vmatpush1.xpose.msra.mxu0 0.0
        %1326 = vmatprep.subr.mxu0 0.0
        %1327 = vmatpush1.xpose.msra.mxu0 0.0
        %1328 = vmatprep.subr.mxu0 0.0
        %1329 = vmatpush1.xpose.msra.mxu0 0.0
        %1330 = vmatprep.subr.mxu0 0.0
        %1331 = vmatpush1.xpose.msra.mxu0 0.0
        %1332 = vmatprep.subr.mxu0 0.0
        %1333 = vmatpush1.xpose.msra.mxu0 0.0
        %1334 = vmatprep.subr.mxu0 0.0
        %1335 = vmatpush1.xpose.msra.mxu0 0.0
        %1336 = vmatprep.subr.mxu0 0.0
        %1337 = vmatpush1.xpose.msra.mxu0 0.0
        %1338 = vmatprep.subr.mxu0 0.0
        %1339 = vmatpush1.xpose.msra.mxu0 0.0
        %1340 = vmatprep.subr.mxu0 0.0
        %1341 = vmatpush1.xpose.msra.mxu0 0.0
        %1342 = vmatprep.mubr.f32.mxu0 0.0
        %1343 = vmatmul.mubr.f32.gmra.mrb[0].mxu0 %v1267
        %v1344 = vpop.f32.mrb[0].mxu0
        %v1345 = vadd.f32 %v1002, %v1344
        %v1346 = vpop.f32.mrb[0].mxu0
        %1347 = vmatprep.mubr.f32.mxu0 0.0
        %1348 = vmatmul.mubr.f32.gmra.mrb[0].mxu0 %v1270
        %v1349 = vpop.f32.mrb[0].mxu0
        %v1350 = vadd.f32 %v1003, %v1349
        %v1351 = vpop.f32.mrb[0].mxu0
        %1352 = vdwg.mxu0
        %vm1353 = vcmask 130048
        %v1354 = vsel %vm1353, %v1084, -inf
        %1355 = vmax.xlane.f32.xlu0 %v1354
        %v1356 = vpop.xlane.xlu0 %1355
        %v1357 = vsel %vm1353, %v1089, -inf
        %1358 = vmax.xlane.f32.xlu0 %v1357
        %v1359 = vpop.xlane.xlu0 %1358
        %v1360 = vsel %vm1353, %v1171, -inf
        %1361 = vmax.xlane.f32.xlu0 %v1360
        %v1362 = vpop.xlane.xlu0 %1361
        %v1363 = vsel %vm1353, %v1176, -inf
        %1364 = vmax.xlane.f32.xlu0 %v1363
        %v1365 = vpop.xlane.xlu0 %1364
        %v1366 = vsel %vm1353, %v1258, -inf
        %1367 = vmax.xlane.f32.xlu0 %v1366
        %v1368 = vpop.xlane.xlu0 %1367
        %v1369 = vsel %vm1353, %v1263, -inf
        %1370 = vmax.xlane.f32.xlu0 %v1369
        %v1371 = vpop.xlane.xlu0 %1370
        %v1372 = vsel %vm1353, %v1345, -inf
        %1373 = vmax.xlane.f32.xlu0 %v1372
        %v1374 = vpop.xlane.xlu0 %1373
        %v1375 = vsel %vm1353, %v1350, -inf
        %1376 = vmax.xlane.f32.xlu0 %v1375
        %v1377 = vpop.xlane.xlu0 %1376
        %v1378 = vsub.f32 %v1084, %v1356
        %v1379 = vsub.f32 %v1089, %v1359
        %v1380 = vsub.f32 %v1171, %v1362
        %v1381 = vsub.f32 %v1176, %v1365
        %v1382 = vsub.f32 %v1258, %v1368
        %v1383 = vsub.f32 %v1263, %v1371
        %v1384 = vsub.f32 %v1345, %v1374
        %v1385 = vsub.f32 %v1350, %v1377
        %v1386 = vmul.f32 %v1378, 1.442695
        %v1387 = vpow.pop %v1386
        %v1388 = vmul.f32 %v1379, 1.442695
        %v1389 = vpow.pop %v1388
        %v1390 = vmul.f32 %v1380, 1.442695
        %v1391 = vpow.pop %v1390
        %v1392 = vmul.f32 %v1381, 1.442695
        %v1393 = vpow.pop %v1392
        %v1394 = vmul.f32 %v1382, 1.442695
        %v1395 = vpow.pop %v1394
        %v1396 = vmul.f32 %v1383, 1.442695
        %v1397 = vpow.pop %v1396
        %v1398 = vmul.f32 %v1384, 1.442695
        %v1399 = vpow.pop %v1398
        %v1400 = vmul.f32 %v1385, 1.442695
        %v1401 = vpow.pop %v1400
        %v1402 = vsel %vm1353, %v1387, 0.0
        %1403 = vadd.xlane.f32.xlu0 %v1402
        %v1404 = vpop.xlane.xlu0 %1403
        %v1405 = vsel %vm1353, %v1389, 0.0
        %1406 = vadd.xlane.f32.xlu0 %v1405
        %v1407 = vpop.xlane.xlu0 %1406
        %v1408 = vsel %vm1353, %v1391, 0.0
        %1409 = vadd.xlane.f32.xlu0 %v1408
        %v1410 = vpop.xlane.xlu0 %1409
        %v1411 = vsel %vm1353, %v1393, 0.0
        %1412 = vadd.xlane.f32.xlu0 %v1411
        %v1413 = vpop.xlane.xlu0 %1412
        %v1414 = vsel %vm1353, %v1395, 0.0
        %1415 = vadd.xlane.f32.xlu0 %v1414
        %v1416 = vpop.xlane.xlu0 %1415
        %v1417 = vsel %vm1353, %v1397, 0.0
        %1418 = vadd.xlane.f32.xlu0 %v1417
        %v1419 = vpop.xlane.xlu0 %1418
        %v1420 = vsel %vm1353, %v1399, 0.0
        %1421 = vadd.xlane.f32.xlu0 %v1420
        %v1422 = vpop.xlane.xlu0 %1421
        %v1423 = vsel %vm1353, %v1401, 0.0
        %1424 = vadd.xlane.f32.xlu0 %v1423
        %v1425 = vpop.xlane.xlu0 %1424
        %v1426 = vrcp.pop %v1404
        %v1427 = vrcp.pop %v1407
        %v1428 = vrcp.pop %v1410
        %v1429 = vrcp.pop %v1413
        %v1430 = vrcp.pop %v1416
        %v1431 = vrcp.pop %v1419
        %v1432 = vrcp.pop %v1422
        %v1433 = vrcp.pop %v1425
        %v1434 = vmul.f32 %v1387, %v1426
        %v1435 = vmul.f32 %v1389, %v1427
        %v1436 = vmul.f32 %v1391, %v1428
        %v1437 = vmul.f32 %v1393, %v1429
        %v1438 = vmul.f32 %v1395, %v1430
        %v1439 = vmul.f32 %v1397, %v1431
        %v1440 = vmul.f32 %v1399, %v1432
        %v1441 = vmul.f32 %v1401, %v1433
        %v1443 = vsel %vm1353, %v1434, 0
        %v1446 = vsel %vm1353, %v1435, 0
        %1448 = vmatprep.subr.mxu0 0.0
        %1449 = vmatpush1.msra.mxu0 %v948
        %1450 = vmatprep.subr.mxu0 0.0
        %1451 = vmatpush1.msra.mxu0 %v953
        %1452 = vmatprep.subr.mxu0 0.0
        %1453 = vmatpush1.msra.mxu0 0.0
        %1454 = vmatprep.subr.mxu0 0.0
        %1455 = vmatpush1.msra.mxu0 0.0
        %1456 = vmatprep.subr.mxu0 0.0
        %1457 = vmatpush1.msra.mxu0 0.0
        %1458 = vmatprep.subr.mxu0 0.0
        %1459 = vmatpush1.msra.mxu0 0.0
        %1460 = vmatprep.subr.mxu0 0.0
        %1461 = vmatpush1.msra.mxu0 0.0
        %1462 = vmatprep.subr.mxu0 0.0
        %1463 = vmatpush1.msra.mxu0 0.0
        %1464 = vmatprep.subr.mxu0 0.0
        %1465 = vmatpush1.msra.mxu0 0.0
        %1466 = vmatprep.subr.mxu0 0.0
        %1467 = vmatpush1.msra.mxu0 0.0
        %1468 = vmatprep.subr.mxu0 0.0
        %1469 = vmatpush1.msra.mxu0 0.0
        %1470 = vmatprep.subr.mxu0 0.0
        %1471 = vmatpush1.msra.mxu0 0.0
        %1472 = vmatprep.subr.mxu0 0.0
        %1473 = vmatpush1.msra.mxu0 0.0
        %1474 = vmatprep.subr.mxu0 0.0
        %1475 = vmatpush1.msra.mxu0 0.0
        %1476 = vmatprep.subr.mxu0 0.0
        %1477 = vmatpush1.msra.mxu0 0.0
        %1478 = vmatprep.subr.mxu0 0.0
        %1479 = vmatpush1.msra.mxu0 0.0
        %1480 = vmatprep.subr.mxu0 0.0
        %1481 = vmatpush1.msra.mxu0 0.0
        %1482 = vmatprep.subr.mxu0 0.0
        %1483 = vmatpush1.msra.mxu0 0.0
        %1484 = vmatprep.subr.mxu0 0.0
        %1485 = vmatpush1.msra.mxu0 0.0
        %1486 = vmatprep.subr.mxu0 0.0
        %1487 = vmatpush1.msra.mxu0 0.0
        %1488 = vmatprep.subr.mxu0 0.0
        %1489 = vmatpush1.msra.mxu0 0.0
        %1490 = vmatprep.subr.mxu0 0.0
        %1491 = vmatpush1.msra.mxu0 0.0
        %1492 = vmatprep.subr.mxu0 0.0
        %1493 = vmatpush1.msra.mxu0 0.0
        %1494 = vmatprep.subr.mxu0 0.0
        %1495 = vmatpush1.msra.mxu0 0.0
        %1496 = vmatprep.subr.mxu0 0.0
        %1497 = vmatpush1.msra.mxu0 0.0
        %1498 = vmatprep.subr.mxu0 0.0
        %1499 = vmatpush1.msra.mxu0 0.0
        %1500 = vmatprep.subr.mxu0 0.0
        %1501 = vmatpush1.msra.mxu0 0.0
        %1502 = vmatprep.subr.mxu0 0.0
        %1503 = vmatpush1.msra.mxu0 0.0
        %1504 = vmatprep.subr.mxu0 0.0
        %1505 = vmatpush1.msra.mxu0 0.0
        %1506 = vmatprep.subr.mxu0 0.0
        %1507 = vmatpush1.msra.mxu0 0.0
        %1508 = vmatprep.subr.mxu0 0.0
        %1509 = vmatpush1.msra.mxu0 0.0
        %1510 = vmatprep.subr.mxu0 0.0
        %1511 = vmatpush1.msra.mxu0 0.0
        %1512 = vmatprep.mubr.f32.mxu0 0.0
        %1513 = vmatmul.mubr.f32.gmra.mrb[0].mxu0 %v1443
        %v1514 = vpop.f32.mrb[0].mxu0
        %v1515 = vadd.f32 0.0, %v1514
        %v1516 = vpop.f32.mrb[0].mxu0
        %1517 = vmatprep.mubr.f32.mxu0 0.0
        %1518 = vmatmul.mubr.f32.gmra.mrb[0].mxu0 %v1446
        %v1519 = vpop.f32.mrb[0].mxu0
        %v1520 = vadd.f32 0.0, %v1519
        %v1521 = vpop.f32.mrb[0].mxu0
        %1522 = vdwg.mxu0
        %v1524 = vsel %vm1353, %v1436, 0
        %v1527 = vsel %vm1353, %v1437, 0
        %1529 = vmatprep.subr.mxu0 0.0
        %1530 = vmatpush1.msra.mxu0 %v958
        %1531 = vmatprep.subr.mxu0 0.0
        %1532 = vmatpush1.msra.mxu0 %v963
        %1533 = vmatprep.subr.mxu0 0.0
        %1534 = vmatpush1.msra.mxu0 0.0
        %1535 = vmatprep.subr.mxu0 0.0
        %1536 = vmatpush1.msra.mxu0 0.0
        %1537 = vmatprep.subr.mxu0 0.0
        %1538 = vmatpush1.msra.mxu0 0.0
        %1539 = vmatprep.subr.mxu0 0.0
        %1540 = vmatpush1.msra.mxu0 0.0
        %1541 = vmatprep.subr.mxu0 0.0
        %1542 = vmatpush1.msra.mxu0 0.0
        %1543 = vmatprep.subr.mxu0 0.0
        %1544 = vmatpush1.msra.mxu0 0.0
        %1545 = vmatprep.subr.mxu0 0.0
        %1546 = vmatpush1.msra.mxu0 0.0
        %1547 = vmatprep.subr.mxu0 0.0
        %1548 = vmatpush1.msra.mxu0 0.0
        %1549 = vmatprep.subr.mxu0 0.0
        %1550 = vmatpush1.msra.mxu0 0.0
        %1551 = vmatprep.subr.mxu0 0.0
        %1552 = vmatpush1.msra.mxu0 0.0
        %1553 = vmatprep.subr.mxu0 0.0
        %1554 = vmatpush1.msra.mxu0 0.0
        %1555 = vmatprep.subr.mxu0 0.0
        %1556 = vmatpush1.msra.mxu0 0.0
        %1557 = vmatprep.subr.mxu0 0.0
        %1558 = vmatpush1.msra.mxu0 0.0
        %1559 = vmatprep.subr.mxu0 0.0
        %1560 = vmatpush1.msra.mxu0 0.0
        %1561 = vmatprep.subr.mxu0 0.0
        %1562 = vmatpush1.msra.mxu0 0.0
        %1563 = vmatprep.subr.mxu0 0.0
        %1564 = vmatpush1.msra.mxu0 0.0
        %1565 = vmatprep.subr.mxu0 0.0
        %1566 = vmatpush1.msra.mxu0 0.0
        %1567 = vmatprep.subr.mxu0 0.0
        %1568 = vmatpush1.msra.mxu0 0.0
        %1569 = vmatprep.subr.mxu0 0.0
        %1570 = vmatpush1.msra.mxu0 0.0
        %1571 = vmatprep.subr.mxu0 0.0
        %1572 = vmatpush1.msra.mxu0 0.0
        %1573 = vmatprep.subr.mxu0 0.0
        %1574 = vmatpush1.msra.mxu0 0.0
        %1575 = vmatprep.subr.mxu0 0.0
        %1576 = vmatpush1.msra.mxu0 0.0
        %1577 = vmatprep.subr.mxu0 0.0
        %1578 = vmatpush1.msra.mxu0 0.0
        %1579 = vmatprep.subr.mxu0 0.0
        %1580 = vmatpush1.msra.mxu0 0.0
        %1581 = vmatprep.subr.mxu0 0.0
        %1582 = vmatpush1.msra.mxu0 0.0
        %1583 = vmatprep.subr.mxu0 0.0
        %1584 = vmatpush1.msra.mxu0 0.0
        %1585 = vmatprep.subr.mxu0 0.0
        %1586 = vmatpush1.msra.mxu0 0.0
        %1587 = vmatprep.subr.mxu0 0.0
        %1588 = vmatpush1.msra.mxu0 0.0
        %1589 = vmatprep.subr.mxu0 0.0
        %1590 = vmatpush1.msra.mxu0 0.0
        %1591 = vmatprep.subr.mxu0 0.0
        %1592 = vmatpush1.msra.mxu0 0.0
        %1593 = vmatprep.mubr.f32.mxu0 0.0
        %1594 = vmatmul.mubr.f32.gmra.mrb[0].mxu0 %v1524
        %v1595 = vpop.f32.mrb[0].mxu0
        %v1596 = vadd.f32 0.0, %v1595
        %v1597 = vpop.f32.mrb[0].mxu0
        %1598 = vmatprep.mubr.f32.mxu0 0.0
        %1599 = vmatmul.mubr.f32.gmra.mrb[0].mxu0 %v1527
        %v1600 = vpop.f32.mrb[0].mxu0
        %v1601 = vadd.f32 0.0, %v1600
        %v1602 = vpop.f32.mrb[0].mxu0
        %1603 = vdwg.mxu0
        %v1605 = vsel %vm1353, %v1438, 0
        %v1608 = vsel %vm1353, %v1439, 0
        %1610 = vmatprep.subr.mxu0 0.0
        %1611 = vmatpush1.msra.mxu0 %v968
        %1612 = vmatprep.subr.mxu0 0.0
        %1613 = vmatpush1.msra.mxu0 %v973
        %1614 = vmatprep.subr.mxu0 0.0
        %1615 = vmatpush1.msra.mxu0 0.0
        %1616 = vmatprep.subr.mxu0 0.0
        %1617 = vmatpush1.msra.mxu0 0.0
        %1618 = vmatprep.subr.mxu0 0.0
        %1619 = vmatpush1.msra.mxu0 0.0
        %1620 = vmatprep.subr.mxu0 0.0
        %1621 = vmatpush1.msra.mxu0 0.0
        %1622 = vmatprep.subr.mxu0 0.0
        %1623 = vmatpush1.msra.mxu0 0.0
        %1624 = vmatprep.subr.mxu0 0.0
        %1625 = vmatpush1.msra.mxu0 0.0
        %1626 = vmatprep.subr.mxu0 0.0
        %1627 = vmatpush1.msra.mxu0 0.0
        %1628 = vmatprep.subr.mxu0 0.0
        %1629 = vmatpush1.msra.mxu0 0.0
        %1630 = vmatprep.subr.mxu0 0.0
        %1631 = vmatpush1.msra.mxu0 0.0
        %1632 = vmatprep.subr.mxu0 0.0
        %1633 = vmatpush1.msra.mxu0 0.0
        %1634 = vmatprep.subr.mxu0 0.0
        %1635 = vmatpush1.msra.mxu0 0.0
        %1636 = vmatprep.subr.mxu0 0.0
        %1637 = vmatpush1.msra.mxu0 0.0
        %1638 = vmatprep.subr.mxu0 0.0
        %1639 = vmatpush1.msra.mxu0 0.0
        %1640 = vmatprep.subr.mxu0 0.0
        %1641 = vmatpush1.msra.mxu0 0.0
        %1642 = vmatprep.subr.mxu0 0.0
        %1643 = vmatpush1.msra.mxu0 0.0
        %1644 = vmatprep.subr.mxu0 0.0
        %1645 = vmatpush1.msra.mxu0 0.0
        %1646 = vmatprep.subr.mxu0 0.0
        %1647 = vmatpush1.msra.mxu0 0.0
        %1648 = vmatprep.subr.mxu0 0.0
        %1649 = vmatpush1.msra.mxu0 0.0
        %1650 = vmatprep.subr.mxu0 0.0
        %1651 = vmatpush1.msra.mxu0 0.0
        %1652 = vmatprep.subr.mxu0 0.0
        %1653 = vmatpush1.msra.mxu0 0.0
        %1654 = vmatprep.subr.mxu0 0.0
        %1655 = vmatpush1.msra.mxu0 0.0
        %1656 = vmatprep.subr.mxu0 0.0
        %1657 = vmatpush1.msra.mxu0 0.0
        %1658 = vmatprep.subr.mxu0 0.0
        %1659 = vmatpush1.msra.mxu0 0.0
        %1660 = vmatprep.subr.mxu0 0.0
        %1661 = vmatpush1.msra.mxu0 0.0
        %1662 = vmatprep.subr.mxu0 0.0
        %1663 = vmatpush1.msra.mxu0 0.0
        %1664 = vmatprep.subr.mxu0 0.0
        %1665 = vmatpush1.msra.mxu0 0.0
        %1666 = vmatprep.subr.mxu0 0.0
        %1667 = vmatpush1.msra.mxu0 0.0
        %1668 = vmatprep.subr.mxu0 0.0
        %1669 = vmatpush1.msra.mxu0 0.0
        %1670 = vmatprep.subr.mxu0 0.0
        %1671 = vmatpush1.msra.mxu0 0.0
        %1672 = vmatprep.subr.mxu0 0.0
        %1673 = vmatpush1.msra.mxu0 0.0
        %1674 = vmatprep.mubr.f32.mxu0 0.0
        %1675 = vmatmul.mubr.f32.gmra.mrb[0].mxu0 %v1605
        %v1676 = vpop.f32.mrb[0].mxu0
        %v1677 = vadd.f32 0.0, %v1676
        %v1678 = vpop.f32.mrb[0].mxu0
        %1679 = vmatprep.mubr.f32.mxu0 0.0
        %1680 = vmatmul.mubr.f32.gmra.mrb[0].mxu0 %v1608
        %v1681 = vpop.f32.mrb[0].mxu0
        %v1682 = vadd.f32 0.0, %v1681
        %v1683 = vpop.f32.mrb[0].mxu0
        %1684 = vdwg.mxu0
        %v1686 = vsel %vm1353, %v1440, 0
        %v1689 = vsel %vm1353, %v1441, 0
        %1691 = vmatprep.subr.mxu0 0.0
        %1692 = vmatpush1.msra.mxu0 %v978
        %1693 = vmatprep.subr.mxu0 0.0
        %1694 = vmatpush1.msra.mxu0 %v983
        %1695 = vmatprep.subr.mxu0 0.0
        %1696 = vmatpush1.msra.mxu0 0.0
        %1697 = vmatprep.subr.mxu0 0.0
        %1698 = vmatpush1.msra.mxu0 0.0
        %1699 = vmatprep.subr.mxu0 0.0
        %1700 = vmatpush1.msra.mxu0 0.0
        %1701 = vmatprep.subr.mxu0 0.0
        %1702 = vmatpush1.msra.mxu0 0.0
        %1703 = vmatprep.subr.mxu0 0.0
        %1704 = vmatpush1.msra.mxu0 0.0
        %1705 = vmatprep.subr.mxu0 0.0
        %1706 = vmatpush1.msra.mxu0 0.0
        %1707 = vmatprep.subr.mxu0 0.0
        %1708 = vmatpush1.msra.mxu0 0.0
        %1709 = vmatprep.subr.mxu0 0.0
        %1710 = vmatpush1.msra.mxu0 0.0
        %1711 = vmatprep.subr.mxu0 0.0
        %1712 = vmatpush1.msra.mxu0 0.0
        %1713 = vmatprep.subr.mxu0 0.0
        %1714 = vmatpush1.msra.mxu0 0.0
        %1715 = vmatprep.subr.mxu0 0.0
        %1716 = vmatpush1.msra.mxu0 0.0
        %1717 = vmatprep.subr.mxu0 0.0
        %1718 = vmatpush1.msra.mxu0 0.0
        %1719 = vmatprep.subr.mxu0 0.0
        %1720 = vmatpush1.msra.mxu0 0.0
        %1721 = vmatprep.subr.mxu0 0.0
        %1722 = vmatpush1.msra.mxu0 0.0
        %1723 = vmatprep.subr.mxu0 0.0
        %1724 = vmatpush1.msra.mxu0 0.0
        %1725 = vmatprep.subr.mxu0 0.0
        %1726 = vmatpush1.msra.mxu0 0.0
        %1727 = vmatprep.subr.mxu0 0.0
        %1728 = vmatpush1.msra.mxu0 0.0
        %1729 = vmatprep.subr.mxu0 0.0
        %1730 = vmatpush1.msra.mxu0 0.0
        %1731 = vmatprep.subr.mxu0 0.0
        %1732 = vmatpush1.msra.mxu0 0.0
        %1733 = vmatprep.subr.mxu0 0.0
        %1734 = vmatpush1.msra.mxu0 0.0
        %1735 = vmatprep.subr.mxu0 0.0
        %1736 = vmatpush1.msra.mxu0 0.0
        %1737 = vmatprep.subr.mxu0 0.0
        %1738 = vmatpush1.msra.mxu0 0.0
        %1739 = vmatprep.subr.mxu0 0.0
        %1740 = vmatpush1.msra.mxu0 0.0
        %1741 = vmatprep.subr.mxu0 0.0
        %1742 = vmatpush1.msra.mxu0 0.0
        %1743 = vmatprep.subr.mxu0 0.0
        %1744 = vmatpush1.msra.mxu0 0.0
        %1745 = vmatprep.subr.mxu0 0.0
        %1746 = vmatpush1.msra.mxu0 0.0
        %1747 = vmatprep.subr.mxu0 0.0
        %1748 = vmatpush1.msra.mxu0 0.0
        %1749 = vmatprep.subr.mxu0 0.0
        %1750 = vmatpush1.msra.mxu0 0.0
        %1751 = vmatprep.subr.mxu0 0.0
        %1752 = vmatpush1.msra.mxu0 0.0
        %1753 = vmatprep.subr.mxu0 0.0
        %1754 = vmatpush1.msra.mxu0 0.0
        %1755 = vmatprep.mubr.f32.mxu0 0.0
        %1756 = vmatmul.mubr.f32.gmra.mrb[0].mxu0 %v1686
        %v1757 = vpop.f32.mrb[0].mxu0
        %v1758 = vadd.f32 0.0, %v1757
        %v1759 = vpop.f32.mrb[0].mxu0
        %1760 = vmatprep.mubr.f32.mxu0 0.0
        %1761 = vmatmul.mubr.f32.gmra.mrb[0].mxu0 %v1689
        %v1762 = vpop.f32.mrb[0].mxu0
        %v1763 = vadd.f32 0.0, %v1762
        %v1764 = vpop.f32.mrb[0].mxu0
        %1765 = vdwg.mxu0
        %s1766 = scalar_lea.vmem [#allocation11], 16
        %v1767 = vld [vmem:[%s1766] sm:$0xff]
        %v1768 = vld [vmem:[%s1766 + $0x8] sm:$0xff]
        %v1769 = vadd.f32 %v1767, %v986
        %v1770 = vadd.f32 %v1768, %v987
        %v1771 = vadd.f32 %v1767, %v988
        %v1772 = vadd.f32 %v1768, %v989
        %v1773 = vadd.f32 %v1767, %v990
        %v1774 = vadd.f32 %v1768, %v991
        %v1775 = vadd.f32 %v1767, %v992
        %v1776 = vadd.f32 %v1768, %v993
        %1777 = vrot.lane.b32.xlu0 %v694, 120
        %v1778 = vpop.permute.xlu0 %1777
        %1779 = vrot.lane.b32.xlu0 %v695, 120
        %v1780 = vpop.permute.xlu0 %1779
        %1781 = vrot.lane.b32.xlu0 %v806, 120
        %v1782 = vpop.permute.xlu0 %1781
        %1783 = vrot.lane.b32.xlu0 %v811, 120
        %v1784 = vpop.permute.xlu0 %1783
        %v1785 = vsel %vm1004, %v1778, 0
        %v1787 = vsel %vm1004, %v1780, 0
        %v1789 = vsel %vm1004, %v1782, 0
        %v1791 = vsel %vm1004, %v1784, 0
        %1793 = vmatprep.subr.mxu0 0.0
        %1794 = vmatpush1.xpose.msra.mxu0 %v1789
        %1795 = vmatprep.subr.mxu0 0.0
        %1796 = vmatpush1.xpose.msra.mxu0 %v1791
        %1797 = vmatprep.subr.mxu0 0.0
        %1798 = vmatpush1.xpose.msra.mxu0 0.0
        %1799 = vmatprep.subr.mxu0 0.0
        %1800 = vmatpush1.xpose.msra.mxu0 0.0
        %1801 = vmatprep.subr.mxu0 0.0
        %1802 = vmatpush1.xpose.msra.mxu0 0.0
        %1803 = vmatprep.subr.mxu0 0.0
        %1804 = vmatpush1.xpose.msra.mxu0 0.0
        %1805 = vmatprep.subr.mxu0 0.0
        %1806 = vmatpush1.xpose.msra.mxu0 0.0
        %1807 = vmatprep.subr.mxu0 0.0
        %1808 = vmatpush1.xpose.msra.mxu0 0.0
        %1809 = vmatprep.subr.mxu0 0.0
        %1810 = vmatpush1.xpose.msra.mxu0 0.0
        %1811 = vmatprep.subr.mxu0 0.0
        %1812 = vmatpush1.xpose.msra.mxu0 0.0
        %1813 = vmatprep.subr.mxu0 0.0
        %1814 = vmatpush1.xpose.msra.mxu0 0.0
        %1815 = vmatprep.subr.mxu0 0.0
        %1816 = vmatpush1.xpose.msra.mxu0 0.0
        %1817 = vmatprep.subr.mxu0 0.0
        %1818 = vmatpush1.xpose.msra.mxu0 0.0
        %1819 = vmatprep.subr.mxu0 0.0
        %1820 = vmatpush1.xpose.msra.mxu0 0.0
        %1821 = vmatprep.subr.mxu0 0.0
        %1822 = vmatpush1.xpose.msra.mxu0 0.0
        %1823 = vmatprep.subr.mxu0 0.0
        %1824 = vmatpush1.xpose.msra.mxu0 0.0
        %1825 = vmatprep.subr.mxu0 0.0
        %1826 = vmatpush1.xpose.msra.mxu0 0.0
        %1827 = vmatprep.subr.mxu0 0.0
        %1828 = vmatpush1.xpose.msra.mxu0 0.0
        %1829 = vmatprep.subr.mxu0 0.0
        %1830 = vmatpush1.xpose.msra.mxu0 0.0
        %1831 = vmatprep.subr.mxu0 0.0
        %1832 = vmatpush1.xpose.msra.mxu0 0.0
        %1833 = vmatprep.subr.mxu0 0.0
        %1834 = vmatpush1.xpose.msra.mxu0 0.0
        %1835 = vmatprep.subr.mxu0 0.0
        %1836 = vmatpush1.xpose.msra.mxu0 0.0
        %1837 = vmatprep.subr.mxu0 0.0
        %1838 = vmatpush1.xpose.msra.mxu0 0.0
        %1839 = vmatprep.subr.mxu0 0.0
        %1840 = vmatpush1.xpose.msra.mxu0 0.0
        %1841 = vmatprep.subr.mxu0 0.0
        %1842 = vmatpush1.xpose.msra.mxu0 0.0
        %1843 = vmatprep.subr.mxu0 0.0
        %1844 = vmatpush1.xpose.msra.mxu0 0.0
        %1845 = vmatprep.subr.mxu0 0.0
        %1846 = vmatpush1.xpose.msra.mxu0 0.0
        %1847 = vmatprep.subr.mxu0 0.0
        %1848 = vmatpush1.xpose.msra.mxu0 0.0
        %1849 = vmatprep.subr.mxu0 0.0
        %1850 = vmatpush1.xpose.msra.mxu0 0.0
        %1851 = vmatprep.subr.mxu0 0.0
        %1852 = vmatpush1.xpose.msra.mxu0 0.0
        %1853 = vmatprep.subr.mxu0 0.0
        %1854 = vmatpush1.xpose.msra.mxu0 0.0
        %1855 = vmatprep.subr.mxu0 0.0
        %1856 = vmatpush1.xpose.msra.mxu0 0.0
        %1857 = vmatprep.mubr.f32.mxu0 0.0
        %1858 = vmatmul.mubr.f32.gmra.mrb[0].mxu0 %v1785
        %v1859 = vpop.f32.mrb[0].mxu0
        %v1860 = vadd.f32 %v1769, %v1859
        %v1861 = vpop.f32.mrb[0].mxu0
        %1862 = vmatprep.mubr.f32.mxu0 0.0
        %1863 = vmatmul.mubr.f32.gmra.mrb[0].mxu0 %v1787
        %v1864 = vpop.f32.mrb[0].mxu0
        %v1865 = vadd.f32 %v1770, %v1864
        %v1866 = vpop.f32.mrb[0].mxu0
        %1867 = vdwg.mxu0
        %1868 = vrot.lane.b32.xlu0 %v696, 120
        %v1869 = vpop.permute.xlu0 %1868
        %1870 = vrot.lane.b32.xlu0 %v697, 120
        %v1871 = vpop.permute.xlu0 %1870
        %1872 = vrot.lane.b32.xlu0 %v816, 120
        %v1873 = vpop.permute.xlu0 %1872
        %1874 = vrot.lane.b32.xlu0 %v821, 120
        %v1875 = vpop.permute.xlu0 %1874
        %v1876 = vsel %vm1004, %v1869, 0
        %v1878 = vsel %vm1004, %v1871, 0
        %v1880 = vsel %vm1004, %v1873, 0
        %v1882 = vsel %vm1004, %v1875, 0
        %1884 = vmatprep.subr.mxu0 0.0
        %1885 = vmatpush1.xpose.msra.mxu0 %v1880
        %1886 = vmatprep.subr.mxu0 0.0
        %1887 = vmatpush1.xpose.msra.mxu0 %v1882
        %1888 = vmatprep.subr.mxu0 0.0
        %1889 = vmatpush1.xpose.msra.mxu0 0.0
        %1890 = vmatprep.subr.mxu0 0.0
        %1891 = vmatpush1.xpose.msra.mxu0 0.0
        %1892 = vmatprep.subr.mxu0 0.0
        %1893 = vmatpush1.xpose.msra.mxu0 0.0
        %1894 = vmatprep.subr.mxu0 0.0
        %1895 = vmatpush1.xpose.msra.mxu0 0.0
        %1896 = vmatprep.subr.mxu0 0.0
        %1897 = vmatpush1.xpose.msra.mxu0 0.0
        %1898 = vmatprep.subr.mxu0 0.0
        %1899 = vmatpush1.xpose.msra.mxu0 0.0
        %1900 = vmatprep.subr.mxu0 0.0
        %1901 = vmatpush1.xpose.msra.mxu0 0.0
        %1902 = vmatprep.subr.mxu0 0.0
        %1903 = vmatpush1.xpose.msra.mxu0 0.0
        %1904 = vmatprep.subr.mxu0 0.0
        %1905 = vmatpush1.xpose.msra.mxu0 0.0
        %1906 = vmatprep.subr.mxu0 0.0
        %1907 = vmatpush1.xpose.msra.mxu0 0.0
        %1908 = vmatprep.subr.mxu0 0.0
        %1909 = vmatpush1.xpose.msra.mxu0 0.0
        %1910 = vmatprep.subr.mxu0 0.0
        %1911 = vmatpush1.xpose.msra.mxu0 0.0
        %1912 = vmatprep.subr.mxu0 0.0
        %1913 = vmatpush1.xpose.msra.mxu0 0.0
        %1914 = vmatprep.subr.mxu0 0.0
        %1915 = vmatpush1.xpose.msra.mxu0 0.0
        %1916 = vmatprep.subr.mxu0 0.0
        %1917 = vmatpush1.xpose.msra.mxu0 0.0
        %1918 = vmatprep.subr.mxu0 0.0
        %1919 = vmatpush1.xpose.msra.mxu0 0.0
        %1920 = vmatprep.subr.mxu0 0.0
        %1921 = vmatpush1.xpose.msra.mxu0 0.0
        %1922 = vmatprep.subr.mxu0 0.0
        %1923 = vmatpush1.xpose.msra.mxu0 0.0
        %1924 = vmatprep.subr.mxu0 0.0
        %1925 = vmatpush1.xpose.msra.mxu0 0.0
        %1926 = vmatprep.subr.mxu0 0.0
        %1927 = vmatpush1.xpose.msra.mxu0 0.0
        %1928 = vmatprep.subr.mxu0 0.0
        %1929 = vmatpush1.xpose.msra.mxu0 0.0
        %1930 = vmatprep.subr.mxu0 0.0
        %1931 = vmatpush1.xpose.msra.mxu0 0.0
        %1932 = vmatprep.subr.mxu0 0.0
        %1933 = vmatpush1.xpose.msra.mxu0 0.0
        %1934 = vmatprep.subr.mxu0 0.0
        %1935 = vmatpush1.xpose.msra.mxu0 0.0
        %1936 = vmatprep.subr.mxu0 0.0
        %1937 = vmatpush1.xpose.msra.mxu0 0.0
        %1938 = vmatprep.subr.mxu0 0.0
        %1939 = vmatpush1.xpose.msra.mxu0 0.0
        %1940 = vmatprep.subr.mxu0 0.0
        %1941 = vmatpush1.xpose.msra.mxu0 0.0
        %1942 = vmatprep.subr.mxu0 0.0
        %1943 = vmatpush1.xpose.msra.mxu0 0.0
        %1944 = vmatprep.subr.mxu0 0.0
        %1945 = vmatpush1.xpose.msra.mxu0 0.0
        %1946 = vmatprep.subr.mxu0 0.0
        %1947 = vmatpush1.xpose.msra.mxu0 0.0
        %1948 = vmatprep.mubr.f32.mxu0 0.0
        %1949 = vmatmul.mubr.f32.gmra.mrb[0].mxu0 %v1876
        %v1950 = vpop.f32.mrb[0].mxu0
        %v1951 = vadd.f32 %v1771, %v1950
        %v1952 = vpop.f32.mrb[0].mxu0
        %1953 = vmatprep.mubr.f32.mxu0 0.0
        %1954 = vmatmul.mubr.f32.gmra.mrb[0].mxu0 %v1878
        %v1955 = vpop.f32.mrb[0].mxu0
        %v1956 = vadd.f32 %v1772, %v1955
        %v1957 = vpop.f32.mrb[0].mxu0
        %1958 = vdwg.mxu0
        %1959 = vrot.lane.b32.xlu0 %v698, 120
        %v1960 = vpop.permute.xlu0 %1959
        %1961 = vrot.lane.b32.xlu0 %v699, 120
        %v1962 = vpop.permute.xlu0 %1961
        %1963 = vrot.lane.b32.xlu0 %v826, 120
        %v1964 = vpop.permute.xlu0 %1963
        %1965 = vrot.lane.b32.xlu0 %v831, 120
        %v1966 = vpop.permute.xlu0 %1965
        %v1967 = vsel %vm1004, %v1960, 0
        %v1969 = vsel %vm1004, %v1962, 0
        %v1971 = vsel %vm1004, %v1964, 0
        %v1973 = vsel %vm1004, %v1966, 0
        %1975 = vmatprep.subr.mxu0 0.0
        %1976 = vmatpush1.xpose.msra.mxu0 %v1971
        %1977 = vmatprep.subr.mxu0 0.0
        %1978 = vmatpush1.xpose.msra.mxu0 %v1973
        %1979 = vmatprep.subr.mxu0 0.0
        %1980 = vmatpush1.xpose.msra.mxu0 0.0
        %1981 = vmatprep.subr.mxu0 0.0
        %1982 = vmatpush1.xpose.msra.mxu0 0.0
        %1983 = vmatprep.subr.mxu0 0.0
        %1984 = vmatpush1.xpose.msra.mxu0 0.0
        %1985 = vmatprep.subr.mxu0 0.0
        %1986 = vmatpush1.xpose.msra.mxu0 0.0
        %1987 = vmatprep.subr.mxu0 0.0
        %1988 = vmatpush1.xpose.msra.mxu0 0.0
        %1989 = vmatprep.subr.mxu0 0.0
        %1990 = vmatpush1.xpose.msra.mxu0 0.0
        %1991 = vmatprep.subr.mxu0 0.0
        %1992 = vmatpush1.xpose.msra.mxu0 0.0
        %1993 = vmatprep.subr.mxu0 0.0
        %1994 = vmatpush1.xpose.msra.mxu0 0.0
        %1995 = vmatprep.subr.mxu0 0.0
        %1996 = vmatpush1.xpose.msra.mxu0 0.0
        %1997 = vmatprep.subr.mxu0 0.0
        %1998 = vmatpush1.xpose.msra.mxu0 0.0
        %1999 = vmatprep.subr.mxu0 0.0
        %2000 = vmatpush1.xpose.msra.mxu0 0.0
        %2001 = vmatprep.subr.mxu0 0.0
        %2002 = vmatpush1.xpose.msra.mxu0 0.0
        %2003 = vmatprep.subr.mxu0 0.0
        %2004 = vmatpush1.xpose.msra.mxu0 0.0
        %2005 = vmatprep.subr.mxu0 0.0
        %2006 = vmatpush1.xpose.msra.mxu0 0.0
        %2007 = vmatprep.subr.mxu0 0.0
        %2008 = vmatpush1.xpose.msra.mxu0 0.0
        %2009 = vmatprep.subr.mxu0 0.0
        %2010 = vmatpush1.xpose.msra.mxu0 0.0
        %2011 = vmatprep.subr.mxu0 0.0
        %2012 = vmatpush1.xpose.msra.mxu0 0.0
        %2013 = vmatprep.subr.mxu0 0.0
        %2014 = vmatpush1.xpose.msra.mxu0 0.0
        %2015 = vmatprep.subr.mxu0 0.0
        %2016 = vmatpush1.xpose.msra.mxu0 0.0
        %2017 = vmatprep.subr.mxu0 0.0
        %2018 = vmatpush1.xpose.msra.mxu0 0.0
        %2019 = vmatprep.subr.mxu0 0.0
        %2020 = vmatpush1.xpose.msra.mxu0 0.0
        %2021 = vmatprep.subr.mxu0 0.0
        %2022 = vmatpush1.xpose.msra.mxu0 0.0
        %2023 = vmatprep.subr.mxu0 0.0
        %2024 = vmatpush1.xpose.msra.mxu0 0.0
        %2025 = vmatprep.subr.mxu0 0.0
        %2026 = vmatpush1.xpose.msra.mxu0 0.0
        %2027 = vmatprep.subr.mxu0 0.0
        %2028 = vmatpush1.xpose.msra.mxu0 0.0
        %2029 = vmatprep.subr.mxu0 0.0
        %2030 = vmatpush1.xpose.msra.mxu0 0.0
        %2031 = vmatprep.subr.mxu0 0.0
        %2032 = vmatpush1.xpose.msra.mxu0 0.0
        %2033 = vmatprep.subr.mxu0 0.0
        %2034 = vmatpush1.xpose.msra.mxu0 0.0
        %2035 = vmatprep.subr.mxu0 0.0
        %2036 = vmatpush1.xpose.msra.mxu0 0.0
        %2037 = vmatprep.subr.mxu0 0.0
        %2038 = vmatpush1.xpose.msra.mxu0 0.0
        %2039 = vmatprep.mubr.f32.mxu0 0.0
        %2040 = vmatmul.mubr.f32.gmra.mrb[0].mxu0 %v1967
        %v2041 = vpop.f32.mrb[0].mxu0
        %v2042 = vadd.f32 %v1773, %v2041
        %v2043 = vpop.f32.mrb[0].mxu0
        %2044 = vmatprep.mubr.f32.mxu0 0.0
        %2045 = vmatmul.mubr.f32.gmra.mrb[0].mxu0 %v1969
        %v2046 = vpop.f32.mrb[0].mxu0
        %v2047 = vadd.f32 %v1774, %v2046
        %v2048 = vpop.f32.mrb[0].mxu0
        %2049 = vdwg.mxu0
        %2050 = vrot.lane.b32.xlu0 %v700, 120
        %v2051 = vpop.permute.xlu0 %2050
        %2052 = vrot.lane.b32.xlu0 %v701, 120
        %v2053 = vpop.permute.xlu0 %2052
        %2054 = vrot.lane.b32.xlu0 %v836, 120
        %v2055 = vpop.permute.xlu0 %2054
        %2056 = vrot.lane.b32.xlu0 %v841, 120
        %v2057 = vpop.permute.xlu0 %2056
        %v2058 = vsel %vm1004, %v2051, 0
        %v2060 = vsel %vm1004, %v2053, 0
        %v2062 = vsel %vm1004, %v2055, 0
        %v2064 = vsel %vm1004, %v2057, 0
        %2066 = vmatprep.subr.mxu0 0.0
        %2067 = vmatpush1.xpose.msra.mxu0 %v2062
        %2068 = vmatprep.subr.mxu0 0.0
        %2069 = vmatpush1.xpose.msra.mxu0 %v2064
        %2070 = vmatprep.subr.mxu0 0.0
        %2071 = vmatpush1.xpose.msra.mxu0 0.0
        %2072 = vmatprep.subr.mxu0 0.0
        %2073 = vmatpush1.xpose.msra.mxu0 0.0
        %2074 = vmatprep.subr.mxu0 0.0
        %2075 = vmatpush1.xpose.msra.mxu0 0.0
        %2076 = vmatprep.subr.mxu0 0.0
        %2077 = vmatpush1.xpose.msra.mxu0 0.0
        %2078 = vmatprep.subr.mxu0 0.0
        %2079 = vmatpush1.xpose.msra.mxu0 0.0
        %2080 = vmatprep.subr.mxu0 0.0
        %2081 = vmatpush1.xpose.msra.mxu0 0.0
        %2082 = vmatprep.subr.mxu0 0.0
        %2083 = vmatpush1.xpose.msra.mxu0 0.0
        %2084 = vmatprep.subr.mxu0 0.0
        %2085 = vmatpush1.xpose.msra.mxu0 0.0
        %2086 = vmatprep.subr.mxu0 0.0
        %2087 = vmatpush1.xpose.msra.mxu0 0.0
        %2088 = vmatprep.subr.mxu0 0.0
        %2089 = vmatpush1.xpose.msra.mxu0 0.0
        %2090 = vmatprep.subr.mxu0 0.0
        %2091 = vmatpush1.xpose.msra.mxu0 0.0
        %2092 = vmatprep.subr.mxu0 0.0
        %2093 = vmatpush1.xpose.msra.mxu0 0.0
        %2094 = vmatprep.subr.mxu0 0.0
        %2095 = vmatpush1.xpose.msra.mxu0 0.0
        %2096 = vmatprep.subr.mxu0 0.0
        %2097 = vmatpush1.xpose.msra.mxu0 0.0
        %2098 = vmatprep.subr.mxu0 0.0
        %2099 = vmatpush1.xpose.msra.mxu0 0.0
        %2100 = vmatprep.subr.mxu0 0.0
        %2101 = vmatpush1.xpose.msra.mxu0 0.0
        %2102 = vmatprep.subr.mxu0 0.0
        %2103 = vmatpush1.xpose.msra.mxu0 0.0
        %2104 = vmatprep.subr.mxu0 0.0
        %2105 = vmatpush1.xpose.msra.mxu0 0.0
        %2106 = vmatprep.subr.mxu0 0.0
        %2107 = vmatpush1.xpose.msra.mxu0 0.0
        %2108 = vmatprep.subr.mxu0 0.0
        %2109 = vmatpush1.xpose.msra.mxu0 0.0
        %2110 = vmatprep.subr.mxu0 0.0
        %2111 = vmatpush1.xpose.msra.mxu0 0.0
        %2112 = vmatprep.subr.mxu0 0.0
        %2113 = vmatpush1.xpose.msra.mxu0 0.0
        %2114 = vmatprep.subr.mxu0 0.0
        %2115 = vmatpush1.xpose.msra.mxu0 0.0
        %2116 = vmatprep.subr.mxu0 0.0
        %2117 = vmatpush1.xpose.msra.mxu0 0.0
        %2118 = vmatprep.subr.mxu0 0.0
        %2119 = vmatpush1.xpose.msra.mxu0 0.0
        %2120 = vmatprep.subr.mxu0 0.0
        %2121 = vmatpush1.xpose.msra.mxu0 0.0
        %2122 = vmatprep.subr.mxu0 0.0
        %2123 = vmatpush1.xpose.msra.mxu0 0.0
        %2124 = vmatprep.subr.mxu0 0.0
        %2125 = vmatpush1.xpose.msra.mxu0 0.0
        %2126 = vmatprep.subr.mxu0 0.0
        %2127 = vmatpush1.xpose.msra.mxu0 0.0
        %2128 = vmatprep.subr.mxu0 0.0
        %2129 = vmatpush1.xpose.msra.mxu0 0.0
        %2130 = vmatprep.mubr.f32.mxu0 0.0
        %2131 = vmatmul.mubr.f32.gmra.mrb[0].mxu0 %v2058
        %v2132 = vpop.f32.mrb[0].mxu0
        %v2133 = vadd.f32 %v1775, %v2132
        %v2134 = vpop.f32.mrb[0].mxu0
        %2135 = vmatprep.mubr.f32.mxu0 0.0
        %2136 = vmatmul.mubr.f32.gmra.mrb[0].mxu0 %v2060
        %v2137 = vpop.f32.mrb[0].mxu0
        %v2138 = vadd.f32 %v1776, %v2137
        %v2139 = vpop.f32.mrb[0].mxu0
        %2140 = vdwg.mxu0
        %v2141 = vsel %vm1353, %v1860, -inf
        %2142 = vmax.xlane.f32.xlu0 %v2141
        %v2143 = vpop.xlane.xlu0 %2142
        %v2144 = vsel %vm1353, %v1865, -inf
        %2145 = vmax.xlane.f32.xlu0 %v2144
        %v2146 = vpop.xlane.xlu0 %2145
        %v2147 = vsel %vm1353, %v1951, -inf
        %2148 = vmax.xlane.f32.xlu0 %v2147
        %v2149 = vpop.xlane.xlu0 %2148
        %v2150 = vsel %vm1353, %v1956, -inf
        %2151 = vmax.xlane.f32.xlu0 %v2150
        %v2152 = vpop.xlane.xlu0 %2151
        %v2153 = vsel %vm1353, %v2042, -inf
        %2154 = vmax.xlane.f32.xlu0 %v2153
        %v2155 = vpop.xlane.xlu0 %2154
        %v2156 = vsel %vm1353, %v2047, -inf
        %2157 = vmax.xlane.f32.xlu0 %v2156
        %v2158 = vpop.xlane.xlu0 %2157
        %v2159 = vsel %vm1353, %v2133, -inf
        %2160 = vmax.xlane.f32.xlu0 %v2159
        %v2161 = vpop.xlane.xlu0 %2160
        %v2162 = vsel %vm1353, %v2138, -inf
        %2163 = vmax.xlane.f32.xlu0 %v2162
        %v2164 = vpop.xlane.xlu0 %2163
        %v2165 = vsub.f32 %v1860, %v2143
        %v2166 = vsub.f32 %v1865, %v2146
        %v2167 = vsub.f32 %v1951, %v2149
        %v2168 = vsub.f32 %v1956, %v2152
        %v2169 = vsub.f32 %v2042, %v2155
        %v2170 = vsub.f32 %v2047, %v2158
        %v2171 = vsub.f32 %v2133, %v2161
        %v2172 = vsub.f32 %v2138, %v2164
        %v2173 = vmul.f32 %v2165, 1.442695
        %v2174 = vpow.pop %v2173
        %v2175 = vmul.f32 %v2166, 1.442695
        %v2176 = vpow.pop %v2175
        %v2177 = vmul.f32 %v2167, 1.442695
        %v2178 = vpow.pop %v2177
        %v2179 = vmul.f32 %v2168, 1.442695
        %v2180 = vpow.pop %v2179
        %v2181 = vmul.f32 %v2169, 1.442695
        %v2182 = vpow.pop %v2181
        %v2183 = vmul.f32 %v2170, 1.442695
        %v2184 = vpow.pop %v2183
        %v2185 = vmul.f32 %v2171, 1.442695
        %v2186 = vpow.pop %v2185
        %v2187 = vmul.f32 %v2172, 1.442695
        %v2188 = vpow.pop %v2187
        %v2189 = vsel %vm1353, %v2174, 0.0
        %2190 = vadd.xlane.f32.xlu0 %v2189
        %v2191 = vpop.xlane.xlu0 %2190
        %v2192 = vsel %vm1353, %v2176, 0.0
        %2193 = vadd.xlane.f32.xlu0 %v2192
        %v2194 = vpop.xlane.xlu0 %2193
        %v2195 = vsel %vm1353, %v2178, 0.0
        %2196 = vadd.xlane.f32.xlu0 %v2195
        %v2197 = vpop.xlane.xlu0 %2196
        %v2198 = vsel %vm1353, %v2180, 0.0
        %2199 = vadd.xlane.f32.xlu0 %v2198
        %v2200 = vpop.xlane.xlu0 %2199
        %v2201 = vsel %vm1353, %v2182, 0.0
        %2202 = vadd.xlane.f32.xlu0 %v2201
        %v2203 = vpop.xlane.xlu0 %2202
        %v2204 = vsel %vm1353, %v2184, 0.0
        %2205 = vadd.xlane.f32.xlu0 %v2204
        %v2206 = vpop.xlane.xlu0 %2205
        %v2207 = vsel %vm1353, %v2186, 0.0
        %2208 = vadd.xlane.f32.xlu0 %v2207
        %v2209 = vpop.xlane.xlu0 %2208
        %v2210 = vsel %vm1353, %v2188, 0.0
        %2211 = vadd.xlane.f32.xlu0 %v2210
        %v2212 = vpop.xlane.xlu0 %2211
        %v2213 = vrcp.pop %v2191
        %v2214 = vrcp.pop %v2194
        %v2215 = vrcp.pop %v2197
        %v2216 = vrcp.pop %v2200
        %v2217 = vrcp.pop %v2203
        %v2218 = vrcp.pop %v2206
        %v2219 = vrcp.pop %v2209
        %v2220 = vrcp.pop %v2212
        %v2221 = vmul.f32 %v2174, %v2213
        %v2222 = vmul.f32 %v2176, %v2214
        %v2223 = vmul.f32 %v2178, %v2215
        %v2224 = vmul.f32 %v2180, %v2216
        %v2225 = vmul.f32 %v2182, %v2217
        %v2226 = vmul.f32 %v2184, %v2218
        %v2227 = vmul.f32 %v2186, %v2219
        %v2228 = vmul.f32 %v2188, %v2220
        %2231 = vrot.lane.b32.xlu0 %v948, 120
        %v2232 = vpop.permute.xlu0 %2231
        %2233 = vrot.lane.b32.xlu0 %v953, 120
        %v2234 = vpop.permute.xlu0 %2233
        %v2238 = vsel %vm1353, %v2221, 0
        %v2241 = vsel %vm1353, %v2222, 0
        %2243 = vmatprep.subr.mxu0 0.0
        %2244 = vmatpush1.msra.mxu0 %v2232
        %2245 = vmatprep.subr.mxu0 0.0
        %2246 = vmatpush1.msra.mxu0 %v2234
        %2247 = vmatprep.subr.mxu0 0.0
        %2248 = vmatpush1.msra.mxu0 0.0
        %2249 = vmatprep.subr.mxu0 0.0
        %2250 = vmatpush1.msra.mxu0 0.0
        %2251 = vmatprep.subr.mxu0 0.0
        %2252 = vmatpush1.msra.mxu0 0.0
        %2253 = vmatprep.subr.mxu0 0.0
        %2254 = vmatpush1.msra.mxu0 0.0
        %2255 = vmatprep.subr.mxu0 0.0
        %2256 = vmatpush1.msra.mxu0 0.0
        %2257 = vmatprep.subr.mxu0 0.0
        %2258 = vmatpush1.msra.mxu0 0.0
        %2259 = vmatprep.subr.mxu0 0.0
        %2260 = vmatpush1.msra.mxu0 0.0
        %2261 = vmatprep.subr.mxu0 0.0
        %2262 = vmatpush1.msra.mxu0 0.0
        %2263 = vmatprep.subr.mxu0 0.0
        %2264 = vmatpush1.msra.mxu0 0.0
        %2265 = vmatprep.subr.mxu0 0.0
        %2266 = vmatpush1.msra.mxu0 0.0
        %2267 = vmatprep.subr.mxu0 0.0
        %2268 = vmatpush1.msra.mxu0 0.0
        %2269 = vmatprep.subr.mxu0 0.0
        %2270 = vmatpush1.msra.mxu0 0.0
        %2271 = vmatprep.subr.mxu0 0.0
        %2272 = vmatpush1.msra.mxu0 0.0
        %2273 = vmatprep.subr.mxu0 0.0
        %2274 = vmatpush1.msra.mxu0 0.0
        %2275 = vmatprep.subr.mxu0 0.0
        %2276 = vmatpush1.msra.mxu0 0.0
        %2277 = vmatprep.subr.mxu0 0.0
        %2278 = vmatpush1.msra.mxu0 0.0
        %2279 = vmatprep.subr.mxu0 0.0
        %2280 = vmatpush1.msra.mxu0 0.0
        %2281 = vmatprep.subr.mxu0 0.0
        %2282 = vmatpush1.msra.mxu0 0.0
        %2283 = vmatprep.subr.mxu0 0.0
        %2284 = vmatpush1.msra.mxu0 0.0
        %2285 = vmatprep.subr.mxu0 0.0
        %2286 = vmatpush1.msra.mxu0 0.0
        %2287 = vmatprep.subr.mxu0 0.0
        %2288 = vmatpush1.msra.mxu0 0.0
        %2289 = vmatprep.subr.mxu0 0.0
        %2290 = vmatpush1.msra.mxu0 0.0
        %2291 = vmatprep.subr.mxu0 0.0
        %2292 = vmatpush1.msra.mxu0 0.0
        %2293 = vmatprep.subr.mxu0 0.0
        %2294 = vmatpush1.msra.mxu0 0.0
        %2295 = vmatprep.subr.mxu0 0.0
        %2296 = vmatpush1.msra.mxu0 0.0
        %2297 = vmatprep.subr.mxu0 0.0
        %2298 = vmatpush1.msra.mxu0 0.0
        %2299 = vmatprep.subr.mxu0 0.0
        %2300 = vmatpush1.msra.mxu0 0.0
        %2301 = vmatprep.subr.mxu0 0.0
        %2302 = vmatpush1.msra.mxu0 0.0
        %2303 = vmatprep.subr.mxu0 0.0
        %2304 = vmatpush1.msra.mxu0 0.0
        %2305 = vmatprep.subr.mxu0 0.0
        %2306 = vmatpush1.msra.mxu0 0.0
        %2307 = vmatprep.mubr.f32.mxu0 0.0
        %2308 = vmatmul.mubr.f32.gmra.mrb[0].mxu0 %v2238
        %v2309 = vpop.f32.mrb[0].mxu0
        %v2310 = vadd.f32 0.0, %v2309
        %v2311 = vpop.f32.mrb[0].mxu0
        %2312 = vmatprep.mubr.f32.mxu0 0.0
        %2313 = vmatmul.mubr.f32.gmra.mrb[0].mxu0 %v2241
        %v2314 = vpop.f32.mrb[0].mxu0
        %v2315 = vadd.f32 0.0, %v2314
        %v2316 = vpop.f32.mrb[0].mxu0
        %2317 = vdwg.mxu0
        %2320 = vrot.lane.b32.xlu0 %v958, 120
        %v2321 = vpop.permute.xlu0 %2320
        %2322 = vrot.lane.b32.xlu0 %v963, 120
        %v2323 = vpop.permute.xlu0 %2322
        %v2327 = vsel %vm1353, %v2223, 0
        %v2330 = vsel %vm1353, %v2224, 0
        %2332 = vmatprep.subr.mxu0 0.0
        %2333 = vmatpush1.msra.mxu0 %v2321
        %2334 = vmatprep.subr.mxu0 0.0
        %2335 = vmatpush1.msra.mxu0 %v2323
        %2336 = vmatprep.subr.mxu0 0.0
        %2337 = vmatpush1.msra.mxu0 0.0
        %2338 = vmatprep.subr.mxu0 0.0
        %2339 = vmatpush1.msra.mxu0 0.0
        %2340 = vmatprep.subr.mxu0 0.0
        %2341 = vmatpush1.msra.mxu0 0.0
        %2342 = vmatprep.subr.mxu0 0.0
        %2343 = vmatpush1.msra.mxu0 0.0
        %2344 = vmatprep.subr.mxu0 0.0
        %2345 = vmatpush1.msra.mxu0 0.0
        %2346 = vmatprep.subr.mxu0 0.0
        %2347 = vmatpush1.msra.mxu0 0.0
        %2348 = vmatprep.subr.mxu0 0.0
        %2349 = vmatpush1.msra.mxu0 0.0
        %2350 = vmatprep.subr.mxu0 0.0
        %2351 = vmatpush1.msra.mxu0 0.0
        %2352 = vmatprep.subr.mxu0 0.0
        %2353 = vmatpush1.msra.mxu0 0.0
        %2354 = vmatprep.subr.mxu0 0.0
        %2355 = vmatpush1.msra.mxu0 0.0
        %2356 = vmatprep.subr.mxu0 0.0
        %2357 = vmatpush1.msra.mxu0 0.0
        %2358 = vmatprep.subr.mxu0 0.0
        %2359 = vmatpush1.msra.mxu0 0.0
        %2360 = vmatprep.subr.mxu0 0.0
        %2361 = vmatpush1.msra.mxu0 0.0
        %2362 = vmatprep.subr.mxu0 0.0
        %2363 = vmatpush1.msra.mxu0 0.0
        %2364 = vmatprep.subr.mxu0 0.0
        %2365 = vmatpush1.msra.mxu0 0.0
        %2366 = vmatprep.subr.mxu0 0.0
        %2367 = vmatpush1.msra.mxu0 0.0
        %2368 = vmatprep.subr.mxu0 0.0
        %2369 = vmatpush1.msra.mxu0 0.0
        %2370 = vmatprep.subr.mxu0 0.0
        %2371 = vmatpush1.msra.mxu0 0.0
        %2372 = vmatprep.subr.mxu0 0.0
        %2373 = vmatpush1.msra.mxu0 0.0
        %2374 = vmatprep.subr.mxu0 0.0
        %2375 = vmatpush1.msra.mxu0 0.0
        %2376 = vmatprep.subr.mxu0 0.0
        %2377 = vmatpush1.msra.mxu0 0.0
        %2378 = vmatprep.subr.mxu0 0.0
        %2379 = vmatpush1.msra.mxu0 0.0
        %2380 = vmatprep.subr.mxu0 0.0
        %2381 = vmatpush1.msra.mxu0 0.0
        %2382 = vmatprep.subr.mxu0 0.0
        %2383 = vmatpush1.msra.mxu0 0.0
        %2384 = vmatprep.subr.mxu0 0.0
        %2385 = vmatpush1.msra.mxu0 0.0
        %2386 = vmatprep.subr.mxu0 0.0
        %2387 = vmatpush1.msra.mxu0 0.0
        %2388 = vmatprep.subr.mxu0 0.0
        %2389 = vmatpush1.msra.mxu0 0.0
        %2390 = vmatprep.subr.mxu0 0.0
        %2391 = vmatpush1.msra.mxu0 0.0
        %2392 = vmatprep.subr.mxu0 0.0
        %2393 = vmatpush1.msra.mxu0 0.0
        %2394 = vmatprep.subr.mxu0 0.0
        %2395 = vmatpush1.msra.mxu0 0.0
        %2396 = vmatprep.mubr.f32.mxu0 0.0
        %2397 = vmatmul.mubr.f32.gmra.mrb[0].mxu0 %v2327
        %v2398 = vpop.f32.mrb[0].mxu0
        %v2399 = vadd.f32 0.0, %v2398
        %v2400 = vpop.f32.mrb[0].mxu0
        %2401 = vmatprep.mubr.f32.mxu0 0.0
        %2402 = vmatmul.mubr.f32.gmra.mrb[0].mxu0 %v2330
        %v2403 = vpop.f32.mrb[0].mxu0
        %v2404 = vadd.f32 0.0, %v2403
        %v2405 = vpop.f32.mrb[0].mxu0
        %2406 = vdwg.mxu0
        %2409 = vrot.lane.b32.xlu0 %v968, 120
        %v2410 = vpop.permute.xlu0 %2409
        %2411 = vrot.lane.b32.xlu0 %v973, 120
        %v2412 = vpop.permute.xlu0 %2411
        %v2416 = vsel %vm1353, %v2225, 0
        %v2419 = vsel %vm1353, %v2226, 0
        %2421 = vmatprep.subr.mxu0 0.0
        %2422 = vmatpush1.msra.mxu0 %v2410
        %2423 = vmatprep.subr.mxu0 0.0
        %2424 = vmatpush1.msra.mxu0 %v2412
        %2425 = vmatprep.subr.mxu0 0.0
        %2426 = vmatpush1.msra.mxu0 0.0
        %2427 = vmatprep.subr.mxu0 0.0
        %2428 = vmatpush1.msra.mxu0 0.0
        %2429 = vmatprep.subr.mxu0 0.0
        %2430 = vmatpush1.msra.mxu0 0.0
        %2431 = vmatprep.subr.mxu0 0.0
        %2432 = vmatpush1.msra.mxu0 0.0
        %2433 = vmatprep.subr.mxu0 0.0
        %2434 = vmatpush1.msra.mxu0 0.0
        %2435 = vmatprep.subr.mxu0 0.0
        %2436 = vmatpush1.msra.mxu0 0.0
        %2437 = vmatprep.subr.mxu0 0.0
        %2438 = vmatpush1.msra.mxu0 0.0
        %2439 = vmatprep.subr.mxu0 0.0
        %2440 = vmatpush1.msra.mxu0 0.0
        %2441 = vmatprep.subr.mxu0 0.0
        %2442 = vmatpush1.msra.mxu0 0.0
        %2443 = vmatprep.subr.mxu0 0.0
        %2444 = vmatpush1.msra.mxu0 0.0
        %2445 = vmatprep.subr.mxu0 0.0
        %2446 = vmatpush1.msra.mxu0 0.0
        %2447 = vmatprep.subr.mxu0 0.0
        %2448 = vmatpush1.msra.mxu0 0.0
        %2449 = vmatprep.subr.mxu0 0.0
        %2450 = vmatpush1.msra.mxu0 0.0
        %2451 = vmatprep.subr.mxu0 0.0
        %2452 = vmatpush1.msra.mxu0 0.0
        %2453 = vmatprep.subr.mxu0 0.0
        %2454 = vmatpush1.msra.mxu0 0.0
        %2455 = vmatprep.subr.mxu0 0.0
        %2456 = vmatpush1.msra.mxu0 0.0
        %2457 = vmatprep.subr.mxu0 0.0
        %2458 = vmatpush1.msra.mxu0 0.0
        %2459 = vmatprep.subr.mxu0 0.0
        %2460 = vmatpush1.msra.mxu0 0.0
        %2461 = vmatprep.subr.mxu0 0.0
        %2462 = vmatpush1.msra.mxu0 0.0
        %2463 = vmatprep.subr.mxu0 0.0
        %2464 = vmatpush1.msra.mxu0 0.0
        %2465 = vmatprep.subr.mxu0 0.0
        %2466 = vmatpush1.msra.mxu0 0.0
        %2467 = vmatprep.subr.mxu0 0.0
        %2468 = vmatpush1.msra.mxu0 0.0
        %2469 = vmatprep.subr.mxu0 0.0
        %2470 = vmatpush1.msra.mxu0 0.0
        %2471 = vmatprep.subr.mxu0 0.0
        %2472 = vmatpush1.msra.mxu0 0.0
        %2473 = vmatprep.subr.mxu0 0.0
        %2474 = vmatpush1.msra.mxu0 0.0
        %2475 = vmatprep.subr.mxu0 0.0
        %2476 = vmatpush1.msra.mxu0 0.0
        %2477 = vmatprep.subr.mxu0 0.0
        %2478 = vmatpush1.msra.mxu0 0.0
        %2479 = vmatprep.subr.mxu0 0.0
        %2480 = vmatpush1.msra.mxu0 0.0
        %2481 = vmatprep.subr.mxu0 0.0
        %2482 = vmatpush1.msra.mxu0 0.0
        %2483 = vmatprep.subr.mxu0 0.0
        %2484 = vmatpush1.msra.mxu0 0.0
        %2485 = vmatprep.mubr.f32.mxu0 0.0
        %2486 = vmatmul.mubr.f32.gmra.mrb[0].mxu0 %v2416
        %v2487 = vpop.f32.mrb[0].mxu0
        %v2488 = vadd.f32 0.0, %v2487
        %v2489 = vpop.f32.mrb[0].mxu0
        %2490 = vmatprep.mubr.f32.mxu0 0.0
        %2491 = vmatmul.mubr.f32.gmra.mrb[0].mxu0 %v2419
        %v2492 = vpop.f32.mrb[0].mxu0
        %v2493 = vadd.f32 0.0, %v2492
        %v2494 = vpop.f32.mrb[0].mxu0
        %2495 = vdwg.mxu0
        %2498 = vrot.lane.b32.xlu0 %v978, 120
        %v2499 = vpop.permute.xlu0 %2498
        %2500 = vrot.lane.b32.xlu0 %v983, 120
        %v2501 = vpop.permute.xlu0 %2500
        %v2505 = vsel %vm1353, %v2227, 0
        %v2508 = vsel %vm1353, %v2228, 0
        %2510 = vmatprep.subr.mxu0 0.0
        %2511 = vmatpush1.msra.mxu0 %v2499
        %2512 = vmatprep.subr.mxu0 0.0
        %2513 = vmatpush1.msra.mxu0 %v2501
        %2514 = vmatprep.subr.mxu0 0.0
        %2515 = vmatpush1.msra.mxu0 0.0
        %2516 = vmatprep.subr.mxu0 0.0
        %2517 = vmatpush1.msra.mxu0 0.0
        %2518 = vmatprep.subr.mxu0 0.0
        %2519 = vmatpush1.msra.mxu0 0.0
        %2520 = vmatprep.subr.mxu0 0.0
        %2521 = vmatpush1.msra.mxu0 0.0
        %2522 = vmatprep.subr.mxu0 0.0
        %2523 = vmatpush1.msra.mxu0 0.0
        %2524 = vmatprep.subr.mxu0 0.0
        %2525 = vmatpush1.msra.mxu0 0.0
        %2526 = vmatprep.subr.mxu0 0.0
        %2527 = vmatpush1.msra.mxu0 0.0
        %2528 = vmatprep.subr.mxu0 0.0
        %2529 = vmatpush1.msra.mxu0 0.0
        %2530 = vmatprep.subr.mxu0 0.0
        %2531 = vmatpush1.msra.mxu0 0.0
        %2532 = vmatprep.subr.mxu0 0.0
        %2533 = vmatpush1.msra.mxu0 0.0
        %2534 = vmatprep.subr.mxu0 0.0
        %2535 = vmatpush1.msra.mxu0 0.0
        %2536 = vmatprep.subr.mxu0 0.0
        %2537 = vmatpush1.msra.mxu0 0.0
        %2538 = vmatprep.subr.mxu0 0.0
        %2539 = vmatpush1.msra.mxu0 0.0
        %2540 = vmatprep.subr.mxu0 0.0
        %2541 = vmatpush1.msra.mxu0 0.0
        %2542 = vmatprep.subr.mxu0 0.0
        %2543 = vmatpush1.msra.mxu0 0.0
        %2544 = vmatprep.subr.mxu0 0.0
        %2545 = vmatpush1.msra.mxu0 0.0
        %2546 = vmatprep.subr.mxu0 0.0
        %2547 = vmatpush1.msra.mxu0 0.0
        %2548 = vmatprep.subr.mxu0 0.0
        %2549 = vmatpush1.msra.mxu0 0.0
        %2550 = vmatprep.subr.mxu0 0.0
        %2551 = vmatpush1.msra.mxu0 0.0
        %2552 = vmatprep.subr.mxu0 0.0
        %2553 = vmatpush1.msra.mxu0 0.0
        %2554 = vmatprep.subr.mxu0 0.0
        %2555 = vmatpush1.msra.mxu0 0.0
        %2556 = vmatprep.subr.mxu0 0.0
        %2557 = vmatpush1.msra.mxu0 0.0
        %2558 = vmatprep.subr.mxu0 0.0
        %2559 = vmatpush1.msra.mxu0 0.0
        %2560 = vmatprep.subr.mxu0 0.0
        %2561 = vmatpush1.msra.mxu0 0.0
        %2562 = vmatprep.subr.mxu0 0.0
        %2563 = vmatpush1.msra.mxu0 0.0
        %2564 = vmatprep.subr.mxu0 0.0
        %2565 = vmatpush1.msra.mxu0 0.0
        %2566 = vmatprep.subr.mxu0 0.0
        %2567 = vmatpush1.msra.mxu0 0.0
        %2568 = vmatprep.subr.mxu0 0.0
        %2569 = vmatpush1.msra.mxu0 0.0
        %2570 = vmatprep.subr.mxu0 0.0
        %2571 = vmatpush1.msra.mxu0 0.0
        %2572 = vmatprep.subr.mxu0 0.0
        %2573 = vmatpush1.msra.mxu0 0.0
        %2574 = vmatprep.mubr.f32.mxu0 0.0
        %2575 = vmatmul.mubr.f32.gmra.mrb[0].mxu0 %v2505
        %v2576 = vpop.f32.mrb[0].mxu0
        %v2577 = vadd.f32 0.0, %v2576
        %v2578 = vpop.f32.mrb[0].mxu0
        %2579 = vmatprep.mubr.f32.mxu0 0.0
        %2580 = vmatmul.mubr.f32.gmra.mrb[0].mxu0 %v2508
        %v2581 = vpop.f32.mrb[0].mxu0
        %v2582 = vadd.f32 0.0, %v2581
        %v2583 = vpop.f32.mrb[0].mxu0
        %2584 = vdwg.mxu0
        %s2585 = scalar_lea.vmem [#allocation11], 32
        %v2586 = vld [vmem:[%s2585] sm:$0xff]
        %v2587 = vld [vmem:[%s2585 + $0x8] sm:$0xff]
        %v2588 = vadd.f32 %v2586, %v986
        %v2589 = vadd.f32 %v2587, %v987
        %v2590 = vadd.f32 %v2586, %v988
        %v2591 = vadd.f32 %v2587, %v989
        %v2592 = vadd.f32 %v2586, %v990
        %v2593 = vadd.f32 %v2587, %v991
        %v2594 = vadd.f32 %v2586, %v992
        %v2595 = vadd.f32 %v2587, %v993
        %2596 = vrot.lane.b32.xlu0 %v694, 112
        %v2597 = vpop.permute.xlu0 %2596
        %2598 = vrot.lane.b32.xlu0 %v695, 112
        %v2599 = vpop.permute.xlu0 %2598
        %2600 = vrot.lane.b32.xlu0 %v806, 112
        %v2601 = vpop.permute.xlu0 %2600
        %2602 = vrot.lane.b32.xlu0 %v811, 112
        %v2603 = vpop.permute.xlu0 %2602
        %v2604 = vsel %vm1004, %v2597, 0
        %v2606 = vsel %vm1004, %v2599, 0
        %v2608 = vsel %vm1004, %v2601, 0
        %v2610 = vsel %vm1004, %v2603, 0
        %2612 = vmatprep.subr.mxu0 0.0
        %2613 = vmatpush1.xpose.msra.mxu0 %v2608
        %2614 = vmatprep.subr.mxu0 0.0
        %2615 = vmatpush1.xpose.msra.mxu0 %v2610
        %2616 = vmatprep.subr.mxu0 0.0
        %2617 = vmatpush1.xpose.msra.mxu0 0.0
        %2618 = vmatprep.subr.mxu0 0.0
        %2619 = vmatpush1.xpose.msra.mxu0 0.0
        %2620 = vmatprep.subr.mxu0 0.0
        %2621 = vmatpush1.xpose.msra.mxu0 0.0
        %2622 = vmatprep.subr.mxu0 0.0
        %2623 = vmatpush1.xpose.msra.mxu0 0.0
        %2624 = vmatprep.subr.mxu0 0.0
        %2625 = vmatpush1.xpose.msra.mxu0 0.0
        %2626 = vmatprep.subr.mxu0 0.0
        %2627 = vmatpush1.xpose.msra.mxu0 0.0
        %2628 = vmatprep.subr.mxu0 0.0
        %2629 = vmatpush1.xpose.msra.mxu0 0.0
        %2630 = vmatprep.subr.mxu0 0.0
        %2631 = vmatpush1.xpose.msra.mxu0 0.0
        %2632 = vmatprep.subr.mxu0 0.0
        %2633 = vmatpush1.xpose.msra.mxu0 0.0
        %2634 = vmatprep.subr.mxu0 0.0
        %2635 = vmatpush1.xpose.msra.mxu0 0.0
        %2636 = vmatprep.subr.mxu0 0.0
        %2637 = vmatpush1.xpose.msra.mxu0 0.0
        %2638 = vmatprep.subr.mxu0 0.0
        %2639 = vmatpush1.xpose.msra.mxu0 0.0
        %2640 = vmatprep.subr.mxu0 0.0
        %2641 = vmatpush1.xpose.msra.mxu0 0.0
        %2642 = vmatprep.subr.mxu0 0.0
        %2643 = vmatpush1.xpose.msra.mxu0 0.0
        %2644 = vmatprep.subr.mxu0 0.0
        %2645 = vmatpush1.xpose.msra.mxu0 0.0
        %2646 = vmatprep.subr.mxu0 0.0
        %2647 = vmatpush1.xpose.msra.mxu0 0.0
        %2648 = vmatprep.subr.mxu0 0.0
        %2649 = vmatpush1.xpose.msra.mxu0 0.0
        %2650 = vmatprep.subr.mxu0 0.0
        %2651 = vmatpush1.xpose.msra.mxu0 0.0
        %2652 = vmatprep.subr.mxu0 0.0
        %2653 = vmatpush1.xpose.msra.mxu0 0.0
        %2654 = vmatprep.subr.mxu0 0.0
        %2655 = vmatpush1.xpose.msra.mxu0 0.0
        %2656 = vmatprep.subr.mxu0 0.0
        %2657 = vmatpush1.xpose.msra.mxu0 0.0
        %2658 = vmatprep.subr.mxu0 0.0
        %2659 = vmatpush1.xpose.msra.mxu0 0.0
        %2660 = vmatprep.subr.mxu0 0.0
        %2661 = vmatpush1.xpose.msra.mxu0 0.0
        %2662 = vmatprep.subr.mxu0 0.0
        %2663 = vmatpush1.xpose.msra.mxu0 0.0
        %2664 = vmatprep.subr.mxu0 0.0
        %2665 = vmatpush1.xpose.msra.mxu0 0.0
        %2666 = vmatprep.subr.mxu0 0.0
        %2667 = vmatpush1.xpose.msra.mxu0 0.0
        %2668 = vmatprep.subr.mxu0 0.0
        %2669 = vmatpush1.xpose.msra.mxu0 0.0
        %2670 = vmatprep.subr.mxu0 0.0
        %2671 = vmatpush1.xpose.msra.mxu0 0.0
        %2672 = vmatprep.subr.mxu0 0.0
        %2673 = vmatpush1.xpose.msra.mxu0 0.0
        %2674 = vmatprep.subr.mxu0 0.0
        %2675 = vmatpush1.xpose.msra.mxu0 0.0
        %2676 = vmatprep.mubr.f32.mxu0 0.0
        %2677 = vmatmul.mubr.f32.gmra.mrb[0].mxu0 %v2604
        %v2678 = vpop.f32.mrb[0].mxu0
        %v2679 = vadd.f32 %v2588, %v2678
        %v2680 = vpop.f32.mrb[0].mxu0
        %2681 = vmatprep.mubr.f32.mxu0 0.0
        %2682 = vmatmul.mubr.f32.gmra.mrb[0].mxu0 %v2606
        %v2683 = vpop.f32.mrb[0].mxu0
        %v2684 = vadd.f32 %v2589, %v2683
        %v2685 = vpop.f32.mrb[0].mxu0
        %2686 = vdwg.mxu0
        %2687 = vrot.lane.b32.xlu0 %v696, 112
        %v2688 = vpop.permute.xlu0 %2687
        %2689 = vrot.lane.b32.xlu0 %v697, 112
        %v2690 = vpop.permute.xlu0 %2689
        %2691 = vrot.lane.b32.xlu0 %v816, 112
        %v2692 = vpop.permute.xlu0 %2691
        %2693 = vrot.lane.b32.xlu0 %v821, 112
        %v2694 = vpop.permute.xlu0 %2693
        %v2695 = vsel %vm1004, %v2688, 0
        %v2697 = vsel %vm1004, %v2690, 0
        %v2699 = vsel %vm1004, %v2692, 0
        %v2701 = vsel %vm1004, %v2694, 0
        %2703 = vmatprep.subr.mxu0 0.0
        %2704 = vmatpush1.xpose.msra.mxu0 %v2699
        %2705 = vmatprep.subr.mxu0 0.0
        %2706 = vmatpush1.xpose.msra.mxu0 %v2701
        %2707 = vmatprep.subr.mxu0 0.0
        %2708 = vmatpush1.xpose.msra.mxu0 0.0
        %2709 = vmatprep.subr.mxu0 0.0
        %2710 = vmatpush1.xpose.msra.mxu0 0.0
        %2711 = vmatprep.subr.mxu0 0.0
        %2712 = vmatpush1.xpose.msra.mxu0 0.0
        %2713 = vmatprep.subr.mxu0 0.0
        %2714 = vmatpush1.xpose.msra.mxu0 0.0
        %2715 = vmatprep.subr.mxu0 0.0
        %2716 = vmatpush1.xpose.msra.mxu0 0.0
        %2717 = vmatprep.subr.mxu0 0.0
        %2718 = vmatpush1.xpose.msra.mxu0 0.0
        %2719 = vmatprep.subr.mxu0 0.0
        %2720 = vmatpush1.xpose.msra.mxu0 0.0
        %2721 = vmatprep.subr.mxu0 0.0
        %2722 = vmatpush1.xpose.msra.mxu0 0.0
        %2723 = vmatprep.subr.mxu0 0.0
        %2724 = vmatpush1.xpose.msra.mxu0 0.0
        %2725 = vmatprep.subr.mxu0 0.0
        %2726 = vmatpush1.xpose.msra.mxu0 0.0
        %2727 = vmatprep.subr.mxu0 0.0
        %2728 = vmatpush1.xpose.msra.mxu0 0.0
        %2729 = vmatprep.subr.mxu0 0.0
        %2730 = vmatpush1.xpose.msra.mxu0 0.0
        %2731 = vmatprep.subr.mxu0 0.0
        %2732 = vmatpush1.xpose.msra.mxu0 0.0
        %2733 = vmatprep.subr.mxu0 0.0
        %2734 = vmatpush1.xpose.msra.mxu0 0.0
        %2735 = vmatprep.subr.mxu0 0.0
        %2736 = vmatpush1.xpose.msra.mxu0 0.0
        %2737 = vmatprep.subr.mxu0 0.0
        %2738 = vmatpush1.xpose.msra.mxu0 0.0
        %2739 = vmatprep.subr.mxu0 0.0
        %2740 = vmatpush1.xpose.msra.mxu0 0.0
        %2741 = vmatprep.subr.mxu0 0.0
        %2742 = vmatpush1.xpose.msra.mxu0 0.0
        %2743 = vmatprep.subr.mxu0 0.0
        %2744 = vmatpush1.xpose.msra.mxu0 0.0
        %2745 = vmatprep.subr.mxu0 0.0
        %2746 = vmatpush1.xpose.msra.mxu0 0.0
        %2747 = vmatprep.subr.mxu0 0.0
        %2748 = vmatpush1.xpose.msra.mxu0 0.0
        %2749 = vmatprep.subr.mxu0 0.0
        %2750 = vmatpush1.xpose.msra.mxu0 0.0
        %2751 = vmatprep.subr.mxu0 0.0
        %2752 = vmatpush1.xpose.msra.mxu0 0.0
        %2753 = vmatprep.subr.mxu0 0.0
        %2754 = vmatpush1.xpose.msra.mxu0 0.0
        %2755 = vmatprep.subr.mxu0 0.0
        %2756 = vmatpush1.xpose.msra.mxu0 0.0
        %2757 = vmatprep.subr.mxu0 0.0
        %2758 = vmatpush1.xpose.msra.mxu0 0.0
        %2759 = vmatprep.subr.mxu0 0.0
        %2760 = vmatpush1.xpose.msra.mxu0 0.0
        %2761 = vmatprep.subr.mxu0 0.0
        %2762 = vmatpush1.xpose.msra.mxu0 0.0
        %2763 = vmatprep.subr.mxu0 0.0
        %2764 = vmatpush1.xpose.msra.mxu0 0.0
        %2765 = vmatprep.subr.mxu0 0.0
        %2766 = vmatpush1.xpose.msra.mxu0 0.0
        %2767 = vmatprep.mubr.f32.mxu0 0.0
        %2768 = vmatmul.mubr.f32.gmra.mrb[0].mxu0 %v2695
        %v2769 = vpop.f32.mrb[0].mxu0
        %v2770 = vadd.f32 %v2590, %v2769
        %v2771 = vpop.f32.mrb[0].mxu0
        %2772 = vmatprep.mubr.f32.mxu0 0.0
        %2773 = vmatmul.mubr.f32.gmra.mrb[0].mxu0 %v2697
        %v2774 = vpop.f32.mrb[0].mxu0
        %v2775 = vadd.f32 %v2591, %v2774
        %v2776 = vpop.f32.mrb[0].mxu0
        %2777 = vdwg.mxu0
        %2778 = vrot.lane.b32.xlu0 %v698, 112
        %v2779 = vpop.permute.xlu0 %2778
        %2780 = vrot.lane.b32.xlu0 %v699, 112
        %v2781 = vpop.permute.xlu0 %2780
        %2782 = vrot.lane.b32.xlu0 %v826, 112
        %v2783 = vpop.permute.xlu0 %2782
        %2784 = vrot.lane.b32.xlu0 %v831, 112
        %v2785 = vpop.permute.xlu0 %2784
        %v2786 = vsel %vm1004, %v2779, 0
        %v2788 = vsel %vm1004, %v2781, 0
        %v2790 = vsel %vm1004, %v2783, 0
        %v2792 = vsel %vm1004, %v2785, 0
        %2794 = vmatprep.subr.mxu0 0.0
        %2795 = vmatpush1.xpose.msra.mxu0 %v2790
        %2796 = vmatprep.subr.mxu0 0.0
        %2797 = vmatpush1.xpose.msra.mxu0 %v2792
        %2798 = vmatprep.subr.mxu0 0.0
        %2799 = vmatpush1.xpose.msra.mxu0 0.0
        %2800 = vmatprep.subr.mxu0 0.0
        %2801 = vmatpush1.xpose.msra.mxu0 0.0
        %2802 = vmatprep.subr.mxu0 0.0
        %2803 = vmatpush1.xpose.msra.mxu0 0.0
        %2804 = vmatprep.subr.mxu0 0.0
        %2805 = vmatpush1.xpose.msra.mxu0 0.0
        %2806 = vmatprep.subr.mxu0 0.0
        %2807 = vmatpush1.xpose.msra.mxu0 0.0
        %2808 = vmatprep.subr.mxu0 0.0
        %2809 = vmatpush1.xpose.msra.mxu0 0.0
        %2810 = vmatprep.subr.mxu0 0.0
        %2811 = vmatpush1.xpose.msra.mxu0 0.0
        %2812 = vmatprep.subr.mxu0 0.0
        %2813 = vmatpush1.xpose.msra.mxu0 0.0
        %2814 = vmatprep.subr.mxu0 0.0
        %2815 = vmatpush1.xpose.msra.mxu0 0.0
        %2816 = vmatprep.subr.mxu0 0.0
        %2817 = vmatpush1.xpose.msra.mxu0 0.0
        %2818 = vmatprep.subr.mxu0 0.0
        %2819 = vmatpush1.xpose.msra.mxu0 0.0
        %2820 = vmatprep.subr.mxu0 0.0
        %2821 = vmatpush1.xpose.msra.mxu0 0.0
        %2822 = vmatprep.subr.mxu0 0.0
        %2823 = vmatpush1.xpose.msra.mxu0 0.0
        %2824 = vmatprep.subr.mxu0 0.0
        %2825 = vmatpush1.xpose.msra.mxu0 0.0
        %2826 = vmatprep.subr.mxu0 0.0
        %2827 = vmatpush1.xpose.msra.mxu0 0.0
        %2828 = vmatprep.subr.mxu0 0.0
        %2829 = vmatpush1.xpose.msra.mxu0 0.0
        %2830 = vmatprep.subr.mxu0 0.0
        %2831 = vmatpush1.xpose.msra.mxu0 0.0
        %2832 = vmatprep.subr.mxu0 0.0
        %2833 = vmatpush1.xpose.msra.mxu0 0.0
        %2834 = vmatprep.subr.mxu0 0.0
        %2835 = vmatpush1.xpose.msra.mxu0 0.0
        %2836 = vmatprep.subr.mxu0 0.0
        %2837 = vmatpush1.xpose.msra.mxu0 0.0
        %2838 = vmatprep.subr.mxu0 0.0
        %2839 = vmatpush1.xpose.msra.mxu0 0.0
        %2840 = vmatprep.subr.mxu0 0.0
        %2841 = vmatpush1.xpose.msra.mxu0 0.0
        %2842 = vmatprep.subr.mxu0 0.0
        %2843 = vmatpush1.xpose.msra.mxu0 0.0
        %2844 = vmatprep.subr.mxu0 0.0
        %2845 = vmatpush1.xpose.msra.mxu0 0.0
        %2846 = vmatprep.subr.mxu0 0.0
        %2847 = vmatpush1.xpose.msra.mxu0 0.0
        %2848 = vmatprep.subr.mxu0 0.0
        %2849 = vmatpush1.xpose.msra.mxu0 0.0
        %2850 = vmatprep.subr.mxu0 0.0
        %2851 = vmatpush1.xpose.msra.mxu0 0.0
        %2852 = vmatprep.subr.mxu0 0.0
        %2853 = vmatpush1.xpose.msra.mxu0 0.0
        %2854 = vmatprep.subr.mxu0 0.0
        %2855 = vmatpush1.xpose.msra.mxu0 0.0
        %2856 = vmatprep.subr.mxu0 0.0
        %2857 = vmatpush1.xpose.msra.mxu0 0.0
        %2858 = vmatprep.mubr.f32.mxu0 0.0
        %2859 = vmatmul.mubr.f32.gmra.mrb[0].mxu0 %v2786
        %v2860 = vpop.f32.mrb[0].mxu0
        %v2861 = vadd.f32 %v2592, %v2860
        %v2862 = vpop.f32.mrb[0].mxu0
        %2863 = vmatprep.mubr.f32.mxu0 0.0
        %2864 = vmatmul.mubr.f32.gmra.mrb[0].mxu0 %v2788
        %v2865 = vpop.f32.mrb[0].mxu0
        %v2866 = vadd.f32 %v2593, %v2865
        %v2867 = vpop.f32.mrb[0].mxu0
        %2868 = vdwg.mxu0
        %2869 = vrot.lane.b32.xlu0 %v700, 112
        %v2870 = vpop.permute.xlu0 %2869
        %2871 = vrot.lane.b32.xlu0 %v701, 112
        %v2872 = vpop.permute.xlu0 %2871
        %2873 = vrot.lane.b32.xlu0 %v836, 112
        %v2874 = vpop.permute.xlu0 %2873
        %2875 = vrot.lane.b32.xlu0 %v841, 112
        %v2876 = vpop.permute.xlu0 %2875
        %v2877 = vsel %vm1004, %v2870, 0
        %v2879 = vsel %vm1004, %v2872, 0
        %v2881 = vsel %vm1004, %v2874, 0
        %v2883 = vsel %vm1004, %v2876, 0
        %2885 = vmatprep.subr.mxu0 0.0
        %2886 = vmatpush1.xpose.msra.mxu0 %v2881
        %2887 = vmatprep.subr.mxu0 0.0
        %2888 = vmatpush1.xpose.msra.mxu0 %v2883
        %2889 = vmatprep.subr.mxu0 0.0
        %2890 = vmatpush1.xpose.msra.mxu0 0.0
        %2891 = vmatprep.subr.mxu0 0.0
        %2892 = vmatpush1.xpose.msra.mxu0 0.0
        %2893 = vmatprep.subr.mxu0 0.0
        %2894 = vmatpush1.xpose.msra.mxu0 0.0
        %2895 = vmatprep.subr.mxu0 0.0
        %2896 = vmatpush1.xpose.msra.mxu0 0.0
        %2897 = vmatprep.subr.mxu0 0.0
        %2898 = vmatpush1.xpose.msra.mxu0 0.0
        %2899 = vmatprep.subr.mxu0 0.0
        %2900 = vmatpush1.xpose.msra.mxu0 0.0
        %2901 = vmatprep.subr.mxu0 0.0
        %2902 = vmatpush1.xpose.msra.mxu0 0.0
        %2903 = vmatprep.subr.mxu0 0.0
        %2904 = vmatpush1.xpose.msra.mxu0 0.0
        %2905 = vmatprep.subr.mxu0 0.0
        %2906 = vmatpush1.xpose.msra.mxu0 0.0
        %2907 = vmatprep.subr.mxu0 0.0
        %2908 = vmatpush1.xpose.msra.mxu0 0.0
        %2909 = vmatprep.subr.mxu0 0.0
        %2910 = vmatpush1.xpose.msra.mxu0 0.0
        %2911 = vmatprep.subr.mxu0 0.0
        %2912 = vmatpush1.xpose.msra.mxu0 0.0
        %2913 = vmatprep.subr.mxu0 0.0
        %2914 = vmatpush1.xpose.msra.mxu0 0.0
        %2915 = vmatprep.subr.mxu0 0.0
        %2916 = vmatpush1.xpose.msra.mxu0 0.0
        %2917 = vmatprep.subr.mxu0 0.0
        %2918 = vmatpush1.xpose.msra.mxu0 0.0
        %2919 = vmatprep.subr.mxu0 0.0
        %2920 = vmatpush1.xpose.msra.mxu0 0.0
        %2921 = vmatprep.subr.mxu0 0.0
        %2922 = vmatpush1.xpose.msra.mxu0 0.0
        %2923 = vmatprep.subr.mxu0 0.0
        %2924 = vmatpush1.xpose.msra.mxu0 0.0
        %2925 = vmatprep.subr.mxu0 0.0
        %2926 = vmatpush1.xpose.msra.mxu0 0.0
        %2927 = vmatprep.subr.mxu0 0.0
        %2928 = vmatpush1.xpose.msra.mxu0 0.0
        %2929 = vmatprep.subr.mxu0 0.0
        %2930 = vmatpush1.xpose.msra.mxu0 0.0
        %2931 = vmatprep.subr.mxu0 0.0
        %2932 = vmatpush1.xpose.msra.mxu0 0.0
        %2933 = vmatprep.subr.mxu0 0.0
        %2934 = vmatpush1.xpose.msra.mxu0 0.0
        %2935 = vmatprep.subr.mxu0 0.0
        %2936 = vmatpush1.xpose.msra.mxu0 0.0
        %2937 = vmatprep.subr.mxu0 0.0
        %2938 = vmatpush1.xpose.msra.mxu0 0.0
        %2939 = vmatprep.subr.mxu0 0.0
        %2940 = vmatpush1.xpose.msra.mxu0 0.0
        %2941 = vmatprep.subr.mxu0 0.0
        %2942 = vmatpush1.xpose.msra.mxu0 0.0
        %2943 = vmatprep.subr.mxu0 0.0
        %2944 = vmatpush1.xpose.msra.mxu0 0.0
        %2945 = vmatprep.subr.mxu0 0.0
        %2946 = vmatpush1.xpose.msra.mxu0 0.0
        %2947 = vmatprep.subr.mxu0 0.0
        %2948 = vmatpush1.xpose.msra.mxu0 0.0
        %2949 = vmatprep.mubr.f32.mxu0 0.0
        %2950 = vmatmul.mubr.f32.gmra.mrb[0].mxu0 %v2877
        %v2951 = vpop.f32.mrb[0].mxu0
        %v2952 = vadd.f32 %v2594, %v2951
        %v2953 = vpop.f32.mrb[0].mxu0
        %2954 = vmatprep.mubr.f32.mxu0 0.0
        %2955 = vmatmul.mubr.f32.gmra.mrb[0].mxu0 %v2879
        %v2956 = vpop.f32.mrb[0].mxu0
        %v2957 = vadd.f32 %v2595, %v2956
        %v2958 = vpop.f32.mrb[0].mxu0
        %2959 = vdwg.mxu0
        %v2960 = vsel %vm1353, %v2679, -inf
        %2961 = vmax.xlane.f32.xlu0 %v2960
        %v2962 = vpop.xlane.xlu0 %2961
        %v2963 = vsel %vm1353, %v2684, -inf
        %2964 = vmax.xlane.f32.xlu0 %v2963
        %v2965 = vpop.xlane.xlu0 %2964
        %v2966 = vsel %vm1353, %v2770, -inf
        %2967 = vmax.xlane.f32.xlu0 %v2966
        %v2968 = vpop.xlane.xlu0 %2967
        %v2969 = vsel %vm1353, %v2775, -inf
        %2970 = vmax.xlane.f32.xlu0 %v2969
        %v2971 = vpop.xlane.xlu0 %2970
        %v2972 = vsel %vm1353, %v2861, -inf
        %2973 = vmax.xlane.f32.xlu0 %v2972
        %v2974 = vpop.xlane.xlu0 %2973
        %v2975 = vsel %vm1353, %v2866, -inf
        %2976 = vmax.xlane.f32.xlu0 %v2975
        %v2977 = vpop.xlane.xlu0 %2976
        %v2978 = vsel %vm1353, %v2952, -inf
        %2979 = vmax.xlane.f32.xlu0 %v2978
        %v2980 = vpop.xlane.xlu0 %2979
        %v2981 = vsel %vm1353, %v2957, -inf
        %2982 = vmax.xlane.f32.xlu0 %v2981
        %v2983 = vpop.xlane.xlu0 %2982
        %v2984 = vsub.f32 %v2679, %v2962
        %v2985 = vsub.f32 %v2684, %v2965
        %v2986 = vsub.f32 %v2770, %v2968
        %v2987 = vsub.f32 %v2775, %v2971
        %v2988 = vsub.f32 %v2861, %v2974
        %v2989 = vsub.f32 %v2866, %v2977
        %v2990 = vsub.f32 %v2952, %v2980
        %v2991 = vsub.f32 %v2957, %v2983
        %v2992 = vmul.f32 %v2984, 1.442695
        %v2993 = vpow.pop %v2992
        %v2994 = vmul.f32 %v2985, 1.442695
        %v2995 = vpow.pop %v2994
        %v2996 = vmul.f32 %v2986, 1.442695
        %v2997 = vpow.pop %v2996
        %v2998 = vmul.f32 %v2987, 1.442695
        %v2999 = vpow.pop %v2998
        %v3000 = vmul.f32 %v2988, 1.442695
        %v3001 = vpow.pop %v3000
        %v3002 = vmul.f32 %v2989, 1.442695
        %v3003 = vpow.pop %v3002
        %v3004 = vmul.f32 %v2990, 1.442695
        %v3005 = vpow.pop %v3004
        %v3006 = vmul.f32 %v2991, 1.442695
        %v3007 = vpow.pop %v3006
        %v3008 = vsel %vm1353, %v2993, 0.0
        %3009 = vadd.xlane.f32.xlu0 %v3008
        %v3010 = vpop.xlane.xlu0 %3009
        %v3011 = vsel %vm1353, %v2995, 0.0
        %3012 = vadd.xlane.f32.xlu0 %v3011
        %v3013 = vpop.xlane.xlu0 %3012
        %v3014 = vsel %vm1353, %v2997, 0.0
        %3015 = vadd.xlane.f32.xlu0 %v3014
        %v3016 = vpop.xlane.xlu0 %3015
        %v3017 = vsel %vm1353, %v2999, 0.0
        %3018 = vadd.xlane.f32.xlu0 %v3017
        %v3019 = vpop.xlane.xlu0 %3018
        %v3020 = vsel %vm1353, %v3001, 0.0
        %3021 = vadd.xlane.f32.xlu0 %v3020
        %v3022 = vpop.xlane.xlu0 %3021
        %v3023 = vsel %vm1353, %v3003, 0.0
        %3024 = vadd.xlane.f32.xlu0 %v3023
        %v3025 = vpop.xlane.xlu0 %3024
        %v3026 = vsel %vm1353, %v3005, 0.0
        %3027 = vadd.xlane.f32.xlu0 %v3026
        %v3028 = vpop.xlane.xlu0 %3027
        %v3029 = vsel %vm1353, %v3007, 0.0
        %3030 = vadd.xlane.f32.xlu0 %v3029
        %v3031 = vpop.xlane.xlu0 %3030
        %v3032 = vrcp.pop %v3010
        %v3033 = vrcp.pop %v3013
        %v3034 = vrcp.pop %v3016
        %v3035 = vrcp.pop %v3019
        %v3036 = vrcp.pop %v3022
        %v3037 = vrcp.pop %v3025
        %v3038 = vrcp.pop %v3028
        %v3039 = vrcp.pop %v3031
        %v3040 = vmul.f32 %v2993, %v3032
        %v3041 = vmul.f32 %v2995, %v3033
        %v3042 = vmul.f32 %v2997, %v3034
        %v3043 = vmul.f32 %v2999, %v3035
        %v3044 = vmul.f32 %v3001, %v3036
        %v3045 = vmul.f32 %v3003, %v3037
        %v3046 = vmul.f32 %v3005, %v3038
        %v3047 = vmul.f32 %v3007, %v3039
        %3048 = vrot.lane.b32.xlu0 %v948, 112
        %v3049 = vpop.permute.xlu0 %3048
        %3050 = vrot.lane.b32.xlu0 %v953, 112
        %v3051 = vpop.permute.xlu0 %3050
        %v3055 = vsel %vm1353, %v3040, 0
        %v3058 = vsel %vm1353, %v3041, 0
        %3060 = vmatprep.subr.mxu0 0.0
        %3061 = vmatpush1.msra.mxu0 %v3049
        %3062 = vmatprep.subr.mxu0 0.0
        %3063 = vmatpush1.msra.mxu0 %v3051
        %3064 = vmatprep.subr.mxu0 0.0
        %3065 = vmatpush1.msra.mxu0 0.0
        %3066 = vmatprep.subr.mxu0 0.0
        %3067 = vmatpush1.msra.mxu0 0.0
        %3068 = vmatprep.subr.mxu0 0.0
        %3069 = vmatpush1.msra.mxu0 0.0
        %3070 = vmatprep.subr.mxu0 0.0
        %3071 = vmatpush1.msra.mxu0 0.0
        %3072 = vmatprep.subr.mxu0 0.0
        %3073 = vmatpush1.msra.mxu0 0.0
        %3074 = vmatprep.subr.mxu0 0.0
        %3075 = vmatpush1.msra.mxu0 0.0
        %3076 = vmatprep.subr.mxu0 0.0
        %3077 = vmatpush1.msra.mxu0 0.0
        %3078 = vmatprep.subr.mxu0 0.0
        %3079 = vmatpush1.msra.mxu0 0.0
        %3080 = vmatprep.subr.mxu0 0.0
        %3081 = vmatpush1.msra.mxu0 0.0
        %3082 = vmatprep.subr.mxu0 0.0
        %3083 = vmatpush1.msra.mxu0 0.0
        %3084 = vmatprep.subr.mxu0 0.0
        %3085 = vmatpush1.msra.mxu0 0.0
        %3086 = vmatprep.subr.mxu0 0.0
        %3087 = vmatpush1.msra.mxu0 0.0
        %3088 = vmatprep.subr.mxu0 0.0
        %3089 = vmatpush1.msra.mxu0 0.0
        %3090 = vmatprep.subr.mxu0 0.0
        %3091 = vmatpush1.msra.mxu0 0.0
        %3092 = vmatprep.subr.mxu0 0.0
        %3093 = vmatpush1.msra.mxu0 0.0
        %3094 = vmatprep.subr.mxu0 0.0
        %3095 = vmatpush1.msra.mxu0 0.0
        %3096 = vmatprep.subr.mxu0 0.0
        %3097 = vmatpush1.msra.mxu0 0.0
        %3098 = vmatprep.subr.mxu0 0.0
        %3099 = vmatpush1.msra.mxu0 0.0
        %3100 = vmatprep.subr.mxu0 0.0
        %3101 = vmatpush1.msra.mxu0 0.0
        %3102 = vmatprep.subr.mxu0 0.0
        %3103 = vmatpush1.msra.mxu0 0.0
        %3104 = vmatprep.subr.mxu0 0.0
        %3105 = vmatpush1.msra.mxu0 0.0
        %3106 = vmatprep.subr.mxu0 0.0
        %3107 = vmatpush1.msra.mxu0 0.0
        %3108 = vmatprep.subr.mxu0 0.0
        %3109 = vmatpush1.msra.mxu0 0.0
        %3110 = vmatprep.subr.mxu0 0.0
        %3111 = vmatpush1.msra.mxu0 0.0
        %3112 = vmatprep.subr.mxu0 0.0
        %3113 = vmatpush1.msra.mxu0 0.0
        %3114 = vmatprep.subr.mxu0 0.0
        %3115 = vmatpush1.msra.mxu0 0.0
        %3116 = vmatprep.subr.mxu0 0.0
        %3117 = vmatpush1.msra.mxu0 0.0
        %3118 = vmatprep.subr.mxu0 0.0
        %3119 = vmatpush1.msra.mxu0 0.0
        %3120 = vmatprep.subr.mxu0 0.0
        %3121 = vmatpush1.msra.mxu0 0.0
        %3122 = vmatprep.subr.mxu0 0.0
        %3123 = vmatpush1.msra.mxu0 0.0
        %3124 = vmatprep.mubr.f32.mxu0 0.0
        %3125 = vmatmul.mubr.f32.gmra.mrb[0].mxu0 %v3055
        %v3126 = vpop.f32.mrb[0].mxu0
        %v3127 = vadd.f32 0.0, %v3126
        %v3128 = vpop.f32.mrb[0].mxu0
        %3129 = vmatprep.mubr.f32.mxu0 0.0
        %3130 = vmatmul.mubr.f32.gmra.mrb[0].mxu0 %v3058
        %v3131 = vpop.f32.mrb[0].mxu0
        %v3132 = vadd.f32 0.0, %v3131
        %v3133 = vpop.f32.mrb[0].mxu0
        %3134 = vdwg.mxu0
        %3135 = vrot.lane.b32.xlu0 %v958, 112
        %v3136 = vpop.permute.xlu0 %3135
        %3137 = vrot.lane.b32.xlu0 %v963, 112
        %v3138 = vpop.permute.xlu0 %3137
        %v3142 = vsel %vm1353, %v3042, 0
        %v3145 = vsel %vm1353, %v3043, 0
        %3147 = vmatprep.subr.mxu0 0.0
        %3148 = vmatpush1.msra.mxu0 %v3136
        %3149 = vmatprep.subr.mxu0 0.0
        %3150 = vmatpush1.msra.mxu0 %v3138
        %3151 = vmatprep.subr.mxu0 0.0
        %3152 = vmatpush1.msra.mxu0 0.0
        %3153 = vmatprep.subr.mxu0 0.0
        %3154 = vmatpush1.msra.mxu0 0.0
        %3155 = vmatprep.subr.mxu0 0.0
        %3156 = vmatpush1.msra.mxu0 0.0
        %3157 = vmatprep.subr.mxu0 0.0
        %3158 = vmatpush1.msra.mxu0 0.0
        %3159 = vmatprep.subr.mxu0 0.0
        %3160 = vmatpush1.msra.mxu0 0.0
        %3161 = vmatprep.subr.mxu0 0.0
        %3162 = vmatpush1.msra.mxu0 0.0
        %3163 = vmatprep.subr.mxu0 0.0
        %3164 = vmatpush1.msra.mxu0 0.0
        %3165 = vmatprep.subr.mxu0 0.0
        %3166 = vmatpush1.msra.mxu0 0.0
        %3167 = vmatprep.subr.mxu0 0.0
        %3168 = vmatpush1.msra.mxu0 0.0
        %3169 = vmatprep.subr.mxu0 0.0
        %3170 = vmatpush1.msra.mxu0 0.0
        %3171 = vmatprep.subr.mxu0 0.0
        %3172 = vmatpush1.msra.mxu0 0.0
        %3173 = vmatprep.subr.mxu0 0.0
        %3174 = vmatpush1.msra.mxu0 0.0
        %3175 = vmatprep.subr.mxu0 0.0
        %3176 = vmatpush1.msra.mxu0 0.0
        %3177 = vmatprep.subr.mxu0 0.0
        %3178 = vmatpush1.msra.mxu0 0.0
        %3179 = vmatprep.subr.mxu0 0.0
        %3180 = vmatpush1.msra.mxu0 0.0
        %3181 = vmatprep.subr.mxu0 0.0
        %3182 = vmatpush1.msra.mxu0 0.0
        %3183 = vmatprep.subr.mxu0 0.0
        %3184 = vmatpush1.msra.mxu0 0.0
        %3185 = vmatprep.subr.mxu0 0.0
        %3186 = vmatpush1.msra.mxu0 0.0
        %3187 = vmatprep.subr.mxu0 0.0
        %3188 = vmatpush1.msra.mxu0 0.0
        %3189 = vmatprep.subr.mxu0 0.0
        %3190 = vmatpush1.msra.mxu0 0.0
        %3191 = vmatprep.subr.mxu0 0.0
        %3192 = vmatpush1.msra.mxu0 0.0
        %3193 = vmatprep.subr.mxu0 0.0
        %3194 = vmatpush1.msra.mxu0 0.0
        %3195 = vmatprep.subr.mxu0 0.0
        %3196 = vmatpush1.msra.mxu0 0.0
        %3197 = vmatprep.subr.mxu0 0.0
        %3198 = vmatpush1.msra.mxu0 0.0
        %3199 = vmatprep.subr.mxu0 0.0
        %3200 = vmatpush1.msra.mxu0 0.0
        %3201 = vmatprep.subr.mxu0 0.0
        %3202 = vmatpush1.msra.mxu0 0.0
        %3203 = vmatprep.subr.mxu0 0.0
        %3204 = vmatpush1.msra.mxu0 0.0
        %3205 = vmatprep.subr.mxu0 0.0
        %3206 = vmatpush1.msra.mxu0 0.0
        %3207 = vmatprep.subr.mxu0 0.0
        %3208 = vmatpush1.msra.mxu0 0.0
        %3209 = vmatprep.subr.mxu0 0.0
        %3210 = vmatpush1.msra.mxu0 0.0
        %3211 = vmatprep.mubr.f32.mxu0 0.0
        %3212 = vmatmul.mubr.f32.gmra.mrb[0].mxu0 %v3142
        %v3213 = vpop.f32.mrb[0].mxu0
        %v3214 = vadd.f32 0.0, %v3213
        %v3215 = vpop.f32.mrb[0].mxu0
        %3216 = vmatprep.mubr.f32.mxu0 0.0
        %3217 = vmatmul.mubr.f32.gmra.mrb[0].mxu0 %v3145
        %v3218 = vpop.f32.mrb[0].mxu0
        %v3219 = vadd.f32 0.0, %v3218
        %v3220 = vpop.f32.mrb[0].mxu0
        %3221 = vdwg.mxu0
        %3222 = vrot.lane.b32.xlu0 %v968, 112
        %v3223 = vpop.permute.xlu0 %3222
        %3224 = vrot.lane.b32.xlu0 %v973, 112
        %v3225 = vpop.permute.xlu0 %3224
        %v3229 = vsel %vm1353, %v3044, 0
        %v3232 = vsel %vm1353, %v3045, 0
        %3234 = vmatprep.subr.mxu0 0.0
        %3235 = vmatpush1.msra.mxu0 %v3223
        %3236 = vmatprep.subr.mxu0 0.0
        %3237 = vmatpush1.msra.mxu0 %v3225
        %3238 = vmatprep.subr.mxu0 0.0
        %3239 = vmatpush1.msra.mxu0 0.0
        %3240 = vmatprep.subr.mxu0 0.0
        %3241 = vmatpush1.msra.mxu0 0.0
        %3242 = vmatprep.subr.mxu0 0.0
        %3243 = vmatpush1.msra.mxu0 0.0
        %3244 = vmatprep.subr.mxu0 0.0
        %3245 = vmatpush1.msra.mxu0 0.0
        %3246 = vmatprep.subr.mxu0 0.0
        %3247 = vmatpush1.msra.mxu0 0.0
        %3248 = vmatprep.subr.mxu0 0.0
        %3249 = vmatpush1.msra.mxu0 0.0
        %3250 = vmatprep.subr.mxu0 0.0
        %3251 = vmatpush1.msra.mxu0 0.0
        %3252 = vmatprep.subr.mxu0 0.0
        %3253 = vmatpush1.msra.mxu0 0.0
        %3254 = vmatprep.subr.mxu0 0.0
        %3255 = vmatpush1.msra.mxu0 0.0
        %3256 = vmatprep.subr.mxu0 0.0
        %3257 = vmatpush1.msra.mxu0 0.0
        %3258 = vmatprep.subr.mxu0 0.0
        %3259 = vmatpush1.msra.mxu0 0.0
        %3260 = vmatprep.subr.mxu0 0.0
        %3261 = vmatpush1.msra.mxu0 0.0
        %3262 = vmatprep.subr.mxu0 0.0
        %3263 = vmatpush1.msra.mxu0 0.0
        %3264 = vmatprep.subr.mxu0 0.0
        %3265 = vmatpush1.msra.mxu0 0.0
        %3266 = vmatprep.subr.mxu0 0.0
        %3267 = vmatpush1.msra.mxu0 0.0
        %3268 = vmatprep.subr.mxu0 0.0
        %3269 = vmatpush1.msra.mxu0 0.0
        %3270 = vmatprep.subr.mxu0 0.0
        %3271 = vmatpush1.msra.mxu0 0.0
        %3272 = vmatprep.subr.mxu0 0.0
        %3273 = vmatpush1.msra.mxu0 0.0
        %3274 = vmatprep.subr.mxu0 0.0
        %3275 = vmatpush1.msra.mxu0 0.0
        %3276 = vmatprep.subr.mxu0 0.0
        %3277 = vmatpush1.msra.mxu0 0.0
        %3278 = vmatprep.subr.mxu0 0.0
        %3279 = vmatpush1.msra.mxu0 0.0
        %3280 = vmatprep.subr.mxu0 0.0
        %3281 = vmatpush1.msra.mxu0 0.0
        %3282 = vmatprep.subr.mxu0 0.0
        %3283 = vmatpush1.msra.mxu0 0.0
        %3284 = vmatprep.subr.mxu0 0.0
        %3285 = vmatpush1.msra.mxu0 0.0
        %3286 = vmatprep.subr.mxu0 0.0
        %3287 = vmatpush1.msra.mxu0 0.0
        %3288 = vmatprep.subr.mxu0 0.0
        %3289 = vmatpush1.msra.mxu0 0.0
        %3290 = vmatprep.subr.mxu0 0.0
        %3291 = vmatpush1.msra.mxu0 0.0
        %3292 = vmatprep.subr.mxu0 0.0
        %3293 = vmatpush1.msra.mxu0 0.0
        %3294 = vmatprep.subr.mxu0 0.0
        %3295 = vmatpush1.msra.mxu0 0.0
        %3296 = vmatprep.subr.mxu0 0.0
        %3297 = vmatpush1.msra.mxu0 0.0
        %3298 = vmatprep.mubr.f32.mxu0 0.0
        %3299 = vmatmul.mubr.f32.gmra.mrb[0].mxu0 %v3229
        %v3300 = vpop.f32.mrb[0].mxu0
        %v3301 = vadd.f32 0.0, %v3300
        %v3302 = vpop.f32.mrb[0].mxu0
        %3303 = vmatprep.mubr.f32.mxu0 0.0
        %3304 = vmatmul.mubr.f32.gmra.mrb[0].mxu0 %v3232
        %v3305 = vpop.f32.mrb[0].mxu0
        %v3306 = vadd.f32 0.0, %v3305
        %v3307 = vpop.f32.mrb[0].mxu0
        %3308 = vdwg.mxu0
        %3309 = vrot.lane.b32.xlu0 %v978, 112
        %v3310 = vpop.permute.xlu0 %3309
        %3311 = vrot.lane.b32.xlu0 %v983, 112
        %v3312 = vpop.permute.xlu0 %3311
        %v3316 = vsel %vm1353, %v3046, 0
        %v3319 = vsel %vm1353, %v3047, 0
        %3321 = vmatprep.subr.mxu0 0.0
        %3322 = vmatpush1.msra.mxu0 %v3310
        %3323 = vmatprep.subr.mxu0 0.0
        %3324 = vmatpush1.msra.mxu0 %v3312
        %3325 = vmatprep.subr.mxu0 0.0
        %3326 = vmatpush1.msra.mxu0 0.0
        %3327 = vmatprep.subr.mxu0 0.0
        %3328 = vmatpush1.msra.mxu0 0.0
        %3329 = vmatprep.subr.mxu0 0.0
        %3330 = vmatpush1.msra.mxu0 0.0
        %3331 = vmatprep.subr.mxu0 0.0
        %3332 = vmatpush1.msra.mxu0 0.0
        %3333 = vmatprep.subr.mxu0 0.0
        %3334 = vmatpush1.msra.mxu0 0.0
        %3335 = vmatprep.subr.mxu0 0.0
        %3336 = vmatpush1.msra.mxu0 0.0
        %3337 = vmatprep.subr.mxu0 0.0
        %3338 = vmatpush1.msra.mxu0 0.0
        %3339 = vmatprep.subr.mxu0 0.0
        %3340 = vmatpush1.msra.mxu0 0.0
        %3341 = vmatprep.subr.mxu0 0.0
        %3342 = vmatpush1.msra.mxu0 0.0
        %3343 = vmatprep.subr.mxu0 0.0
        %3344 = vmatpush1.msra.mxu0 0.0
        %3345 = vmatprep.subr.mxu0 0.0
        %3346 = vmatpush1.msra.mxu0 0.0
        %3347 = vmatprep.subr.mxu0 0.0
        %3348 = vmatpush1.msra.mxu0 0.0
        %3349 = vmatprep.subr.mxu0 0.0
        %3350 = vmatpush1.msra.mxu0 0.0
        %3351 = vmatprep.subr.mxu0 0.0
        %3352 = vmatpush1.msra.mxu0 0.0
        %3353 = vmatprep.subr.mxu0 0.0
        %3354 = vmatpush1.msra.mxu0 0.0
        %3355 = vmatprep.subr.mxu0 0.0
        %3356 = vmatpush1.msra.mxu0 0.0
        %3357 = vmatprep.subr.mxu0 0.0
        %3358 = vmatpush1.msra.mxu0 0.0
        %3359 = vmatprep.subr.mxu0 0.0
        %3360 = vmatpush1.msra.mxu0 0.0
        %3361 = vmatprep.subr.mxu0 0.0
        %3362 = vmatpush1.msra.mxu0 0.0
        %3363 = vmatprep.subr.mxu0 0.0
        %3364 = vmatpush1.msra.mxu0 0.0
        %3365 = vmatprep.subr.mxu0 0.0
        %3366 = vmatpush1.msra.mxu0 0.0
        %3367 = vmatprep.subr.mxu0 0.0
        %3368 = vmatpush1.msra.mxu0 0.0
        %3369 = vmatprep.subr.mxu0 0.0
        %3370 = vmatpush1.msra.mxu0 0.0
        %3371 = vmatprep.subr.mxu0 0.0
        %3372 = vmatpush1.msra.mxu0 0.0
        %3373 = vmatprep.subr.mxu0 0.0
        %3374 = vmatpush1.msra.mxu0 0.0
        %3375 = vmatprep.subr.mxu0 0.0
        %3376 = vmatpush1.msra.mxu0 0.0
        %3377 = vmatprep.subr.mxu0 0.0
        %3378 = vmatpush1.msra.mxu0 0.0
        %3379 = vmatprep.subr.mxu0 0.0
        %3380 = vmatpush1.msra.mxu0 0.0
        %3381 = vmatprep.subr.mxu0 0.0
        %3382 = vmatpush1.msra.mxu0 0.0
        %3383 = vmatprep.subr.mxu0 0.0
        %3384 = vmatpush1.msra.mxu0 0.0
        %3385 = vmatprep.mubr.f32.mxu0 0.0
        %3386 = vmatmul.mubr.f32.gmra.mrb[0].mxu0 %v3316
        %v3387 = vpop.f32.mrb[0].mxu0
        %v3388 = vadd.f32 0.0, %v3387
        %v3389 = vpop.f32.mrb[0].mxu0
        %3390 = vmatprep.mubr.f32.mxu0 0.0
        %3391 = vmatmul.mubr.f32.gmra.mrb[0].mxu0 %v3319
        %v3392 = vpop.f32.mrb[0].mxu0
        %v3393 = vadd.f32 0.0, %v3392
        %v3394 = vpop.f32.mrb[0].mxu0
        %3395 = vdwg.mxu0
        %s3396 = scalar_lea.vmem [#allocation11], 48
        %v3397 = vld [vmem:[%s3396] sm:$0xff]
        %v3398 = vld [vmem:[%s3396 + $0x8] sm:$0xff]
        %v3399 = vadd.f32 %v3397, %v986
        %v3400 = vadd.f32 %v3398, %v987
        %v3401 = vadd.f32 %v3397, %v988
        %v3402 = vadd.f32 %v3398, %v989
        %v3403 = vadd.f32 %v3397, %v990
        %v3404 = vadd.f32 %v3398, %v991
        %v3405 = vadd.f32 %v3397, %v992
        %v3406 = vadd.f32 %v3398, %v993
        %3407 = vrot.lane.b32.xlu0 %v694, 104
        %v3408 = vpop.permute.xlu0 %3407
        %3409 = vrot.lane.b32.xlu0 %v695, 104
        %v3410 = vpop.permute.xlu0 %3409
        %3411 = vrot.lane.b32.xlu0 %v806, 104
        %v3412 = vpop.permute.xlu0 %3411
        %3413 = vrot.lane.b32.xlu0 %v811, 104
        %v3414 = vpop.permute.xlu0 %3413
        %v3415 = vsel %vm1004, %v3408, 0
        %v3417 = vsel %vm1004, %v3410, 0
        %v3419 = vsel %vm1004, %v3412, 0
        %v3421 = vsel %vm1004, %v3414, 0
        %3423 = vmatprep.subr.mxu0 0.0
        %3424 = vmatpush1.xpose.msra.mxu0 %v3419
        %3425 = vmatprep.subr.mxu0 0.0
        %3426 = vmatpush1.xpose.msra.mxu0 %v3421
        %3427 = vmatprep.subr.mxu0 0.0
        %3428 = vmatpush1.xpose.msra.mxu0 0.0
        %3429 = vmatprep.subr.mxu0 0.0
        %3430 = vmatpush1.xpose.msra.mxu0 0.0
        %3431 = vmatprep.subr.mxu0 0.0
        %3432 = vmatpush1.xpose.msra.mxu0 0.0
        %3433 = vmatprep.subr.mxu0 0.0
        %3434 = vmatpush1.xpose.msra.mxu0 0.0
        %3435 = vmatprep.subr.mxu0 0.0
        %3436 = vmatpush1.xpose.msra.mxu0 0.0
        %3437 = vmatprep.subr.mxu0 0.0
        %3438 = vmatpush1.xpose.msra.mxu0 0.0
        %3439 = vmatprep.subr.mxu0 0.0
        %3440 = vmatpush1.xpose.msra.mxu0 0.0
        %3441 = vmatprep.subr.mxu0 0.0
        %3442 = vmatpush1.xpose.msra.mxu0 0.0
        %3443 = vmatprep.subr.mxu0 0.0
        %3444 = vmatpush1.xpose.msra.mxu0 0.0
        %3445 = vmatprep.subr.mxu0 0.0
        %3446 = vmatpush1.xpose.msra.mxu0 0.0
        %3447 = vmatprep.subr.mxu0 0.0
        %3448 = vmatpush1.xpose.msra.mxu0 0.0
        %3449 = vmatprep.subr.mxu0 0.0
        %3450 = vmatpush1.xpose.msra.mxu0 0.0
        %3451 = vmatprep.subr.mxu0 0.0
        %3452 = vmatpush1.xpose.msra.mxu0 0.0
        %3453 = vmatprep.subr.mxu0 0.0
        %3454 = vmatpush1.xpose.msra.mxu0 0.0
        %3455 = vmatprep.subr.mxu0 0.0
        %3456 = vmatpush1.xpose.msra.mxu0 0.0
        %3457 = vmatprep.subr.mxu0 0.0
        %3458 = vmatpush1.xpose.msra.mxu0 0.0
        %3459 = vmatprep.subr.mxu0 0.0
        %3460 = vmatpush1.xpose.msra.mxu0 0.0
        %3461 = vmatprep.subr.mxu0 0.0
        %3462 = vmatpush1.xpose.msra.mxu0 0.0
        %3463 = vmatprep.subr.mxu0 0.0
        %3464 = vmatpush1.xpose.msra.mxu0 0.0
        %3465 = vmatprep.subr.mxu0 0.0
        %3466 = vmatpush1.xpose.msra.mxu0 0.0
        %3467 = vmatprep.subr.mxu0 0.0
        %3468 = vmatpush1.xpose.msra.mxu0 0.0
        %3469 = vmatprep.subr.mxu0 0.0
        %3470 = vmatpush1.xpose.msra.mxu0 0.0
        %3471 = vmatprep.subr.mxu0 0.0
        %3472 = vmatpush1.xpose.msra.mxu0 0.0
        %3473 = vmatprep.subr.mxu0 0.0
        %3474 = vmatpush1.xpose.msra.mxu0 0.0
        %3475 = vmatprep.subr.mxu0 0.0
        %3476 = vmatpush1.xpose.msra.mxu0 0.0
        %3477 = vmatprep.subr.mxu0 0.0
        %3478 = vmatpush1.xpose.msra.mxu0 0.0
        %3479 = vmatprep.subr.mxu0 0.0
        %3480 = vmatpush1.xpose.msra.mxu0 0.0
        %3481 = vmatprep.subr.mxu0 0.0
        %3482 = vmatpush1.xpose.msra.mxu0 0.0
        %3483 = vmatprep.subr.mxu0 0.0
        %3484 = vmatpush1.xpose.msra.mxu0 0.0
        %3485 = vmatprep.subr.mxu0 0.0
        %3486 = vmatpush1.xpose.msra.mxu0 0.0
        %3487 = vmatprep.mubr.f32.mxu0 0.0
        %3488 = vmatmul.mubr.f32.gmra.mrb[0].mxu0 %v3415
        %v3489 = vpop.f32.mrb[0].mxu0
        %v3490 = vadd.f32 %v3399, %v3489
        %v3491 = vpop.f32.mrb[0].mxu0
        %3492 = vmatprep.mubr.f32.mxu0 0.0
        %3493 = vmatmul.mubr.f32.gmra.mrb[0].mxu0 %v3417
        %v3494 = vpop.f32.mrb[0].mxu0
        %v3495 = vadd.f32 %v3400, %v3494
        %v3496 = vpop.f32.mrb[0].mxu0
        %3497 = vdwg.mxu0
        %3498 = vrot.lane.b32.xlu0 %v696, 104
        %v3499 = vpop.permute.xlu0 %3498
        %3500 = vrot.lane.b32.xlu0 %v697, 104
        %v3501 = vpop.permute.xlu0 %3500
        %3502 = vrot.lane.b32.xlu0 %v816, 104
        %v3503 = vpop.permute.xlu0 %3502
        %3504 = vrot.lane.b32.xlu0 %v821, 104
        %v3505 = vpop.permute.xlu0 %3504
        %v3506 = vsel %vm1004, %v3499, 0
        %v3508 = vsel %vm1004, %v3501, 0
        %v3510 = vsel %vm1004, %v3503, 0
        %v3512 = vsel %vm1004, %v3505, 0
        %3514 = vmatprep.subr.mxu0 0.0
        %3515 = vmatpush1.xpose.msra.mxu0 %v3510
        %3516 = vmatprep.subr.mxu0 0.0
        %3517 = vmatpush1.xpose.msra.mxu0 %v3512
        %3518 = vmatprep.subr.mxu0 0.0
        %3519 = vmatpush1.xpose.msra.mxu0 0.0
        %3520 = vmatprep.subr.mxu0 0.0
        %3521 = vmatpush1.xpose.msra.mxu0 0.0
        %3522 = vmatprep.subr.mxu0 0.0
        %3523 = vmatpush1.xpose.msra.mxu0 0.0
        %3524 = vmatprep.subr.mxu0 0.0
        %3525 = vmatpush1.xpose.msra.mxu0 0.0
        %3526 = vmatprep.subr.mxu0 0.0
        %3527 = vmatpush1.xpose.msra.mxu0 0.0
        %3528 = vmatprep.subr.mxu0 0.0
        %3529 = vmatpush1.xpose.msra.mxu0 0.0
        %3530 = vmatprep.subr.mxu0 0.0
        %3531 = vmatpush1.xpose.msra.mxu0 0.0
        %3532 = vmatprep.subr.mxu0 0.0
        %3533 = vmatpush1.xpose.msra.mxu0 0.0
        %3534 = vmatprep.subr.mxu0 0.0
        %3535 = vmatpush1.xpose.msra.mxu0 0.0
        %3536 = vmatprep.subr.mxu0 0.0
        %3537 = vmatpush1.xpose.msra.mxu0 0.0
        %3538 = vmatprep.subr.mxu0 0.0
        %3539 = vmatpush1.xpose.msra.mxu0 0.0
        %3540 = vmatprep.subr.mxu0 0.0
        %3541 = vmatpush1.xpose.msra.mxu0 0.0
        %3542 = vmatprep.subr.mxu0 0.0
        %3543 = vmatpush1.xpose.msra.mxu0 0.0
        %3544 = vmatprep.subr.mxu0 0.0
        %3545 = vmatpush1.xpose.msra.mxu0 0.0
        %3546 = vmatprep.subr.mxu0 0.0
        %3547 = vmatpush1.xpose.msra.mxu0 0.0
        %3548 = vmatprep.subr.mxu0 0.0
        %3549 = vmatpush1.xpose.msra.mxu0 0.0
        %3550 = vmatprep.subr.mxu0 0.0
        %3551 = vmatpush1.xpose.msra.mxu0 0.0
        %3552 = vmatprep.subr.mxu0 0.0
        %3553 = vmatpush1.xpose.msra.mxu0 0.0
        %3554 = vmatprep.subr.mxu0 0.0
        %3555 = vmatpush1.xpose.msra.mxu0 0.0
        %3556 = vmatprep.subr.mxu0 0.0
        %3557 = vmatpush1.xpose.msra.mxu0 0.0
        %3558 = vmatprep.subr.mxu0 0.0
        %3559 = vmatpush1.xpose.msra.mxu0 0.0
        %3560 = vmatprep.subr.mxu0 0.0
        %3561 = vmatpush1.xpose.msra.mxu0 0.0
        %3562 = vmatprep.subr.mxu0 0.0
        %3563 = vmatpush1.xpose.msra.mxu0 0.0
        %3564 = vmatprep.subr.mxu0 0.0
        %3565 = vmatpush1.xpose.msra.mxu0 0.0
        %3566 = vmatprep.subr.mxu0 0.0
        %3567 = vmatpush1.xpose.msra.mxu0 0.0
        %3568 = vmatprep.subr.mxu0 0.0
        %3569 = vmatpush1.xpose.msra.mxu0 0.0
        %3570 = vmatprep.subr.mxu0 0.0
        %3571 = vmatpush1.xpose.msra.mxu0 0.0
        %3572 = vmatprep.subr.mxu0 0.0
        %3573 = vmatpush1.xpose.msra.mxu0 0.0
        %3574 = vmatprep.subr.mxu0 0.0
        %3575 = vmatpush1.xpose.msra.mxu0 0.0
        %3576 = vmatprep.subr.mxu0 0.0
        %3577 = vmatpush1.xpose.msra.mxu0 0.0
        %3578 = vmatprep.mubr.f32.mxu0 0.0
        %3579 = vmatmul.mubr.f32.gmra.mrb[0].mxu0 %v3506
        %v3580 = vpop.f32.mrb[0].mxu0
        %v3581 = vadd.f32 %v3401, %v3580
        %v3582 = vpop.f32.mrb[0].mxu0
        %3583 = vmatprep.mubr.f32.mxu0 0.0
        %3584 = vmatmul.mubr.f32.gmra.mrb[0].mxu0 %v3508
        %v3585 = vpop.f32.mrb[0].mxu0
        %v3586 = vadd.f32 %v3402, %v3585
        %v3587 = vpop.f32.mrb[0].mxu0
        %3588 = vdwg.mxu0
        %3589 = vrot.lane.b32.xlu0 %v698, 104
        %v3590 = vpop.permute.xlu0 %3589
        %3591 = vrot.lane.b32.xlu0 %v699, 104
        %v3592 = vpop.permute.xlu0 %3591
        %3593 = vrot.lane.b32.xlu0 %v826, 104
        %v3594 = vpop.permute.xlu0 %3593
        %3595 = vrot.lane.b32.xlu0 %v831, 104
        %v3596 = vpop.permute.xlu0 %3595
        %v3597 = vsel %vm1004, %v3590, 0
        %v3599 = vsel %vm1004, %v3592, 0
        %v3601 = vsel %vm1004, %v3594, 0
        %v3603 = vsel %vm1004, %v3596, 0
        %3605 = vmatprep.subr.mxu0 0.0
        %3606 = vmatpush1.xpose.msra.mxu0 %v3601
        %3607 = vmatprep.subr.mxu0 0.0
        %3608 = vmatpush1.xpose.msra.mxu0 %v3603
        %3609 = vmatprep.subr.mxu0 0.0
        %3610 = vmatpush1.xpose.msra.mxu0 0.0
        %3611 = vmatprep.subr.mxu0 0.0
        %3612 = vmatpush1.xpose.msra.mxu0 0.0
        %3613 = vmatprep.subr.mxu0 0.0
        %3614 = vmatpush1.xpose.msra.mxu0 0.0
        %3615 = vmatprep.subr.mxu0 0.0
        %3616 = vmatpush1.xpose.msra.mxu0 0.0
        %3617 = vmatprep.subr.mxu0 0.0
        %3618 = vmatpush1.xpose.msra.mxu0 0.0
        %3619 = vmatprep.subr.mxu0 0.0
        %3620 = vmatpush1.xpose.msra.mxu0 0.0
        %3621 = vmatprep.subr.mxu0 0.0
        %3622 = vmatpush1.xpose.msra.mxu0 0.0
        %3623 = vmatprep.subr.mxu0 0.0
        %3624 = vmatpush1.xpose.msra.mxu0 0.0
        %3625 = vmatprep.subr.mxu0 0.0
        %3626 = vmatpush1.xpose.msra.mxu0 0.0
        %3627 = vmatprep.subr.mxu0 0.0
        %3628 = vmatpush1.xpose.msra.mxu0 0.0
        %3629 = vmatprep.subr.mxu0 0.0
        %3630 = vmatpush1.xpose.msra.mxu0 0.0
        %3631 = vmatprep.subr.mxu0 0.0
        %3632 = vmatpush1.xpose.msra.mxu0 0.0
        %3633 = vmatprep.subr.mxu0 0.0
        %3634 = vmatpush1.xpose.msra.mxu0 0.0
        %3635 = vmatprep.subr.mxu0 0.0
        %3636 = vmatpush1.xpose.msra.mxu0 0.0
        %3637 = vmatprep.subr.mxu0 0.0
        %3638 = vmatpush1.xpose.msra.mxu0 0.0
        %3639 = vmatprep.subr.mxu0 0.0
        %3640 = vmatpush1.xpose.msra.mxu0 0.0
        %3641 = vmatprep.subr.mxu0 0.0
        %3642 = vmatpush1.xpose.msra.mxu0 0.0
        %3643 = vmatprep.subr.mxu0 0.0
        %3644 = vmatpush1.xpose.msra.mxu0 0.0
        %3645 = vmatprep.subr.mxu0 0.0
        %3646 = vmatpush1.xpose.msra.mxu0 0.0
        %3647 = vmatprep.subr.mxu0 0.0
        %3648 = vmatpush1.xpose.msra.mxu0 0.0
        %3649 = vmatprep.subr.mxu0 0.0
        %3650 = vmatpush1.xpose.msra.mxu0 0.0
        %3651 = vmatprep.subr.mxu0 0.0
        %3652 = vmatpush1.xpose.msra.mxu0 0.0
        %3653 = vmatprep.subr.mxu0 0.0
        %3654 = vmatpush1.xpose.msra.mxu0 0.0
        %3655 = vmatprep.subr.mxu0 0.0
        %3656 = vmatpush1.xpose.msra.mxu0 0.0
        %3657 = vmatprep.subr.mxu0 0.0
        %3658 = vmatpush1.xpose.msra.mxu0 0.0
        %3659 = vmatprep.subr.mxu0 0.0
        %3660 = vmatpush1.xpose.msra.mxu0 0.0
        %3661 = vmatprep.subr.mxu0 0.0
        %3662 = vmatpush1.xpose.msra.mxu0 0.0
        %3663 = vmatprep.subr.mxu0 0.0
        %3664 = vmatpush1.xpose.msra.mxu0 0.0
        %3665 = vmatprep.subr.mxu0 0.0
        %3666 = vmatpush1.xpose.msra.mxu0 0.0
        %3667 = vmatprep.subr.mxu0 0.0
        %3668 = vmatpush1.xpose.msra.mxu0 0.0
        %3669 = vmatprep.mubr.f32.mxu0 0.0
        %3670 = vmatmul.mubr.f32.gmra.mrb[0].mxu0 %v3597
        %v3671 = vpop.f32.mrb[0].mxu0
        %v3672 = vadd.f32 %v3403, %v3671
        %v3673 = vpop.f32.mrb[0].mxu0
        %3674 = vmatprep.mubr.f32.mxu0 0.0
        %3675 = vmatmul.mubr.f32.gmra.mrb[0].mxu0 %v3599
        %v3676 = vpop.f32.mrb[0].mxu0
        %v3677 = vadd.f32 %v3404, %v3676
        %v3678 = vpop.f32.mrb[0].mxu0
        %3679 = vdwg.mxu0
        %3680 = vrot.lane.b32.xlu0 %v700, 104
        %v3681 = vpop.permute.xlu0 %3680
        %3682 = vrot.lane.b32.xlu0 %v701, 104
        %v3683 = vpop.permute.xlu0 %3682
        %3684 = vrot.lane.b32.xlu0 %v836, 104
        %v3685 = vpop.permute.xlu0 %3684
        %3686 = vrot.lane.b32.xlu0 %v841, 104
        %v3687 = vpop.permute.xlu0 %3686
        %v3688 = vsel %vm1004, %v3681, 0
        %v3690 = vsel %vm1004, %v3683, 0
        %v3692 = vsel %vm1004, %v3685, 0
        %v3694 = vsel %vm1004, %v3687, 0
        %3696 = vmatprep.subr.mxu0 0.0
        %3697 = vmatpush1.xpose.msra.mxu0 %v3692
        %3698 = vmatprep.subr.mxu0 0.0
        %3699 = vmatpush1.xpose.msra.mxu0 %v3694
        %3700 = vmatprep.subr.mxu0 0.0
        %3701 = vmatpush1.xpose.msra.mxu0 0.0
        %3702 = vmatprep.subr.mxu0 0.0
        %3703 = vmatpush1.xpose.msra.mxu0 0.0
        %3704 = vmatprep.subr.mxu0 0.0
        %3705 = vmatpush1.xpose.msra.mxu0 0.0
        %3706 = vmatprep.subr.mxu0 0.0
        %3707 = vmatpush1.xpose.msra.mxu0 0.0
        %3708 = vmatprep.subr.mxu0 0.0
        %3709 = vmatpush1.xpose.msra.mxu0 0.0
        %3710 = vmatprep.subr.mxu0 0.0
        %3711 = vmatpush1.xpose.msra.mxu0 0.0
        %3712 = vmatprep.subr.mxu0 0.0
        %3713 = vmatpush1.xpose.msra.mxu0 0.0
        %3714 = vmatprep.subr.mxu0 0.0
        %3715 = vmatpush1.xpose.msra.mxu0 0.0
        %3716 = vmatprep.subr.mxu0 0.0
        %3717 = vmatpush1.xpose.msra.mxu0 0.0
        %3718 = vmatprep.subr.mxu0 0.0
        %3719 = vmatpush1.xpose.msra.mxu0 0.0
        %3720 = vmatprep.subr.mxu0 0.0
        %3721 = vmatpush1.xpose.msra.mxu0 0.0
        %3722 = vmatprep.subr.mxu0 0.0
        %3723 = vmatpush1.xpose.msra.mxu0 0.0
        %3724 = vmatprep.subr.mxu0 0.0
        %3725 = vmatpush1.xpose.msra.mxu0 0.0
        %3726 = vmatprep.subr.mxu0 0.0
        %3727 = vmatpush1.xpose.msra.mxu0 0.0
        %3728 = vmatprep.subr.mxu0 0.0
        %3729 = vmatpush1.xpose.msra.mxu0 0.0
        %3730 = vmatprep.subr.mxu0 0.0
        %3731 = vmatpush1.xpose.msra.mxu0 0.0
        %3732 = vmatprep.subr.mxu0 0.0
        %3733 = vmatpush1.xpose.msra.mxu0 0.0
        %3734 = vmatprep.subr.mxu0 0.0
        %3735 = vmatpush1.xpose.msra.mxu0 0.0
        %3736 = vmatprep.subr.mxu0 0.0
        %3737 = vmatpush1.xpose.msra.mxu0 0.0
        %3738 = vmatprep.subr.mxu0 0.0
        %3739 = vmatpush1.xpose.msra.mxu0 0.0
        %3740 = vmatprep.subr.mxu0 0.0
        %3741 = vmatpush1.xpose.msra.mxu0 0.0
        %3742 = vmatprep.subr.mxu0 0.0
        %3743 = vmatpush1.xpose.msra.mxu0 0.0
        %3744 = vmatprep.subr.mxu0 0.0
        %3745 = vmatpush1.xpose.msra.mxu0 0.0
        %3746 = vmatprep.subr.mxu0 0.0
        %3747 = vmatpush1.xpose.msra.mxu0 0.0
        %3748 = vmatprep.subr.mxu0 0.0
        %3749 = vmatpush1.xpose.msra.mxu0 0.0
        %3750 = vmatprep.subr.mxu0 0.0
        %3751 = vmatpush1.xpose.msra.mxu0 0.0
        %3752 = vmatprep.subr.mxu0 0.0
        %3753 = vmatpush1.xpose.msra.mxu0 0.0
        %3754 = vmatprep.subr.mxu0 0.0
        %3755 = vmatpush1.xpose.msra.mxu0 0.0
        %3756 = vmatprep.subr.mxu0 0.0
        %3757 = vmatpush1.xpose.msra.mxu0 0.0
        %3758 = vmatprep.subr.mxu0 0.0
        %3759 = vmatpush1.xpose.msra.mxu0 0.0
        %3760 = vmatprep.mubr.f32.mxu0 0.0
        %3761 = vmatmul.mubr.f32.gmra.mrb[0].mxu0 %v3688
        %v3762 = vpop.f32.mrb[0].mxu0
        %v3763 = vadd.f32 %v3405, %v3762
        %v3764 = vpop.f32.mrb[0].mxu0
        %3765 = vmatprep.mubr.f32.mxu0 0.0
        %3766 = vmatmul.mubr.f32.gmra.mrb[0].mxu0 %v3690
        %v3767 = vpop.f32.mrb[0].mxu0
        %v3768 = vadd.f32 %v3406, %v3767
        %v3769 = vpop.f32.mrb[0].mxu0
        %3770 = vdwg.mxu0
        %v3771 = vsel %vm1353, %v3490, -inf
        %3772 = vmax.xlane.f32.xlu0 %v3771
        %v3773 = vpop.xlane.xlu0 %3772
        %v3774 = vsel %vm1353, %v3495, -inf
        %3775 = vmax.xlane.f32.xlu0 %v3774
        %v3776 = vpop.xlane.xlu0 %3775
        %v3777 = vsel %vm1353, %v3581, -inf
        %3778 = vmax.xlane.f32.xlu0 %v3777
        %v3779 = vpop.xlane.xlu0 %3778
        %v3780 = vsel %vm1353, %v3586, -inf
        %3781 = vmax.xlane.f32.xlu0 %v3780
        %v3782 = vpop.xlane.xlu0 %3781
        %v3783 = vsel %vm1353, %v3672, -inf
        %3784 = vmax.xlane.f32.xlu0 %v3783
        %v3785 = vpop.xlane.xlu0 %3784
        %v3786 = vsel %vm1353, %v3677, -inf
        %3787 = vmax.xlane.f32.xlu0 %v3786
        %v3788 = vpop.xlane.xlu0 %3787
        %v3789 = vsel %vm1353, %v3763, -inf
        %3790 = vmax.xlane.f32.xlu0 %v3789
        %v3791 = vpop.xlane.xlu0 %3790
        %v3792 = vsel %vm1353, %v3768, -inf
        %3793 = vmax.xlane.f32.xlu0 %v3792
        %v3794 = vpop.xlane.xlu0 %3793
        %v3795 = vsub.f32 %v3490, %v3773
        %v3796 = vsub.f32 %v3495, %v3776
        %v3797 = vsub.f32 %v3581, %v3779
        %v3798 = vsub.f32 %v3586, %v3782
        %v3799 = vsub.f32 %v3672, %v3785
        %v3800 = vsub.f32 %v3677, %v3788
        %v3801 = vsub.f32 %v3763, %v3791
        %v3802 = vsub.f32 %v3768, %v3794
        %v3803 = vmul.f32 %v3795, 1.442695
        %v3804 = vpow.pop %v3803
        %v3805 = vmul.f32 %v3796, 1.442695
        %v3806 = vpow.pop %v3805
        %v3807 = vmul.f32 %v3797, 1.442695
        %v3808 = vpow.pop %v3807
        %v3809 = vmul.f32 %v3798, 1.442695
        %v3810 = vpow.pop %v3809
        %v3811 = vmul.f32 %v3799, 1.442695
        %v3812 = vpow.pop %v3811
        %v3813 = vmul.f32 %v3800, 1.442695
        %v3814 = vpow.pop %v3813
        %v3815 = vmul.f32 %v3801, 1.442695
        %v3816 = vpow.pop %v3815
        %v3817 = vmul.f32 %v3802, 1.442695
        %v3818 = vpow.pop %v3817
        %v3819 = vsel %vm1353, %v3804, 0.0
        %3820 = vadd.xlane.f32.xlu0 %v3819
        %v3821 = vpop.xlane.xlu0 %3820
        %v3822 = vsel %vm1353, %v3806, 0.0
        %3823 = vadd.xlane.f32.xlu0 %v3822
        %v3824 = vpop.xlane.xlu0 %3823
        %v3825 = vsel %vm1353, %v3808, 0.0
        %3826 = vadd.xlane.f32.xlu0 %v3825
        %v3827 = vpop.xlane.xlu0 %3826
        %v3828 = vsel %vm1353, %v3810, 0.0
        %3829 = vadd.xlane.f32.xlu0 %v3828
        %v3830 = vpop.xlane.xlu0 %3829
        %v3831 = vsel %vm1353, %v3812, 0.0
        %3832 = vadd.xlane.f32.xlu0 %v3831
        %v3833 = vpop.xlane.xlu0 %3832
        %v3834 = vsel %vm1353, %v3814, 0.0
        %3835 = vadd.xlane.f32.xlu0 %v3834
        %v3836 = vpop.xlane.xlu0 %3835
        %v3837 = vsel %vm1353, %v3816, 0.0
        %3838 = vadd.xlane.f32.xlu0 %v3837
        %v3839 = vpop.xlane.xlu0 %3838
        %v3840 = vsel %vm1353, %v3818, 0.0
        %3841 = vadd.xlane.f32.xlu0 %v3840
        %v3842 = vpop.xlane.xlu0 %3841
        %v3843 = vrcp.pop %v3821
        %v3844 = vrcp.pop %v3824
        %v3845 = vrcp.pop %v3827
        %v3846 = vrcp.pop %v3830
        %v3847 = vrcp.pop %v3833
        %v3848 = vrcp.pop %v3836
        %v3849 = vrcp.pop %v3839
        %v3850 = vrcp.pop %v3842
        %v3851 = vmul.f32 %v3804, %v3843
        %v3852 = vmul.f32 %v3806, %v3844
        %v3853 = vmul.f32 %v3808, %v3845
        %v3854 = vmul.f32 %v3810, %v3846
        %v3855 = vmul.f32 %v3812, %v3847
        %v3856 = vmul.f32 %v3814, %v3848
        %v3857 = vmul.f32 %v3816, %v3849
        %v3858 = vmul.f32 %v3818, %v3850
        %3859 = vrot.lane.b32.xlu0 %v948, 104
        %v3860 = vpop.permute.xlu0 %3859
        %3861 = vrot.lane.b32.xlu0 %v953, 104
        %v3862 = vpop.permute.xlu0 %3861
        %v3866 = vsel %vm1353, %v3851, 0
        %v3869 = vsel %vm1353, %v3852, 0
        %3871 = vmatprep.subr.mxu0 0.0
        %3872 = vmatpush1.msra.mxu0 %v3860
        %3873 = vmatprep.subr.mxu0 0.0
        %3874 = vmatpush1.msra.mxu0 %v3862
        %3875 = vmatprep.subr.mxu0 0.0
        %3876 = vmatpush1.msra.mxu0 0.0
        %3877 = vmatprep.subr.mxu0 0.0
        %3878 = vmatpush1.msra.mxu0 0.0
        %3879 = vmatprep.subr.mxu0 0.0
        %3880 = vmatpush1.msra.mxu0 0.0
        %3881 = vmatprep.subr.mxu0 0.0
        %3882 = vmatpush1.msra.mxu0 0.0
        %3883 = vmatprep.subr.mxu0 0.0
        %3884 = vmatpush1.msra.mxu0 0.0
        %3885 = vmatprep.subr.mxu0 0.0
        %3886 = vmatpush1.msra.mxu0 0.0
        %3887 = vmatprep.subr.mxu0 0.0
        %3888 = vmatpush1.msra.mxu0 0.0
        %3889 = vmatprep.subr.mxu0 0.0
        %3890 = vmatpush1.msra.mxu0 0.0
        %3891 = vmatprep.subr.mxu0 0.0
        %3892 = vmatpush1.msra.mxu0 0.0
        %3893 = vmatprep.subr.mxu0 0.0
        %3894 = vmatpush1.msra.mxu0 0.0
        %3895 = vmatprep.subr.mxu0 0.0
        %3896 = vmatpush1.msra.mxu0 0.0
        %3897 = vmatprep.subr.mxu0 0.0
        %3898 = vmatpush1.msra.mxu0 0.0
        %3899 = vmatprep.subr.mxu0 0.0
        %3900 = vmatpush1.msra.mxu0 0.0
        %3901 = vmatprep.subr.mxu0 0.0
        %3902 = vmatpush1.msra.mxu0 0.0
        %3903 = vmatprep.subr.mxu0 0.0
        %3904 = vmatpush1.msra.mxu0 0.0
        %3905 = vmatprep.subr.mxu0 0.0
        %3906 = vmatpush1.msra.mxu0 0.0
        %3907 = vmatprep.subr.mxu0 0.0
        %3908 = vmatpush1.msra.mxu0 0.0
        %3909 = vmatprep.subr.mxu0 0.0
        %3910 = vmatpush1.msra.mxu0 0.0
        %3911 = vmatprep.subr.mxu0 0.0
        %3912 = vmatpush1.msra.mxu0 0.0
        %3913 = vmatprep.subr.mxu0 0.0
        %3914 = vmatpush1.msra.mxu0 0.0
        %3915 = vmatprep.subr.mxu0 0.0
        %3916 = vmatpush1.msra.mxu0 0.0
        %3917 = vmatprep.subr.mxu0 0.0
        %3918 = vmatpush1.msra.mxu0 0.0
        %3919 = vmatprep.subr.mxu0 0.0
        %3920 = vmatpush1.msra.mxu0 0.0
        %3921 = vmatprep.subr.mxu0 0.0
        %3922 = vmatpush1.msra.mxu0 0.0
        %3923 = vmatprep.subr.mxu0 0.0
        %3924 = vmatpush1.msra.mxu0 0.0
        %3925 = vmatprep.subr.mxu0 0.0
        %3926 = vmatpush1.msra.mxu0 0.0
        %3927 = vmatprep.subr.mxu0 0.0
        %3928 = vmatpush1.msra.mxu0 0.0
        %3929 = vmatprep.subr.mxu0 0.0
        %3930 = vmatpush1.msra.mxu0 0.0
        %3931 = vmatprep.subr.mxu0 0.0
        %3932 = vmatpush1.msra.mxu0 0.0
        %3933 = vmatprep.subr.mxu0 0.0
        %3934 = vmatpush1.msra.mxu0 0.0
        %3935 = vmatprep.mubr.f32.mxu0 0.0
        %3936 = vmatmul.mubr.f32.gmra.mrb[0].mxu0 %v3866
        %v3937 = vpop.f32.mrb[0].mxu0
        %v3938 = vadd.f32 0.0, %v3937
        %v3939 = vpop.f32.mrb[0].mxu0
        %3940 = vmatprep.mubr.f32.mxu0 0.0
        %3941 = vmatmul.mubr.f32.gmra.mrb[0].mxu0 %v3869
        %v3942 = vpop.f32.mrb[0].mxu0
        %v3943 = vadd.f32 0.0, %v3942
        %v3944 = vpop.f32.mrb[0].mxu0
        %3945 = vdwg.mxu0
        %3946 = vrot.lane.b32.xlu0 %v958, 104
        %v3947 = vpop.permute.xlu0 %3946
        %3948 = vrot.lane.b32.xlu0 %v963, 104
        %v3949 = vpop.permute.xlu0 %3948
        %v3953 = vsel %vm1353, %v3853, 0
        %v3956 = vsel %vm1353, %v3854, 0
        %3958 = vmatprep.subr.mxu0 0.0
        %3959 = vmatpush1.msra.mxu0 %v3947
        %3960 = vmatprep.subr.mxu0 0.0
        %3961 = vmatpush1.msra.mxu0 %v3949
        %3962 = vmatprep.subr.mxu0 0.0
        %3963 = vmatpush1.msra.mxu0 0.0
        %3964 = vmatprep.subr.mxu0 0.0
        %3965 = vmatpush1.msra.mxu0 0.0
        %3966 = vmatprep.subr.mxu0 0.0
        %3967 = vmatpush1.msra.mxu0 0.0
        %3968 = vmatprep.subr.mxu0 0.0
        %3969 = vmatpush1.msra.mxu0 0.0
        %3970 = vmatprep.subr.mxu0 0.0
        %3971 = vmatpush1.msra.mxu0 0.0
        %3972 = vmatprep.subr.mxu0 0.0
        %3973 = vmatpush1.msra.mxu0 0.0
        %3974 = vmatprep.subr.mxu0 0.0
        %3975 = vmatpush1.msra.mxu0 0.0
        %3976 = vmatprep.subr.mxu0 0.0
        %3977 = vmatpush1.msra.mxu0 0.0
        %3978 = vmatprep.subr.mxu0 0.0
        %3979 = vmatpush1.msra.mxu0 0.0
        %3980 = vmatprep.subr.mxu0 0.0
        %3981 = vmatpush1.msra.mxu0 0.0
        %3982 = vmatprep.subr.mxu0 0.0
        %3983 = vmatpush1.msra.mxu0 0.0
        %3984 = vmatprep.subr.mxu0 0.0
        %3985 = vmatpush1.msra.mxu0 0.0
        %3986 = vmatprep.subr.mxu0 0.0
        %3987 = vmatpush1.msra.mxu0 0.0
        %3988 = vmatprep.subr.mxu0 0.0
        %3989 = vmatpush1.msra.mxu0 0.0
        %3990 = vmatprep.subr.mxu0 0.0
        %3991 = vmatpush1.msra.mxu0 0.0
        %3992 = vmatprep.subr.mxu0 0.0
        %3993 = vmatpush1.msra.mxu0 0.0
        %3994 = vmatprep.subr.mxu0 0.0
        %3995 = vmatpush1.msra.mxu0 0.0
        %3996 = vmatprep.subr.mxu0 0.0
        %3997 = vmatpush1.msra.mxu0 0.0
        %3998 = vmatprep.subr.mxu0 0.0
        %3999 = vmatpush1.msra.mxu0 0.0
        %4000 = vmatprep.subr.mxu0 0.0
        %4001 = vmatpush1.msra.mxu0 0.0
        %4002 = vmatprep.subr.mxu0 0.0
        %4003 = vmatpush1.msra.mxu0 0.0
        %4004 = vmatprep.subr.mxu0 0.0
        %4005 = vmatpush1.msra.mxu0 0.0
        %4006 = vmatprep.subr.mxu0 0.0
        %4007 = vmatpush1.msra.mxu0 0.0
        %4008 = vmatprep.subr.mxu0 0.0
        %4009 = vmatpush1.msra.mxu0 0.0
        %4010 = vmatprep.subr.mxu0 0.0
        %4011 = vmatpush1.msra.mxu0 0.0
        %4012 = vmatprep.subr.mxu0 0.0
        %4013 = vmatpush1.msra.mxu0 0.0
        %4014 = vmatprep.subr.mxu0 0.0
        %4015 = vmatpush1.msra.mxu0 0.0
        %4016 = vmatprep.subr.mxu0 0.0
        %4017 = vmatpush1.msra.mxu0 0.0
        %4018 = vmatprep.subr.mxu0 0.0
        %4019 = vmatpush1.msra.mxu0 0.0
        %4020 = vmatprep.subr.mxu0 0.0
        %4021 = vmatpush1.msra.mxu0 0.0
        %4022 = vmatprep.mubr.f32.mxu0 0.0
        %4023 = vmatmul.mubr.f32.gmra.mrb[0].mxu0 %v3953
        %v4024 = vpop.f32.mrb[0].mxu0
        %v4025 = vadd.f32 0.0, %v4024
        %v4026 = vpop.f32.mrb[0].mxu0
        %4027 = vmatprep.mubr.f32.mxu0 0.0
        %4028 = vmatmul.mubr.f32.gmra.mrb[0].mxu0 %v3956
        %v4029 = vpop.f32.mrb[0].mxu0
        %v4030 = vadd.f32 0.0, %v4029
        %v4031 = vpop.f32.mrb[0].mxu0
        %4032 = vdwg.mxu0
        %4033 = vrot.lane.b32.xlu0 %v968, 104
        %v4034 = vpop.permute.xlu0 %4033
        %4035 = vrot.lane.b32.xlu0 %v973, 104
        %v4036 = vpop.permute.xlu0 %4035
        %v4040 = vsel %vm1353, %v3855, 0
        %v4043 = vsel %vm1353, %v3856, 0
        %4045 = vmatprep.subr.mxu0 0.0
        %4046 = vmatpush1.msra.mxu0 %v4034
        %4047 = vmatprep.subr.mxu0 0.0
        %4048 = vmatpush1.msra.mxu0 %v4036
        %4049 = vmatprep.subr.mxu0 0.0
        %4050 = vmatpush1.msra.mxu0 0.0
        %4051 = vmatprep.subr.mxu0 0.0
        %4052 = vmatpush1.msra.mxu0 0.0
        %4053 = vmatprep.subr.mxu0 0.0
        %4054 = vmatpush1.msra.mxu0 0.0
        %4055 = vmatprep.subr.mxu0 0.0
        %4056 = vmatpush1.msra.mxu0 0.0
        %4057 = vmatprep.subr.mxu0 0.0
        %4058 = vmatpush1.msra.mxu0 0.0
        %4059 = vmatprep.subr.mxu0 0.0
        %4060 = vmatpush1.msra.mxu0 0.0
        %4061 = vmatprep.subr.mxu0 0.0
        %4062 = vmatpush1.msra.mxu0 0.0
        %4063 = vmatprep.subr.mxu0 0.0
        %4064 = vmatpush1.msra.mxu0 0.0
        %4065 = vmatprep.subr.mxu0 0.0
        %4066 = vmatpush1.msra.mxu0 0.0
        %4067 = vmatprep.subr.mxu0 0.0
        %4068 = vmatpush1.msra.mxu0 0.0
        %4069 = vmatprep.subr.mxu0 0.0
        %4070 = vmatpush1.msra.mxu0 0.0
        %4071 = vmatprep.subr.mxu0 0.0
        %4072 = vmatpush1.msra.mxu0 0.0
        %4073 = vmatprep.subr.mxu0 0.0
        %4074 = vmatpush1.msra.mxu0 0.0
        %4075 = vmatprep.subr.mxu0 0.0
        %4076 = vmatpush1.msra.mxu0 0.0
        %4077 = vmatprep.subr.mxu0 0.0
        %4078 = vmatpush1.msra.mxu0 0.0
        %4079 = vmatprep.subr.mxu0 0.0
        %4080 = vmatpush1.msra.mxu0 0.0
        %4081 = vmatprep.subr.mxu0 0.0
        %4082 = vmatpush1.msra.mxu0 0.0
        %4083 = vmatprep.subr.mxu0 0.0
        %4084 = vmatpush1.msra.mxu0 0.0
        %4085 = vmatprep.subr.mxu0 0.0
        %4086 = vmatpush1.msra.mxu0 0.0
        %4087 = vmatprep.subr.mxu0 0.0
        %4088 = vmatpush1.msra.mxu0 0.0
        %4089 = vmatprep.subr.mxu0 0.0
        %4090 = vmatpush1.msra.mxu0 0.0
        %4091 = vmatprep.subr.mxu0 0.0
        %4092 = vmatpush1.msra.mxu0 0.0
        %4093 = vmatprep.subr.mxu0 0.0
        %4094 = vmatpush1.msra.mxu0 0.0
        %4095 = vmatprep.subr.mxu0 0.0
        %4096 = vmatpush1.msra.mxu0 0.0
        %4097 = vmatprep.subr.mxu0 0.0
        %4098 = vmatpush1.msra.mxu0 0.0
        %4099 = vmatprep.subr.mxu0 0.0
        %4100 = vmatpush1.msra.mxu0 0.0
        %4101 = vmatprep.subr.mxu0 0.0
        %4102 = vmatpush1.msra.mxu0 0.0
        %4103 = vmatprep.subr.mxu0 0.0
        %4104 = vmatpush1.msra.mxu0 0.0
        %4105 = vmatprep.subr.mxu0 0.0
        %4106 = vmatpush1.msra.mxu0 0.0
        %4107 = vmatprep.subr.mxu0 0.0
        %4108 = vmatpush1.msra.mxu0 0.0
        %4109 = vmatprep.mubr.f32.mxu0 0.0
        %4110 = vmatmul.mubr.f32.gmra.mrb[0].mxu0 %v4040
        %v4111 = vpop.f32.mrb[0].mxu0
        %v4112 = vadd.f32 0.0, %v4111
        %v4113 = vpop.f32.mrb[0].mxu0
        %4114 = vmatprep.mubr.f32.mxu0 0.0
        %4115 = vmatmul.mubr.f32.gmra.mrb[0].mxu0 %v4043
        %v4116 = vpop.f32.mrb[0].mxu0
        %v4117 = vadd.f32 0.0, %v4116
        %v4118 = vpop.f32.mrb[0].mxu0
        %4119 = vdwg.mxu0
        %4120 = vrot.lane.b32.xlu0 %v978, 104
        %v4121 = vpop.permute.xlu0 %4120
        %4122 = vrot.lane.b32.xlu0 %v983, 104
        %v4123 = vpop.permute.xlu0 %4122
        %v4127 = vsel %vm1353, %v3857, 0
        %v4130 = vsel %vm1353, %v3858, 0
        %4132 = vmatprep.subr.mxu0 0.0
        %4133 = vmatpush1.msra.mxu0 %v4121
        %4134 = vmatprep.subr.mxu0 0.0
        %4135 = vmatpush1.msra.mxu0 %v4123
        %4136 = vmatprep.subr.mxu0 0.0
        %4137 = vmatpush1.msra.mxu0 0.0
        %4138 = vmatprep.subr.mxu0 0.0
        %4139 = vmatpush1.msra.mxu0 0.0
        %4140 = vmatprep.subr.mxu0 0.0
        %4141 = vmatpush1.msra.mxu0 0.0
        %4142 = vmatprep.subr.mxu0 0.0
        %4143 = vmatpush1.msra.mxu0 0.0
        %4144 = vmatprep.subr.mxu0 0.0
        %4145 = vmatpush1.msra.mxu0 0.0
        %4146 = vmatprep.subr.mxu0 0.0
        %4147 = vmatpush1.msra.mxu0 0.0
        %4148 = vmatprep.subr.mxu0 0.0
        %4149 = vmatpush1.msra.mxu0 0.0
        %4150 = vmatprep.subr.mxu0 0.0
        %4151 = vmatpush1.msra.mxu0 0.0
        %4152 = vmatprep.subr.mxu0 0.0
        %4153 = vmatpush1.msra.mxu0 0.0
        %4154 = vmatprep.subr.mxu0 0.0
        %4155 = vmatpush1.msra.mxu0 0.0
        %4156 = vmatprep.subr.mxu0 0.0
        %4157 = vmatpush1.msra.mxu0 0.0
        %4158 = vmatprep.subr.mxu0 0.0
        %4159 = vmatpush1.msra.mxu0 0.0
        %4160 = vmatprep.subr.mxu0 0.0
        %4161 = vmatpush1.msra.mxu0 0.0
        %4162 = vmatprep.subr.mxu0 0.0
        %4163 = vmatpush1.msra.mxu0 0.0
        %4164 = vmatprep.subr.mxu0 0.0
        %4165 = vmatpush1.msra.mxu0 0.0
        %4166 = vmatprep.subr.mxu0 0.0
        %4167 = vmatpush1.msra.mxu0 0.0
        %4168 = vmatprep.subr.mxu0 0.0
        %4169 = vmatpush1.msra.mxu0 0.0
        %4170 = vmatprep.subr.mxu0 0.0
        %4171 = vmatpush1.msra.mxu0 0.0
        %4172 = vmatprep.subr.mxu0 0.0
        %4173 = vmatpush1.msra.mxu0 0.0
        %4174 = vmatprep.subr.mxu0 0.0
        %4175 = vmatpush1.msra.mxu0 0.0
        %4176 = vmatprep.subr.mxu0 0.0
        %4177 = vmatpush1.msra.mxu0 0.0
        %4178 = vmatprep.subr.mxu0 0.0
        %4179 = vmatpush1.msra.mxu0 0.0
        %4180 = vmatprep.subr.mxu0 0.0
        %4181 = vmatpush1.msra.mxu0 0.0
        %4182 = vmatprep.subr.mxu0 0.0
        %4183 = vmatpush1.msra.mxu0 0.0
        %4184 = vmatprep.subr.mxu0 0.0
        %4185 = vmatpush1.msra.mxu0 0.0
        %4186 = vmatprep.subr.mxu0 0.0
        %4187 = vmatpush1.msra.mxu0 0.0
        %4188 = vmatprep.subr.mxu0 0.0
        %4189 = vmatpush1.msra.mxu0 0.0
        %4190 = vmatprep.subr.mxu0 0.0
        %4191 = vmatpush1.msra.mxu0 0.0
        %4192 = vmatprep.subr.mxu0 0.0
        %4193 = vmatpush1.msra.mxu0 0.0
        %4194 = vmatprep.subr.mxu0 0.0
        %4195 = vmatpush1.msra.mxu0 0.0
        %4196 = vmatprep.mubr.f32.mxu0 0.0
        %4197 = vmatmul.mubr.f32.gmra.mrb[0].mxu0 %v4127
        %v4198 = vpop.f32.mrb[0].mxu0
        %v4199 = vadd.f32 0.0, %v4198
        %v4200 = vpop.f32.mrb[0].mxu0
        %4201 = vmatprep.mubr.f32.mxu0 0.0
        %4202 = vmatmul.mubr.f32.gmra.mrb[0].mxu0 %v4130
        %v4203 = vpop.f32.mrb[0].mxu0
        %v4204 = vadd.f32 0.0, %v4203
        %v4205 = vpop.f32.mrb[0].mxu0
        %4206 = vdwg.mxu0
        %4215 = vrot.lane.b32.xlu0 %v2310, 8
        %v4216 = vpop.permute.xlu0 %4215
        %4217 = vrot.lane.b32.xlu0 %v2315, 8
        %v4218 = vpop.permute.xlu0 %4217
        %4219 = vrot.lane.b32.xlu0 %v2399, 8
        %v4220 = vpop.permute.xlu0 %4219
        %4221 = vrot.lane.b32.xlu0 %v2404, 8
        %v4222 = vpop.permute.xlu0 %4221
        %4223 = vrot.lane.b32.xlu0 %v2488, 8
        %v4224 = vpop.permute.xlu0 %4223
        %4225 = vrot.lane.b32.xlu0 %v2493, 8
        %v4226 = vpop.permute.xlu0 %4225
        %4227 = vrot.lane.b32.xlu0 %v2577, 8
        %v4228 = vpop.permute.xlu0 %4227
        %4229 = vrot.lane.b32.xlu0 %v2582, 8
        %v4230 = vpop.permute.xlu0 %4229
        %4247 = vrot.lane.b32.xlu0 %v3127, 16
        %v4248 = vpop.permute.xlu0 %4247
        %4249 = vrot.lane.b32.xlu0 %v3132, 16
        %v4250 = vpop.permute.xlu0 %4249
        %4251 = vrot.lane.b32.xlu0 %v3214, 16
        %v4252 = vpop.permute.xlu0 %4251
        %4253 = vrot.lane.b32.xlu0 %v3219, 16
        %v4254 = vpop.permute.xlu0 %4253
        %4255 = vrot.lane.b32.xlu0 %v3301, 16
        %v4256 = vpop.permute.xlu0 %4255
        %4257 = vrot.lane.b32.xlu0 %v3306, 16
        %v4258 = vpop.permute.xlu0 %4257
        %4259 = vrot.lane.b32.xlu0 %v3388, 16
        %v4260 = vpop.permute.xlu0 %4259
        %4261 = vrot.lane.b32.xlu0 %v3393, 16
        %v4262 = vpop.permute.xlu0 %4261
        %4279 = vrot.lane.b32.xlu0 %v3938, 24
        %v4280 = vpop.permute.xlu0 %4279
        %4281 = vrot.lane.b32.xlu0 %v3943, 24
        %v4282 = vpop.permute.xlu0 %4281
        %4283 = vrot.lane.b32.xlu0 %v4025, 24
        %v4284 = vpop.permute.xlu0 %4283
        %4285 = vrot.lane.b32.xlu0 %v4030, 24
        %v4286 = vpop.permute.xlu0 %4285
        %4287 = vrot.lane.b32.xlu0 %v4112, 24
        %v4288 = vpop.permute.xlu0 %4287
        %4289 = vrot.lane.b32.xlu0 %v4117, 24
        %v4290 = vpop.permute.xlu0 %4289
        %4291 = vrot.lane.b32.xlu0 %v4199, 24
        %v4292 = vpop.permute.xlu0 %4291
        %4293 = vrot.lane.b32.xlu0 %v4204, 24
        %v4294 = vpop.permute.xlu0 %4293
        %v4303 = vsel %vm1004, %v1515, %v4216
        %v4304 = vsel %vm1004, %v1520, %v4218
        %v4305 = vsel %vm1004, %v1596, %v4220
        %v4306 = vsel %vm1004, %v1601, %v4222
        %v4307 = vsel %vm1004, %v1677, %v4224
        %v4308 = vsel %vm1004, %v1682, %v4226
        %v4309 = vsel %vm1004, %v1758, %v4228
        %v4310 = vsel %vm1004, %v1763, %v4230
        %v4311 = vsel %vm1353, %v4303, %v4248
        %v4312 = vsel %vm1353, %v4304, %v4250
        %v4313 = vsel %vm1353, %v4305, %v4252
        %v4314 = vsel %vm1353, %v4306, %v4254
        %v4315 = vsel %vm1353, %v4307, %v4256
        %v4316 = vsel %vm1353, %v4308, %v4258
        %v4317 = vsel %vm1353, %v4309, %v4260
        %v4318 = vsel %vm1353, %v4310, %v4262
        %vm4319 = vcmask 195584
        %v4320 = vsel %vm4319, %v4311, %v4280
        %v4321 = vsel %vm4319, %v4312, %v4282
        %v4322 = vsel %vm4319, %v4313, %v4284
        %v4323 = vsel %vm4319, %v4314, %v4286
        %v4324 = vsel %vm4319, %v4315, %v4288
        %v4325 = vsel %vm4319, %v4316, %v4290
        %v4326 = vsel %vm4319, %v4317, %v4292
        %v4327 = vsel %vm4319, %v4318, %v4294
        %v4328 = vld [vmem:[#allocation10] sm:$0xff]
        %v4329 = vld [vmem:[#allocation10 + $0x8] sm:$0xff]
        %v4330 = vld [vmem:[#allocation10 + $0x10] sm:$0xff]
        %v4331 = vld [vmem:[#allocation10 + $0x18] sm:$0xff]
        %v4332 = vld [vmem:[%s6] sm:$0x1]
        %v4334 = vlaneseq
        %v4335 = vshrl.u32 %v4334, 7
        %v4336 = vsub.s32 0, %v4335
        %v4337 = vrot.slane %v4332, %v4336
        %v4340 = vsel %vm564, %v4320, 0
        %v4343 = vsel %vm564, %v4321, 0
        %v4346 = vsel %vm564, %v4322, 0
        %v4349 = vsel %vm564, %v4323, 0
        %v4352 = vsel %vm564, %v4324, 0
        %v4355 = vsel %vm564, %v4325, 0
        %v4358 = vsel %vm564, %v4326, 0
        %v4361 = vsel %vm564, %v4327, 0
        %4363 = vmatprep.subr.mxu0 0.0
        %4364 = vmatpush1.msra.mxu0 %v4328
        %4365 = vmatprep.subr.mxu0 0.0
        %4366 = vmatpush1.msra.mxu0 %v4329
        %4367 = vmatprep.subr.mxu0 0.0
        %4368 = vmatpush1.msra.mxu0 %v4330
        %4369 = vmatprep.subr.mxu0 0.0
        %4370 = vmatpush1.msra.mxu0 %v4331
        %4371 = vmatprep.subr.mxu0 0.0
        %4372 = vmatpush1.msra.mxu0 0.0
        %4373 = vmatprep.subr.mxu0 0.0
        %4374 = vmatpush1.msra.mxu0 0.0
        %4375 = vmatprep.subr.mxu0 0.0
        %4376 = vmatpush1.msra.mxu0 0.0
        %4377 = vmatprep.subr.mxu0 0.0
        %4378 = vmatpush1.msra.mxu0 0.0
        %4379 = vmatprep.subr.mxu0 0.0
        %4380 = vmatpush1.msra.mxu0 0.0
        %4381 = vmatprep.subr.mxu0 0.0
        %4382 = vmatpush1.msra.mxu0 0.0
        %4383 = vmatprep.subr.mxu0 0.0
        %4384 = vmatpush1.msra.mxu0 0.0
        %4385 = vmatprep.subr.mxu0 0.0
        %4386 = vmatpush1.msra.mxu0 0.0
        %4387 = vmatprep.subr.mxu0 0.0
        %4388 = vmatpush1.msra.mxu0 0.0
        %4389 = vmatprep.subr.mxu0 0.0
        %4390 = vmatpush1.msra.mxu0 0.0
        %4391 = vmatprep.subr.mxu0 0.0
        %4392 = vmatpush1.msra.mxu0 0.0
        %4393 = vmatprep.subr.mxu0 0.0
        %4394 = vmatpush1.msra.mxu0 0.0
        %4395 = vmatprep.subr.mxu0 0.0
        %4396 = vmatpush1.msra.mxu0 0.0
        %4397 = vmatprep.subr.mxu0 0.0
        %4398 = vmatpush1.msra.mxu0 0.0
        %4399 = vmatprep.subr.mxu0 0.0
        %4400 = vmatpush1.msra.mxu0 0.0
        %4401 = vmatprep.subr.mxu0 0.0
        %4402 = vmatpush1.msra.mxu0 0.0
        %4403 = vmatprep.subr.mxu0 0.0
        %4404 = vmatpush1.msra.mxu0 0.0
        %4405 = vmatprep.subr.mxu0 0.0
        %4406 = vmatpush1.msra.mxu0 0.0
        %4407 = vmatprep.subr.mxu0 0.0
        %4408 = vmatpush1.msra.mxu0 0.0
        %4409 = vmatprep.subr.mxu0 0.0
        %4410 = vmatpush1.msra.mxu0 0.0
        %4411 = vmatprep.subr.mxu0 0.0
        %4412 = vmatpush1.msra.mxu0 0.0
        %4413 = vmatprep.subr.mxu0 0.0
        %4414 = vmatpush1.msra.mxu0 0.0
        %4415 = vmatprep.subr.mxu0 0.0
        %4416 = vmatpush1.msra.mxu0 0.0
        %4417 = vmatprep.subr.mxu0 0.0
        %4418 = vmatpush1.msra.mxu0 0.0
        %4419 = vmatprep.subr.mxu0 0.0
        %4420 = vmatpush1.msra.mxu0 0.0
        %4421 = vmatprep.subr.mxu0 0.0
        %4422 = vmatpush1.msra.mxu0 0.0
        %4423 = vmatprep.subr.mxu0 0.0
        %4424 = vmatpush1.msra.mxu0 0.0
        %4425 = vmatprep.subr.mxu0 0.0
        %4426 = vmatpush1.msra.mxu0 0.0
        %4427 = vmatprep.mubr.f32.mxu0 0.0
        %4428 = vmatmul.mubr.f32.gmra.mrb[0].mxu0 %v4340
        %v4429 = vpop.f32.mrb[0].mxu0
        %v4430 = vadd.f32 %v4337, %v4429
        %v4431 = vpop.f32.mrb[0].mxu0
        %4432 = vmatprep.mubr.f32.mxu0 0.0
        %4433 = vmatmul.mubr.f32.gmra.mrb[0].mxu0 %v4343
        %v4434 = vpop.f32.mrb[0].mxu0
        %v4435 = vadd.f32 %v4337, %v4434
        %v4436 = vpop.f32.mrb[0].mxu0
        %4437 = vmatprep.mubr.f32.mxu0 0.0
        %4438 = vmatmul.mubr.f32.gmra.mrb[0].mxu0 %v4346
        %v4439 = vpop.f32.mrb[0].mxu0
        %v4440 = vadd.f32 %v4337, %v4439
        %v4441 = vpop.f32.mrb[0].mxu0
        %4442 = vmatprep.mubr.f32.mxu0 0.0
        %4443 = vmatmul.mubr.f32.gmra.mrb[0].mxu0 %v4349
        %v4444 = vpop.f32.mrb[0].mxu0
        %v4445 = vadd.f32 %v4337, %v4444
        %v4446 = vpop.f32.mrb[0].mxu0
        %4447 = vmatprep.mubr.f32.mxu0 0.0
        %4448 = vmatmul.mubr.f32.gmra.mrb[0].mxu0 %v4352
        %v4449 = vpop.f32.mrb[0].mxu0
        %v4450 = vadd.f32 %v4337, %v4449
        %v4451 = vpop.f32.mrb[0].mxu0
        %4452 = vmatprep.mubr.f32.mxu0 0.0
        %4453 = vmatmul.mubr.f32.gmra.mrb[0].mxu0 %v4355
        %v4454 = vpop.f32.mrb[0].mxu0
        %v4455 = vadd.f32 %v4337, %v4454
        %v4456 = vpop.f32.mrb[0].mxu0
        %4457 = vmatprep.mubr.f32.mxu0 0.0
        %4458 = vmatmul.mubr.f32.gmra.mrb[0].mxu0 %v4358
        %v4459 = vpop.f32.mrb[0].mxu0
        %v4460 = vadd.f32 %v4337, %v4459
        %v4461 = vpop.f32.mrb[0].mxu0
        %4462 = vmatprep.mubr.f32.mxu0 0.0
        %4463 = vmatmul.mubr.f32.gmra.mrb[0].mxu0 %v4361
        %v4464 = vpop.f32.mrb[0].mxu0
        %v4465 = vadd.f32 %v4337, %v4464
        %v4466 = vpop.f32.mrb[0].mxu0
        %4467 = vdwg.mxu0
        %4468 = vst.msk [vmem:[%s523] sm:$0xff] %vm564, %v4430
        %4469 = vst.msk [vmem:[%s523 + $0x8] sm:$0xff] %vm564, %v4435
        %4470 = vst.msk [vmem:[%s523 + $0x10] sm:$0xff] %vm564, %v4440
        %4471 = vst.msk [vmem:[%s523 + $0x18] sm:$0xff] %vm564, %v4445
        %4472 = vst.msk [vmem:[%s523 + $0x20] sm:$0xff] %vm564, %v4450
        %4473 = vst.msk [vmem:[%s523 + $0x28] sm:$0xff] %vm564, %v4455
        %4474 = vst.msk [vmem:[%s523 + $0x30] sm:$0xff] %vm564, %v4460
        %4475 = vst.msk [vmem:[%s523 + $0x38] sm:$0xff] %vm564, %v4465
        %s4476 = sand.u32 %s268, 1
        %s4477 = scalar_lea.sflag [#allocation4], %s4476
        %s4478 = sand.u32 %s268, 1
        %s4479 = smul.addr %s4478, 64
        %s4480 = scalar_lea.vmem [#allocation14], %s4479
        // Predicated region
        $region85: #{tpu_custom_call.1} parent=55 // pred_check
          %p4481 = pneg %p278
        $region86: #{tpu_custom_call.1} parent=55 // pred_check_branch
          %4483 = sbr.rel (%p4481) target = $region88
        $region87: #{tpu_custom_call.1} parent=55 // pred_region
          %s4484 = smul.u32 4, %s36
          %s4486 = ssub.s32 1024, 1024
          %4487 = vsyncadd %s4477, %s4486
          %s4488 = smul.addr %s4484, 2
          %s4489 = smul.addr %s35, 8
          %s4490 = sadd.s32 %s4488, %s4489
          %s4491 = smul.addr %s4490, 128
          %s4492 = scalar_lea.hbm %s9, %s4491
          %s4493 = sshll.u32 %s4480, 4
          %s4494 = int_to_ptr.vmem [resolvable:$true] %s4493
          %4499 = dma.vmem_to_hbm [thread:$0]  %s4494, 1024, %s4492, %s4477, 128, 128, 8
        $region88: #{tpu_custom_call.1} parent=55 // pred_fallthru
          _
      $region56: #{tpu_custom_call.1} parent=5 // pred_fallthru
        _
      %p4500 = scmp.le.s32.totalorder 2, %s26
      // Predicated region
      $region89: #{tpu_custom_call.1} parent=5 // pred_check
        %p4501 = pneg %p4500
      $region90: #{tpu_custom_call.1} parent=5 // pred_check_branch
        %4503 = sbr.rel (%p4501) target = $region92
      $region91: #{tpu_custom_call.1} parent=5 // pred_region
        %s4504 = ssub.s32 %s26, 2
        // Predicated region
        $region93: #{tpu_custom_call.1} parent=91 // pred_check
          %p4505 = pneg %p284
        $region94: #{tpu_custom_call.1} parent=91 // pred_check_branch
          %4507 = sbr.rel (%p4505) target = $region96
        $region95: #{tpu_custom_call.1} parent=91 // pred_region
          %s4508 = sand.u32 %s269, 1
          %s4509 = scalar_lea.sflag [#allocation4], %s4508
          %s4510 = sand.u32 %s269, 1
          %s4511 = smul.addr %s4510, 64
          %s4512 = scalar_lea.vmem [#allocation14], %s4511
          %4513 = dma.done %s4509, 1024
        $region96: #{tpu_custom_call.1} parent=91 // pred_fallthru
          _
      $region92: #{tpu_custom_call.1} parent=5 // pred_fallthru
        _
    $region6: #{tpu_custom_call.1} parent=1 // loop_footer
      %s30 = sadd.s32 1, %s26
    $region7: #{tpu_custom_call.1} parent=1 // loop_footer_branch
      %25 = sbr.rel target = $region3
    $region8: #{tpu_custom_call.1} parent=1 // loop_exit
      _
    %4514 = vsyncpa [#allocation3], 1
    %s4515 = scalar_lea.sflag [#allocation3], 1
    %4516 = vsyncpa %s4515, 1
    %4517 = vsyncpa [#allocation6], 1
    %s4518 = scalar_lea.sflag [#allocation6], 1
    %4519 = vsyncpa %s4518, 1
    %4520 = vsyncpa [#allocation9], 1
    %4521 = vsyncpa [#allocation12], 1
    %4522 = vsyncpa [#allocation4], 1
    %s4523 = scalar_lea.sflag [#allocation4], 1
    %4524 = vsyncpa %s4523, 1

</llo_original>
